<compile_context>
chip_gen: v5e
topology: v5e:2x2
jax: 0.10.0
libtpu: 0.0.40
codegen_flags: <defaults>
</compile_context>

<pallas_src>
import jax
import jax.numpy as jnp
from jax import lax
from jax.experimental import pallas as pl
from jax.experimental.pallas import tpu as pltpu

# ---------------------------------------------------------------------------
# Static model configuration (spatial scaled 128 -> 16, see header).
# ---------------------------------------------------------------------------
H = W = 16                         # input spatial size
KH = KW = 3                        # conv kernel
HO, WO = H - KH + 1, W - KW + 1    # 14 x 14 valid conv output
C_OUT = 32                         # conv channels
HID = 128                          # fc1 width
SPATIAL = H * W                    # 256 padded (16x16) spatial positions per channel
F_REAL = C_OUT * HO * WO           # 6272 true fc1 fan-in (torch layout)
KT = 2                             # fc1 reduction grid steps (channel groups)
NC = C_OUT // KT                   # 16 conv channels handled per grid step
TAP_PAD = 128                      # zero tail so every 3x3 tap slice is in-bounds
TAPS = tuple(di * W + dj for di in range(KH) for dj in range(KW))   # 9 static shifts


# ---------------------------------------------------------------------------
# Fused kernel: conv3x3+relu (VPU, per channel) -> fc1 partial (MXU, bf16 weights)
#               -> [last step] fc1 bias+relu, fc2, sigmoid.
# ---------------------------------------------------------------------------
def fused_forward_kernel(img_ref, wc_ref, bc_ref, w1_ref, b1_ref, w2_ref, b2_ref,
                         o_ref, acc_ref, imgp_ref):
    k = pl.program_id(0)

    @pl.when(k == 0)
    def _():
        acc_ref[...] = jnp.zeros_like(acc_ref)
        # Zero-tailed copy of the raw image: tap reads beyond the 16x16 grid land in the
        # tail (finite zeros) and only contribute to spatial positions whose fc1 rows
        # are zero-padded, so they never affect the result.
        imgp_ref[...] = jnp.zeros_like(imgp_ref)
        imgp_ref[:, :SPATIAL] = img_ref[...]

    # 9 tap-shifted slabs of the raw image, computed once per step on the narrow window.
    taps = [imgp_ref[:, s:s + SPATIAL] for s in TAPS]          # each (B, 256) f32

    # conv + relu per channel (VPU scalar*vector MACs), immediately contracted on the
    # MXU against this step's bf16 fc1 weight block, accumulating in f32.
    for i in range(NC):
        c = k * NC + i                                         # global conv channel
        conv = taps[0] * wc_ref[0, c]
        for t in range(1, KH * KW):
            conv = conv + taps[t] * wc_ref[t, c]
        feat = jnp.maximum(conv + bc_ref[c], 0.0).astype(jnp.bfloat16)   # (B, 256)
        acc_ref[...] += jnp.dot(feat, w1_ref[i], preferred_element_type=jnp.float32)

    # ---- epilogue: fc1 bias+relu -> fc2 -> sigmoid ---------------------------------
    @pl.when(k == KT - 1)
    def _():
        h = jnp.maximum(acc_ref[...] + b1_ref[...], 0.0)                 # (B, HID)
        y = jnp.sum(h * w2_ref[...], axis=-1, keepdims=True) + b2_ref[...]
        o_ref[...] = 1.0 / (1.0 + jnp.exp(-y))                           # sigmoid


def build_forward(batch):
    grid_spec = pltpu.PrefetchScalarGridSpec(
        num_scalar_prefetch=0,
        grid=(KT,),
        in_specs=[
            pl.BlockSpec((batch, SPATIAL), lambda k: (0, 0)),       # raw image (resident)
            pl.BlockSpec(memory_space=pltpu.MemorySpace.SMEM),      # conv weight (9, 32)
            pl.BlockSpec(memory_space=pltpu.MemorySpace.SMEM),      # conv bias (32,)
            pl.BlockSpec((NC, SPATIAL, HID), lambda k: (k, 0, 0)),  # fc1 weight block, bf16
            pl.BlockSpec((1, HID), lambda k: (0, 0)),               # fc1 bias
            pl.BlockSpec((1, HID), lambda k: (0, 0)),               # fc2 weight
            pl.BlockSpec((1, 1), lambda k: (0, 0)),                 # fc2 bias
        ],
        out_specs=pl.BlockSpec((batch, 1), lambda k: (0, 0)),
        scratch_shapes=[
            pltpu.VMEM((batch, HID), jnp.float32),                  # fc1 f32 accumulator
            pltpu.VMEM((batch, SPATIAL + TAP_PAD), jnp.float32),    # zero-tailed image
        ],
    )
    return pl.pallas_call(
        fused_forward_kernel,
        out_shape=jax.ShapeDtypeStruct((batch, 1), jnp.float32),
        grid_spec=grid_spec,
        compiler_params=pltpu.CompilerParams(dimension_semantics=("arbitrary",)),
    )


# ---------------------------------------------------------------------------
# One-time weight re-layout (done outside the hot path).
# ---------------------------------------------------------------------------
def prepare_params(params):
    w_conv, b_conv, w1, b1, w2, b2 = params
    # Raw conv weights/bias, tap-major: wc[t, c] with t = di*3 + dj.  (SMEM in-kernel.)
    wc = jnp.transpose(w_conv.reshape(C_OUT, KH * KW), (1, 0))          # (9, 32)
    bc = b_conv                                                         # (32,)
    # fc1: torch (HID, 32*14*14) -> per-channel, spatially zero-padded (32, 256, HID) bf16.
    w1p = w1.reshape(HID, C_OUT, HO, WO)
    w1p = jnp.pad(w1p, ((0, 0), (0, 0), (0, H - HO), (0, W - WO)))      # pad 14x14 -> 16x16
    w1p = jnp.transpose(w1p, (1, 2, 3, 0)).reshape(C_OUT, SPATIAL, HID)
    # Invariant: fc1 rows for padded spatial positions (r>=HO or s>=WO) are exactly zero.
    assert float(jnp.max(jnp.abs(
        w1p.reshape(C_OUT, H, W, HID)[:, HO:, :, :]))) == 0.0
    assert float(jnp.max(jnp.abs(
        w1p.reshape(C_OUT, H, W, HID)[:, :, WO:, :]))) == 0.0
    return (wc, bc, w1p.astype(jnp.bfloat16),
            b1.reshape(1, HID), w2.reshape(1, HID), b2.reshape(1, 1))


# ---------------------------------------------------------------------------
# Per-call wrapper: only a (free) reshape of the input, then one pallas_call.
# ---------------------------------------------------------------------------
@jax.jit
def temp_speech_classifier_forward(x_nchw, kernel_params):
    """x_nchw: (B, 1, H, W) f32 -> (B, 1) f32 sigmoid probabilities."""
    wc, bc, w1p, b1_row, w2_row, b2_row = kernel_params
    B = x_nchw.shape[0]
    img = x_nchw.reshape(B, SPATIAL)                     # raw image, no tiling / padding
    return build_forward(B)(img, wc, bc, w1p, b1_row, w2_row, b2_row)


# ---------------------------------------------------------------------------
# Pure-JAX reference (mirrors the PyTorch module, f32) + deterministic init.
# ---------------------------------------------------------------------------
def reference_forward(x_nchw, params):
    w_conv, b_conv, w1, b1, w2, b2 = params
    conv = lax.conv_general_dilated(
        x_nchw, w_conv, window_strides=(1, 1), padding="VALID",
        dimension_numbers=("NCHW", "OIHW", "NCHW"))
    conv = jnp.maximum(conv + b_conv.reshape(1, -1, 1, 1), 0.0)
    feat = conv.reshape(conv.shape[0], -1)               # torch .view(B, -1)
    h = jnp.maximum(feat @ w1.T + b1, 0.0)
    y = h @ w2.T + b2
    return 1.0 / (1.0 + jnp.exp(-y))


def init_params(key):
    """PyTorch-style uniform(-1/sqrt(fan_in), +1/sqrt(fan_in)) init, torch layouts."""
    ks = jax.random.split(key, 6)

    def u(k, shape, bound):
        return jax.random.uniform(k, shape, jnp.float32, -bound, bound)

    bc = 1.0 / (1.0 * KH * KW) ** 0.5
    bf1 = 1.0 / float(F_REAL) ** 0.5
    bf2 = 1.0 / float(HID) ** 0.5
    return (u(ks[0], (C_OUT, 1, KH, KW), bc),   # conv weight (O, I, kh, kw)
            u(ks[1], (C_OUT,), bc),             # conv bias
            u(ks[2], (HID, F_REAL), bf1),       # fc1 weight (out, in)
            u(ks[3], (HID,), bf1),              # fc1 bias
            u(ks[4], (1, HID), bf2),            # fc2 weight (out, in)
            u(ks[5], (1,), bf2))                # fc2 bias


if __name__ == "__main__":
    key = jax.random.PRNGKey(0)
    k_x, k_p = jax.random.split(key)

    B = 2
    x = jax.random.normal(k_x, (B, 1, H, W), jnp.float32)   # NCHW like PyTorch
    params = init_params(k_p)
    kparams = prepare_params(params)                         # one-time weight re-layout

    out = temp_speech_classifier_forward(x, kparams)
    out = jax.block_until_ready(out)

    ref = reference_forward(x, params)
    assert out.shape == (B, 1)
    assert bool(jnp.all(jnp.isfinite(out)))
    assert bool(jnp.all((out >= 0.0) & (out <= 1.0)))        # sigmoid range
    # bf16 fc1 weight / activation storage -> small deviation vs the f32 reference
    assert float(jnp.max(jnp.abs(out - ref))) < 1e-2
    print("KERNEL_OK")
</pallas_src>

<mosaic_0001>
module attributes {stable_mosaic.version = 11 : i64} {
  func.func @fused_forward_kernel(%arg0: i32, %arg1: memref<2x256xf32, #tpu.memory_space<vmem>>, %arg2: memref<9x32xf32, #tpu.memory_space<smem>>, %arg3: memref<32xf32, #tpu.memory_space<smem>>, %arg4: memref<16x256x128xbf16, #tpu.memory_space<vmem>>, %arg5: memref<1x128xf32, #tpu.memory_space<vmem>>, %arg6: memref<1x128xf32, #tpu.memory_space<vmem>>, %arg7: memref<1x1xf32, #tpu.memory_space<vmem>>, %arg8: memref<2x1xf32, #tpu.memory_space<vmem>>, %arg9: memref<2x128xf32, #tpu.memory_space<vmem>>, %arg10: memref<2x384xf32, #tpu.memory_space<vmem>>) attributes {dimension_semantics = [#tpu.dimension_semantics<arbitrary>], iteration_bounds = array<i64: 2>, scalar_prefetch = 0 : i64, scratch_operands = 2 : i64, tpu.core_type = #tpu.core_type<tc>, window_params = [{pipeline_mode = #tpu.pipeline_mode<synchronous>, transform_indices = @transform_0, window_bounds = array<i64: 2, 256>}, {transform_indices = @transform_1, window_bounds = array<i64: 9, 32>}, {transform_indices = @transform_2, window_bounds = array<i64: 32>}, {transform_indices = @transform_3, window_bounds = array<i64: 16, 256, 128>}, {pipeline_mode = #tpu.pipeline_mode<synchronous>, transform_indices = @transform_4, window_bounds = array<i64: 1, 128>}, {pipeline_mode = #tpu.pipeline_mode<synchronous>, transform_indices = @transform_5, window_bounds = array<i64: 1, 128>}, {pipeline_mode = #tpu.pipeline_mode<synchronous>, transform_indices = @transform_6, window_bounds = array<i64: 1, 1>}, {pipeline_mode = #tpu.pipeline_mode<synchronous>, transform_indices = @transform_7, window_bounds = array<i64: 2, 1>}]} {
    %c0_i32 = arith.constant 0 : i32
    %0 = arith.cmpi eq, %arg0, %c0_i32 : i32
    %1 = arith.extui %0 : i1 to i32
    %c0_i32_0 = arith.constant 0 : i32
    %2 = arith.cmpi ne, %1, %c0_i32_0 : i32
    scf.if %2 {
      %cst_302 = arith.constant 0.000000e+00 : f32
      %959 = vector.broadcast %cst_302 : f32 to vector<2x128xf32>
      %c0_303 = arith.constant 0 : index
      %c0_304 = arith.constant 0 : index
      %960 = vector.load %arg9[%c0_303, %c0_304] : memref<2x128xf32, #tpu.memory_space<vmem>>, vector<2x128xf32>
      tpu.vector_store %arg9[%c0_303, %c0_304], %959 {strides = array<i32>} : memref<2x128xf32, #tpu.memory_space<vmem>>, vector<2x128xf32>,
      %cst_305 = arith.constant 0.000000e+00 : f32
      %961 = vector.broadcast %cst_305 : f32 to vector<2x384xf32>
      %c0_306 = arith.constant 0 : index
      %c0_307 = arith.constant 0 : index
      %962 = vector.load %arg10[%c0_306, %c0_307] : memref<2x384xf32, #tpu.memory_space<vmem>>, vector<2x384xf32>
      tpu.vector_store %arg10[%c0_306, %c0_307], %961 {strides = array<i32>} : memref<2x384xf32, #tpu.memory_space<vmem>>, vector<2x384xf32>,
      %c0_308 = arith.constant 0 : index
      %c0_309 = arith.constant 0 : index
      %963 = vector.load %arg1[%c0_308, %c0_309] : memref<2x256xf32, #tpu.memory_space<vmem>>, vector<2x256xf32>
      %c0_310 = arith.constant 0 : index
      %c0_311 = arith.constant 0 : index
      %964 = vector.load %arg10[%c0_310, %c0_311] : memref<2x384xf32, #tpu.memory_space<vmem>>, vector<2x256xf32>
      tpu.vector_store %arg10[%c0_310, %c0_311], %963 {strides = array<i32>} : memref<2x384xf32, #tpu.memory_space<vmem>>, vector<2x256xf32>,
    } else {
    }
    %c0 = arith.constant 0 : index
    %c0_1 = arith.constant 0 : index
    %3 = vector.load %arg10[%c0, %c0_1] : memref<2x384xf32, #tpu.memory_space<vmem>>, vector<2x256xf32>
    %c0_2 = arith.constant 0 : index
    %c1 = arith.constant 1 : index
    %4 = vector.load %arg10[%c0_2, %c1] : memref<2x384xf32, #tpu.memory_space<vmem>>, vector<2x256xf32>
    %c0_3 = arith.constant 0 : index
    %c2 = arith.constant 2 : index
    %5 = vector.load %arg10[%c0_3, %c2] : memref<2x384xf32, #tpu.memory_space<vmem>>, vector<2x256xf32>
    %c0_4 = arith.constant 0 : index
    %c16 = arith.constant 16 : index
    %6 = vector.load %arg10[%c0_4, %c16] : memref<2x384xf32, #tpu.memory_space<vmem>>, vector<2x256xf32>
    %c0_5 = arith.constant 0 : index
    %c17 = arith.constant 17 : index
    %7 = vector.load %arg10[%c0_5, %c17] : memref<2x384xf32, #tpu.memory_space<vmem>>, vector<2x256xf32>
    %c0_6 = arith.constant 0 : index
    %c18 = arith.constant 18 : index
    %8 = vector.load %arg10[%c0_6, %c18] : memref<2x384xf32, #tpu.memory_space<vmem>>, vector<2x256xf32>
    %c0_7 = arith.constant 0 : index
    %c32 = arith.constant 32 : index
    %9 = vector.load %arg10[%c0_7, %c32] : memref<2x384xf32, #tpu.memory_space<vmem>>, vector<2x256xf32>
    %c0_8 = arith.constant 0 : index
    %c33 = arith.constant 33 : index
    %10 = vector.load %arg10[%c0_8, %c33] : memref<2x384xf32, #tpu.memory_space<vmem>>, vector<2x256xf32>
    %c0_9 = arith.constant 0 : index
    %c34 = arith.constant 34 : index
    %11 = vector.load %arg10[%c0_9, %c34] : memref<2x384xf32, #tpu.memory_space<vmem>>, vector<2x256xf32>
    %c16_i32 = arith.constant 16 : i32
    %12 = arith.muli %arg0, %c16_i32 : i32
    %c0_i32_10 = arith.constant 0 : i32
    %13 = arith.addi %12, %c0_i32_10 : i32
    %c0_11 = arith.constant 0 : index
    %14 = arith.index_cast %13 : i32 to index
    %15 = memref.load %arg2[%c0_11, %14] : memref<9x32xf32, #tpu.memory_space<smem>>
    %16 = vector.broadcast %15 : f32 to vector<2x256xf32>
    %17 = arith.mulf %3, %16 : vector<2x256xf32>
    %c1_12 = arith.constant 1 : index
    %18 = arith.index_cast %13 : i32 to index
    %19 = memref.load %arg2[%c1_12, %18] : memref<9x32xf32, #tpu.memory_space<smem>>
    %20 = vector.broadcast %19 : f32 to vector<2x256xf32>
    %21 = arith.mulf %4, %20 : vector<2x256xf32>
    %22 = arith.addf %17, %21 : vector<2x256xf32>
    %c2_13 = arith.constant 2 : index
    %23 = arith.index_cast %13 : i32 to index
    %24 = memref.load %arg2[%c2_13, %23] : memref<9x32xf32, #tpu.memory_space<smem>>
    %25 = vector.broadcast %24 : f32 to vector<2x256xf32>
    %26 = arith.mulf %5, %25 : vector<2x256xf32>
    %27 = arith.addf %22, %26 : vector<2x256xf32>
    %c3 = arith.constant 3 : index
    %28 = arith.index_cast %13 : i32 to index
    %29 = memref.load %arg2[%c3, %28] : memref<9x32xf32, #tpu.memory_space<smem>>
    %30 = vector.broadcast %29 : f32 to vector<2x256xf32>
    %31 = arith.mulf %6, %30 : vector<2x256xf32>
    %32 = arith.addf %27, %31 : vector<2x256xf32>
    %c4 = arith.constant 4 : index
    %33 = arith.index_cast %13 : i32 to index
    %34 = memref.load %arg2[%c4, %33] : memref<9x32xf32, #tpu.memory_space<smem>>
    %35 = vector.broadcast %34 : f32 to vector<2x256xf32>
    %36 = arith.mulf %7, %35 : vector<2x256xf32>
    %37 = arith.addf %32, %36 : vector<2x256xf32>
    %c5 = arith.constant 5 : index
    %38 = arith.index_cast %13 : i32 to index
    %39 = memref.load %arg2[%c5, %38] : memref<9x32xf32, #tpu.memory_space<smem>>
    %40 = vector.broadcast %39 : f32 to vector<2x256xf32>
    %41 = arith.mulf %8, %40 : vector<2x256xf32>
    %42 = arith.addf %37, %41 : vector<2x256xf32>
    %c6 = arith.constant 6 : index
    %43 = arith.index_cast %13 : i32 to index
    %44 = memref.load %arg2[%c6, %43] : memref<9x32xf32, #tpu.memory_space<smem>>
    %45 = vector.broadcast %44 : f32 to vector<2x256xf32>
    %46 = arith.mulf %9, %45 : vector<2x256xf32>
    %47 = arith.addf %42, %46 : vector<2x256xf32>
    %c7 = arith.constant 7 : index
    %48 = arith.index_cast %13 : i32 to index
    %49 = memref.load %arg2[%c7, %48] : memref<9x32xf32, #tpu.memory_space<smem>>
    %50 = vector.broadcast %49 : f32 to vector<2x256xf32>
    %51 = arith.mulf %10, %50 : vector<2x256xf32>
    %52 = arith.addf %47, %51 : vector<2x256xf32>
    %c8 = arith.constant 8 : index
    %53 = arith.index_cast %13 : i32 to index
    %54 = memref.load %arg2[%c8, %53] : memref<9x32xf32, #tpu.memory_space<smem>>
    %55 = vector.broadcast %54 : f32 to vector<2x256xf32>
    %56 = arith.mulf %11, %55 : vector<2x256xf32>
    %57 = arith.addf %52, %56 : vector<2x256xf32>
    %58 = arith.index_cast %13 : i32 to index
    %59 = memref.load %arg3[%58] : memref<32xf32, #tpu.memory_space<smem>>
    %60 = vector.broadcast %59 : f32 to vector<2x256xf32>
    %61 = arith.addf %57, %60 : vector<2x256xf32>
    %cst = arith.constant 0.000000e+00 : f32
    %62 = vector.broadcast %cst : f32 to vector<2x256xf32>
    %63 = arith.maximumf %61, %62 : vector<2x256xf32>
    %64 = arith.truncf %63 : vector<2x256xf32> to vector<2x256xbf16>
    %c0_14 = arith.constant 0 : index
    %c0_15 = arith.constant 0 : index
    %65 = vector.load %arg9[%c0_14, %c0_15] : memref<2x128xf32, #tpu.memory_space<vmem>>, vector<2x128xf32>
    %c0_16 = arith.constant 0 : index
    %c0_17 = arith.constant 0 : index
    %c0_18 = arith.constant 0 : index
    %66 = vector.load %arg4[%c0_16, %c0_17, %c0_18] : memref<16x256x128xbf16, #tpu.memory_space<vmem>>, vector<1x256x128xbf16>
    %67 = vector.shape_cast %66 : vector<1x256x128xbf16> to vector<256x128xbf16>
    %cst_19 = arith.constant dense<0.000000e+00> : vector<2x128xf32>
    %68 = tpu.matmul %64, %67, %cst_19 {dimension_numbers = #tpu.dot_dimension_numbers<[1], [0], [0], [1], [0, 0, 1, 1], [], []>} : vector<2x256xbf16>, vector<256x128xbf16>, vector<2x128xf32> -> vector<2x128xf32>
    %69 = arith.addf %65, %68 : vector<2x128xf32>
    %c0_20 = arith.constant 0 : index
    %c0_21 = arith.constant 0 : index
    %70 = vector.load %arg9[%c0_20, %c0_21] : memref<2x128xf32, #tpu.memory_space<vmem>>, vector<2x128xf32>
    tpu.vector_store %arg9[%c0_20, %c0_21], %69 {strides = array<i32>} : memref<2x128xf32, #tpu.memory_space<vmem>>, vector<2x128xf32>,
    %c16_i32_22 = arith.constant 16 : i32
    %71 = arith.muli %arg0, %c16_i32_22 : i32
    %c1_i32 = arith.constant 1 : i32
    %72 = arith.addi %71, %c1_i32 : i32
    %c0_23 = arith.constant 0 : index
    %73 = arith.index_cast %72 : i32 to index
    %74 = memref.load %arg2[%c0_23, %73] : memref<9x32xf32, #tpu.memory_space<smem>>
    %75 = vector.broadcast %74 : f32 to vector<2x256xf32>
    %76 = arith.mulf %3, %75 : vector<2x256xf32>
    %c1_24 = arith.constant 1 : index
    %77 = arith.index_cast %72 : i32 to index
    %78 = memref.load %arg2[%c1_24, %77] : memref<9x32xf32, #tpu.memory_space<smem>>
    %79 = vector.broadcast %78 : f32 to vector<2x256xf32>
    %80 = arith.mulf %4, %79 : vector<2x256xf32>
    %81 = arith.addf %76, %80 : vector<2x256xf32>
    %c2_25 = arith.constant 2 : index
    %82 = arith.index_cast %72 : i32 to index
    %83 = memref.load %arg2[%c2_25, %82] : memref<9x32xf32, #tpu.memory_space<smem>>
    %84 = vector.broadcast %83 : f32 to vector<2x256xf32>
    %85 = arith.mulf %5, %84 : vector<2x256xf32>
    %86 = arith.addf %81, %85 : vector<2x256xf32>
    %c3_26 = arith.constant 3 : index
    %87 = arith.index_cast %72 : i32 to index
    %88 = memref.load %arg2[%c3_26, %87] : memref<9x32xf32, #tpu.memory_space<smem>>
    %89 = vector.broadcast %88 : f32 to vector<2x256xf32>
    %90 = arith.mulf %6, %89 : vector<2x256xf32>
    %91 = arith.addf %86, %90 : vector<2x256xf32>
    %c4_27 = arith.constant 4 : index
    %92 = arith.index_cast %72 : i32 to index
    %93 = memref.load %arg2[%c4_27, %92] : memref<9x32xf32, #tpu.memory_space<smem>>
    %94 = vector.broadcast %93 : f32 to vector<2x256xf32>
    %95 = arith.mulf %7, %94 : vector<2x256xf32>
    %96 = arith.addf %91, %95 : vector<2x256xf32>
    %c5_28 = arith.constant 5 : index
    %97 = arith.index_cast %72 : i32 to index
    %98 = memref.load %arg2[%c5_28, %97] : memref<9x32xf32, #tpu.memory_space<smem>>
    %99 = vector.broadcast %98 : f32 to vector<2x256xf32>
    %100 = arith.mulf %8, %99 : vector<2x256xf32>
    %101 = arith.addf %96, %100 : vector<2x256xf32>
    %c6_29 = arith.constant 6 : index
    %102 = arith.index_cast %72 : i32 to index
    %103 = memref.load %arg2[%c6_29, %102] : memref<9x32xf32, #tpu.memory_space<smem>>
    %104 = vector.broadcast %103 : f32 to vector<2x256xf32>
    %105 = arith.mulf %9, %104 : vector<2x256xf32>
    %106 = arith.addf %101, %105 : vector<2x256xf32>
    %c7_30 = arith.constant 7 : index
    %107 = arith.index_cast %72 : i32 to index
    %108 = memref.load %arg2[%c7_30, %107] : memref<9x32xf32, #tpu.memory_space<smem>>
    %109 = vector.broadcast %108 : f32 to vector<2x256xf32>
    %110 = arith.mulf %10, %109 : vector<2x256xf32>
    %111 = arith.addf %106, %110 : vector<2x256xf32>
    %c8_31 = arith.constant 8 : index
    %112 = arith.index_cast %72 : i32 to index
    %113 = memref.load %arg2[%c8_31, %112] : memref<9x32xf32, #tpu.memory_space<smem>>
    %114 = vector.broadcast %113 : f32 to vector<2x256xf32>
    %115 = arith.mulf %11, %114 : vector<2x256xf32>
    %116 = arith.addf %111, %115 : vector<2x256xf32>
    %117 = arith.index_cast %72 : i32 to index
    %118 = memref.load %arg3[%117] : memref<32xf32, #tpu.memory_space<smem>>
    %119 = vector.broadcast %118 : f32 to vector<2x256xf32>
    %120 = arith.addf %116, %119 : vector<2x256xf32>
    %cst_32 = arith.constant 0.000000e+00 : f32
    %121 = vector.broadcast %cst_32 : f32 to vector<2x256xf32>
    %122 = arith.maximumf %120, %121 : vector<2x256xf32>
    %123 = arith.truncf %122 : vector<2x256xf32> to vector<2x256xbf16>
    %c0_33 = arith.constant 0 : index
    %c0_34 = arith.constant 0 : index
    %124 = vector.load %arg9[%c0_33, %c0_34] : memref<2x128xf32, #tpu.memory_space<vmem>>, vector<2x128xf32>
    %c1_35 = arith.constant 1 : index
    %c0_36 = arith.constant 0 : index
    %c0_37 = arith.constant 0 : index
    %125 = vector.load %arg4[%c1_35, %c0_36, %c0_37] : memref<16x256x128xbf16, #tpu.memory_space<vmem>>, vector<1x256x128xbf16>
    %126 = vector.shape_cast %125 : vector<1x256x128xbf16> to vector<256x128xbf16>
    %cst_38 = arith.constant dense<0.000000e+00> : vector<2x128xf32>
    %127 = tpu.matmul %123, %126, %cst_38 {dimension_numbers = #tpu.dot_dimension_numbers<[1], [0], [0], [1], [0, 0, 1, 1], [], []>} : vector<2x256xbf16>, vector<256x128xbf16>, vector<2x128xf32> -> vector<2x128xf32>
    %128 = arith.addf %124, %127 : vector<2x128xf32>
    %c0_39 = arith.constant 0 : index
    %c0_40 = arith.constant 0 : index
    %129 = vector.load %arg9[%c0_39, %c0_40] : memref<2x128xf32, #tpu.memory_space<vmem>>, vector<2x128xf32>
    tpu.vector_store %arg9[%c0_39, %c0_40], %128 {strides = array<i32>} : memref<2x128xf32, #tpu.memory_space<vmem>>, vector<2x128xf32>,
    %c16_i32_41 = arith.constant 16 : i32
    %130 = arith.muli %arg0, %c16_i32_41 : i32
    %c2_i32 = arith.constant 2 : i32
    %131 = arith.addi %130, %c2_i32 : i32
    %c0_42 = arith.constant 0 : index
    %132 = arith.index_cast %131 : i32 to index
    %133 = memref.load %arg2[%c0_42, %132] : memref<9x32xf32, #tpu.memory_space<smem>>
    %134 = vector.broadcast %133 : f32 to vector<2x256xf32>
    %135 = arith.mulf %3, %134 : vector<2x256xf32>
    %c1_43 = arith.constant 1 : index
    %136 = arith.index_cast %131 : i32 to index
    %137 = memref.load %arg2[%c1_43, %136] : memref<9x32xf32, #tpu.memory_space<smem>>
    %138 = vector.broadcast %137 : f32 to vector<2x256xf32>
    %139 = arith.mulf %4, %138 : vector<2x256xf32>
    %140 = arith.addf %135, %139 : vector<2x256xf32>
    %c2_44 = arith.constant 2 : index
    %141 = arith.index_cast %131 : i32 to index
    %142 = memref.load %arg2[%c2_44, %141] : memref<9x32xf32, #tpu.memory_space<smem>>
    %143 = vector.broadcast %142 : f32 to vector<2x256xf32>
    %144 = arith.mulf %5, %143 : vector<2x256xf32>
    %145 = arith.addf %140, %144 : vector<2x256xf32>
    %c3_45 = arith.constant 3 : index
    %146 = arith.index_cast %131 : i32 to index
    %147 = memref.load %arg2[%c3_45, %146] : memref<9x32xf32, #tpu.memory_space<smem>>
    %148 = vector.broadcast %147 : f32 to vector<2x256xf32>
    %149 = arith.mulf %6, %148 : vector<2x256xf32>
    %150 = arith.addf %145, %149 : vector<2x256xf32>
    %c4_46 = arith.constant 4 : index
    %151 = arith.index_cast %131 : i32 to index
    %152 = memref.load %arg2[%c4_46, %151] : memref<9x32xf32, #tpu.memory_space<smem>>
    %153 = vector.broadcast %152 : f32 to vector<2x256xf32>
    %154 = arith.mulf %7, %153 : vector<2x256xf32>
    %155 = arith.addf %150, %154 : vector<2x256xf32>
    %c5_47 = arith.constant 5 : index
    %156 = arith.index_cast %131 : i32 to index
    %157 = memref.load %arg2[%c5_47, %156] : memref<9x32xf32, #tpu.memory_space<smem>>
    %158 = vector.broadcast %157 : f32 to vector<2x256xf32>
    %159 = arith.mulf %8, %158 : vector<2x256xf32>
    %160 = arith.addf %155, %159 : vector<2x256xf32>
    %c6_48 = arith.constant 6 : index
    %161 = arith.index_cast %131 : i32 to index
    %162 = memref.load %arg2[%c6_48, %161] : memref<9x32xf32, #tpu.memory_space<smem>>
    %163 = vector.broadcast %162 : f32 to vector<2x256xf32>
    %164 = arith.mulf %9, %163 : vector<2x256xf32>
    %165 = arith.addf %160, %164 : vector<2x256xf32>
    %c7_49 = arith.constant 7 : index
    %166 = arith.index_cast %131 : i32 to index
    %167 = memref.load %arg2[%c7_49, %166] : memref<9x32xf32, #tpu.memory_space<smem>>
    %168 = vector.broadcast %167 : f32 to vector<2x256xf32>
    %169 = arith.mulf %10, %168 : vector<2x256xf32>
    %170 = arith.addf %165, %169 : vector<2x256xf32>
    %c8_50 = arith.constant 8 : index
    %171 = arith.index_cast %131 : i32 to index
    %172 = memref.load %arg2[%c8_50, %171] : memref<9x32xf32, #tpu.memory_space<smem>>
    %173 = vector.broadcast %172 : f32 to vector<2x256xf32>
    %174 = arith.mulf %11, %173 : vector<2x256xf32>
    %175 = arith.addf %170, %174 : vector<2x256xf32>
    %176 = arith.index_cast %131 : i32 to index
    %177 = memref.load %arg3[%176] : memref<32xf32, #tpu.memory_space<smem>>
    %178 = vector.broadcast %177 : f32 to vector<2x256xf32>
    %179 = arith.addf %175, %178 : vector<2x256xf32>
    %cst_51 = arith.constant 0.000000e+00 : f32
    %180 = vector.broadcast %cst_51 : f32 to vector<2x256xf32>
    %181 = arith.maximumf %179, %180 : vector<2x256xf32>
    %182 = arith.truncf %181 : vector<2x256xf32> to vector<2x256xbf16>
    %c0_52 = arith.constant 0 : index
    %c0_53 = arith.constant 0 : index
    %183 = vector.load %arg9[%c0_52, %c0_53] : memref<2x128xf32, #tpu.memory_space<vmem>>, vector<2x128xf32>
    %c2_54 = arith.constant 2 : index
    %c0_55 = arith.constant 0 : index
    %c0_56 = arith.constant 0 : index
    %184 = vector.load %arg4[%c2_54, %c0_55, %c0_56] : memref<16x256x128xbf16, #tpu.memory_space<vmem>>, vector<1x256x128xbf16>
    %185 = vector.shape_cast %184 : vector<1x256x128xbf16> to vector<256x128xbf16>
    %cst_57 = arith.constant dense<0.000000e+00> : vector<2x128xf32>
    %186 = tpu.matmul %182, %185, %cst_57 {dimension_numbers = #tpu.dot_dimension_numbers<[1], [0], [0], [1], [0, 0, 1, 1], [], []>} : vector<2x256xbf16>, vector<256x128xbf16>, vector<2x128xf32> -> vector<2x128xf32>
    %187 = arith.addf %183, %186 : vector<2x128xf32>
    %c0_58 = arith.constant 0 : index
    %c0_59 = arith.constant 0 : index
    %188 = vector.load %arg9[%c0_58, %c0_59] : memref<2x128xf32, #tpu.memory_space<vmem>>, vector<2x128xf32>
    tpu.vector_store %arg9[%c0_58, %c0_59], %187 {strides = array<i32>} : memref<2x128xf32, #tpu.memory_space<vmem>>, vector<2x128xf32>,
    %c16_i32_60 = arith.constant 16 : i32
    %189 = arith.muli %arg0, %c16_i32_60 : i32
    %c3_i32 = arith.constant 3 : i32
    %190 = arith.addi %189, %c3_i32 : i32
    %c0_61 = arith.constant 0 : index
    %191 = arith.index_cast %190 : i32 to index
    %192 = memref.load %arg2[%c0_61, %191] : memref<9x32xf32, #tpu.memory_space<smem>>
    %193 = vector.broadcast %192 : f32 to vector<2x256xf32>
    %194 = arith.mulf %3, %193 : vector<2x256xf32>
    %c1_62 = arith.constant 1 : index
    %195 = arith.index_cast %190 : i32 to index
    %196 = memref.load %arg2[%c1_62, %195] : memref<9x32xf32, #tpu.memory_space<smem>>
    %197 = vector.broadcast %196 : f32 to vector<2x256xf32>
    %198 = arith.mulf %4, %197 : vector<2x256xf32>
    %199 = arith.addf %194, %198 : vector<2x256xf32>
    %c2_63 = arith.constant 2 : index
    %200 = arith.index_cast %190 : i32 to index
    %201 = memref.load %arg2[%c2_63, %200] : memref<9x32xf32, #tpu.memory_space<smem>>
    %202 = vector.broadcast %201 : f32 to vector<2x256xf32>
    %203 = arith.mulf %5, %202 : vector<2x256xf32>
    %204 = arith.addf %199, %203 : vector<2x256xf32>
    %c3_64 = arith.constant 3 : index
    %205 = arith.index_cast %190 : i32 to index
    %206 = memref.load %arg2[%c3_64, %205] : memref<9x32xf32, #tpu.memory_space<smem>>
    %207 = vector.broadcast %206 : f32 to vector<2x256xf32>
    %208 = arith.mulf %6, %207 : vector<2x256xf32>
    %209 = arith.addf %204, %208 : vector<2x256xf32>
    %c4_65 = arith.constant 4 : index
    %210 = arith.index_cast %190 : i32 to index
    %211 = memref.load %arg2[%c4_65, %210] : memref<9x32xf32, #tpu.memory_space<smem>>
    %212 = vector.broadcast %211 : f32 to vector<2x256xf32>
    %213 = arith.mulf %7, %212 : vector<2x256xf32>
    %214 = arith.addf %209, %213 : vector<2x256xf32>
    %c5_66 = arith.constant 5 : index
    %215 = arith.index_cast %190 : i32 to index
    %216 = memref.load %arg2[%c5_66, %215] : memref<9x32xf32, #tpu.memory_space<smem>>
    %217 = vector.broadcast %216 : f32 to vector<2x256xf32>
    %218 = arith.mulf %8, %217 : vector<2x256xf32>
    %219 = arith.addf %214, %218 : vector<2x256xf32>
    %c6_67 = arith.constant 6 : index
    %220 = arith.index_cast %190 : i32 to index
    %221 = memref.load %arg2[%c6_67, %220] : memref<9x32xf32, #tpu.memory_space<smem>>
    %222 = vector.broadcast %221 : f32 to vector<2x256xf32>
    %223 = arith.mulf %9, %222 : vector<2x256xf32>
    %224 = arith.addf %219, %223 : vector<2x256xf32>
    %c7_68 = arith.constant 7 : index
    %225 = arith.index_cast %190 : i32 to index
    %226 = memref.load %arg2[%c7_68, %225] : memref<9x32xf32, #tpu.memory_space<smem>>
    %227 = vector.broadcast %226 : f32 to vector<2x256xf32>
    %228 = arith.mulf %10, %227 : vector<2x256xf32>
    %229 = arith.addf %224, %228 : vector<2x256xf32>
    %c8_69 = arith.constant 8 : index
    %230 = arith.index_cast %190 : i32 to index
    %231 = memref.load %arg2[%c8_69, %230] : memref<9x32xf32, #tpu.memory_space<smem>>
    %232 = vector.broadcast %231 : f32 to vector<2x256xf32>
    %233 = arith.mulf %11, %232 : vector<2x256xf32>
    %234 = arith.addf %229, %233 : vector<2x256xf32>
    %235 = arith.index_cast %190 : i32 to index
    %236 = memref.load %arg3[%235] : memref<32xf32, #tpu.memory_space<smem>>
    %237 = vector.broadcast %236 : f32 to vector<2x256xf32>
    %238 = arith.addf %234, %237 : vector<2x256xf32>
    %cst_70 = arith.constant 0.000000e+00 : f32
    %239 = vector.broadcast %cst_70 : f32 to vector<2x256xf32>
    %240 = arith.maximumf %238, %239 : vector<2x256xf32>
    %241 = arith.truncf %240 : vector<2x256xf32> to vector<2x256xbf16>
    %c0_71 = arith.constant 0 : index
    %c0_72 = arith.constant 0 : index
    %242 = vector.load %arg9[%c0_71, %c0_72] : memref<2x128xf32, #tpu.memory_space<vmem>>, vector<2x128xf32>
    %c3_73 = arith.constant 3 : index
    %c0_74 = arith.constant 0 : index
    %c0_75 = arith.constant 0 : index
    %243 = vector.load %arg4[%c3_73, %c0_74, %c0_75] : memref<16x256x128xbf16, #tpu.memory_space<vmem>>, vector<1x256x128xbf16>
    %244 = vector.shape_cast %243 : vector<1x256x128xbf16> to vector<256x128xbf16>
    %cst_76 = arith.constant dense<0.000000e+00> : vector<2x128xf32>
    %245 = tpu.matmul %241, %244, %cst_76 {dimension_numbers = #tpu.dot_dimension_numbers<[1], [0], [0], [1], [0, 0, 1, 1], [], []>} : vector<2x256xbf16>, vector<256x128xbf16>, vector<2x128xf32> -> vector<2x128xf32>
    %246 = arith.addf %242, %245 : vector<2x128xf32>
    %c0_77 = arith.constant 0 : index
    %c0_78 = arith.constant 0 : index
    %247 = vector.load %arg9[%c0_77, %c0_78] : memref<2x128xf32, #tpu.memory_space<vmem>>, vector<2x128xf32>
    tpu.vector_store %arg9[%c0_77, %c0_78], %246 {strides = array<i32>} : memref<2x128xf32, #tpu.memory_space<vmem>>, vector<2x128xf32>,
    %c16_i32_79 = arith.constant 16 : i32
    %248 = arith.muli %arg0, %c16_i32_79 : i32
    %c4_i32 = arith.constant 4 : i32
    %249 = arith.addi %248, %c4_i32 : i32
    %c0_80 = arith.constant 0 : index
    %250 = arith.index_cast %249 : i32 to index
    %251 = memref.load %arg2[%c0_80, %250] : memref<9x32xf32, #tpu.memory_space<smem>>
    %252 = vector.broadcast %251 : f32 to vector<2x256xf32>
    %253 = arith.mulf %3, %252 : vector<2x256xf32>
    %c1_81 = arith.constant 1 : index
    %254 = arith.index_cast %249 : i32 to index
    %255 = memref.load %arg2[%c1_81, %254] : memref<9x32xf32, #tpu.memory_space<smem>>
    %256 = vector.broadcast %255 : f32 to vector<2x256xf32>
    %257 = arith.mulf %4, %256 : vector<2x256xf32>
    %258 = arith.addf %253, %257 : vector<2x256xf32>
    %c2_82 = arith.constant 2 : index
    %259 = arith.index_cast %249 : i32 to index
    %260 = memref.load %arg2[%c2_82, %259] : memref<9x32xf32, #tpu.memory_space<smem>>
    %261 = vector.broadcast %260 : f32 to vector<2x256xf32>
    %262 = arith.mulf %5, %261 : vector<2x256xf32>
    %263 = arith.addf %258, %262 : vector<2x256xf32>
    %c3_83 = arith.constant 3 : index
    %264 = arith.index_cast %249 : i32 to index
    %265 = memref.load %arg2[%c3_83, %264] : memref<9x32xf32, #tpu.memory_space<smem>>
    %266 = vector.broadcast %265 : f32 to vector<2x256xf32>
    %267 = arith.mulf %6, %266 : vector<2x256xf32>
    %268 = arith.addf %263, %267 : vector<2x256xf32>
    %c4_84 = arith.constant 4 : index
    %269 = arith.index_cast %249 : i32 to index
    %270 = memref.load %arg2[%c4_84, %269] : memref<9x32xf32, #tpu.memory_space<smem>>
    %271 = vector.broadcast %270 : f32 to vector<2x256xf32>
    %272 = arith.mulf %7, %271 : vector<2x256xf32>
    %273 = arith.addf %268, %272 : vector<2x256xf32>
    %c5_85 = arith.constant 5 : index
    %274 = arith.index_cast %249 : i32 to index
    %275 = memref.load %arg2[%c5_85, %274] : memref<9x32xf32, #tpu.memory_space<smem>>
    %276 = vector.broadcast %275 : f32 to vector<2x256xf32>
    %277 = arith.mulf %8, %276 : vector<2x256xf32>
    %278 = arith.addf %273, %277 : vector<2x256xf32>
    %c6_86 = arith.constant 6 : index
    %279 = arith.index_cast %249 : i32 to index
    %280 = memref.load %arg2[%c6_86, %279] : memref<9x32xf32, #tpu.memory_space<smem>>
    %281 = vector.broadcast %280 : f32 to vector<2x256xf32>
    %282 = arith.mulf %9, %281 : vector<2x256xf32>
    %283 = arith.addf %278, %282 : vector<2x256xf32>
    %c7_87 = arith.constant 7 : index
    %284 = arith.index_cast %249 : i32 to index
    %285 = memref.load %arg2[%c7_87, %284] : memref<9x32xf32, #tpu.memory_space<smem>>
    %286 = vector.broadcast %285 : f32 to vector<2x256xf32>
    %287 = arith.mulf %10, %286 : vector<2x256xf32>
    %288 = arith.addf %283, %287 : vector<2x256xf32>
    %c8_88 = arith.constant 8 : index
    %289 = arith.index_cast %249 : i32 to index
    %290 = memref.load %arg2[%c8_88, %289] : memref<9x32xf32, #tpu.memory_space<smem>>
    %291 = vector.broadcast %290 : f32 to vector<2x256xf32>
    %292 = arith.mulf %11, %291 : vector<2x256xf32>
    %293 = arith.addf %288, %292 : vector<2x256xf32>
    %294 = arith.index_cast %249 : i32 to index
    %295 = memref.load %arg3[%294] : memref<32xf32, #tpu.memory_space<smem>>
    %296 = vector.broadcast %295 : f32 to vector<2x256xf32>
    %297 = arith.addf %293, %296 : vector<2x256xf32>
    %cst_89 = arith.constant 0.000000e+00 : f32
    %298 = vector.broadcast %cst_89 : f32 to vector<2x256xf32>
    %299 = arith.maximumf %297, %298 : vector<2x256xf32>
    %300 = arith.truncf %299 : vector<2x256xf32> to vector<2x256xbf16>
    %c0_90 = arith.constant 0 : index
    %c0_91 = arith.constant 0 : index
    %301 = vector.load %arg9[%c0_90, %c0_91] : memref<2x128xf32, #tpu.memory_space<vmem>>, vector<2x128xf32>
    %c4_92 = arith.constant 4 : index
    %c0_93 = arith.constant 0 : index
    %c0_94 = arith.constant 0 : index
    %302 = vector.load %arg4[%c4_92, %c0_93, %c0_94] : memref<16x256x128xbf16, #tpu.memory_space<vmem>>, vector<1x256x128xbf16>
    %303 = vector.shape_cast %302 : vector<1x256x128xbf16> to vector<256x128xbf16>
    %cst_95 = arith.constant dense<0.000000e+00> : vector<2x128xf32>
    %304 = tpu.matmul %300, %303, %cst_95 {dimension_numbers = #tpu.dot_dimension_numbers<[1], [0], [0], [1], [0, 0, 1, 1], [], []>} : vector<2x256xbf16>, vector<256x128xbf16>, vector<2x128xf32> -> vector<2x128xf32>
    %305 = arith.addf %301, %304 : vector<2x128xf32>
    %c0_96 = arith.constant 0 : index
    %c0_97 = arith.constant 0 : index
    %306 = vector.load %arg9[%c0_96, %c0_97] : memref<2x128xf32, #tpu.memory_space<vmem>>, vector<2x128xf32>
    tpu.vector_store %arg9[%c0_96, %c0_97], %305 {strides = array<i32>} : memref<2x128xf32, #tpu.memory_space<vmem>>, vector<2x128xf32>,
    %c16_i32_98 = arith.constant 16 : i32
    %307 = arith.muli %arg0, %c16_i32_98 : i32
    %c5_i32 = arith.constant 5 : i32
    %308 = arith.addi %307, %c5_i32 : i32
    %c0_99 = arith.constant 0 : index
    %309 = arith.index_cast %308 : i32 to index
    %310 = memref.load %arg2[%c0_99, %309] : memref<9x32xf32, #tpu.memory_space<smem>>
    %311 = vector.broadcast %310 : f32 to vector<2x256xf32>
    %312 = arith.mulf %3, %311 : vector<2x256xf32>
    %c1_100 = arith.constant 1 : index
    %313 = arith.index_cast %308 : i32 to index
    %314 = memref.load %arg2[%c1_100, %313] : memref<9x32xf32, #tpu.memory_space<smem>>
    %315 = vector.broadcast %314 : f32 to vector<2x256xf32>
    %316 = arith.mulf %4, %315 : vector<2x256xf32>
    %317 = arith.addf %312, %316 : vector<2x256xf32>
    %c2_101 = arith.constant 2 : index
    %318 = arith.index_cast %308 : i32 to index
    %319 = memref.load %arg2[%c2_101, %318] : memref<9x32xf32, #tpu.memory_space<smem>>
    %320 = vector.broadcast %319 : f32 to vector<2x256xf32>
    %321 = arith.mulf %5, %320 : vector<2x256xf32>
    %322 = arith.addf %317, %321 : vector<2x256xf32>
    %c3_102 = arith.constant 3 : index
    %323 = arith.index_cast %308 : i32 to index
    %324 = memref.load %arg2[%c3_102, %323] : memref<9x32xf32, #tpu.memory_space<smem>>
    %325 = vector.broadcast %324 : f32 to vector<2x256xf32>
    %326 = arith.mulf %6, %325 : vector<2x256xf32>
    %327 = arith.addf %322, %326 : vector<2x256xf32>
    %c4_103 = arith.constant 4 : index
    %328 = arith.index_cast %308 : i32 to index
    %329 = memref.load %arg2[%c4_103, %328] : memref<9x32xf32, #tpu.memory_space<smem>>
    %330 = vector.broadcast %329 : f32 to vector<2x256xf32>
    %331 = arith.mulf %7, %330 : vector<2x256xf32>
    %332 = arith.addf %327, %331 : vector<2x256xf32>
    %c5_104 = arith.constant 5 : index
    %333 = arith.index_cast %308 : i32 to index
    %334 = memref.load %arg2[%c5_104, %333] : memref<9x32xf32, #tpu.memory_space<smem>>
    %335 = vector.broadcast %334 : f32 to vector<2x256xf32>
    %336 = arith.mulf %8, %335 : vector<2x256xf32>
    %337 = arith.addf %332, %336 : vector<2x256xf32>
    %c6_105 = arith.constant 6 : index
    %338 = arith.index_cast %308 : i32 to index
    %339 = memref.load %arg2[%c6_105, %338] : memref<9x32xf32, #tpu.memory_space<smem>>
    %340 = vector.broadcast %339 : f32 to vector<2x256xf32>
    %341 = arith.mulf %9, %340 : vector<2x256xf32>
    %342 = arith.addf %337, %341 : vector<2x256xf32>
    %c7_106 = arith.constant 7 : index
    %343 = arith.index_cast %308 : i32 to index
    %344 = memref.load %arg2[%c7_106, %343] : memref<9x32xf32, #tpu.memory_space<smem>>
    %345 = vector.broadcast %344 : f32 to vector<2x256xf32>
    %346 = arith.mulf %10, %345 : vector<2x256xf32>
    %347 = arith.addf %342, %346 : vector<2x256xf32>
    %c8_107 = arith.constant 8 : index
    %348 = arith.index_cast %308 : i32 to index
    %349 = memref.load %arg2[%c8_107, %348] : memref<9x32xf32, #tpu.memory_space<smem>>
    %350 = vector.broadcast %349 : f32 to vector<2x256xf32>
    %351 = arith.mulf %11, %350 : vector<2x256xf32>
    %352 = arith.addf %347, %351 : vector<2x256xf32>
    %353 = arith.index_cast %308 : i32 to index
    %354 = memref.load %arg3[%353] : memref<32xf32, #tpu.memory_space<smem>>
    %355 = vector.broadcast %354 : f32 to vector<2x256xf32>
    %356 = arith.addf %352, %355 : vector<2x256xf32>
    %cst_108 = arith.constant 0.000000e+00 : f32
    %357 = vector.broadcast %cst_108 : f32 to vector<2x256xf32>
    %358 = arith.maximumf %356, %357 : vector<2x256xf32>
    %359 = arith.truncf %358 : vector<2x256xf32> to vector<2x256xbf16>
    %c0_109 = arith.constant 0 : index
    %c0_110 = arith.constant 0 : index
    %360 = vector.load %arg9[%c0_109, %c0_110] : memref<2x128xf32, #tpu.memory_space<vmem>>, vector<2x128xf32>
    %c5_111 = arith.constant 5 : index
    %c0_112 = arith.constant 0 : index
    %c0_113 = arith.constant 0 : index
    %361 = vector.load %arg4[%c5_111, %c0_112, %c0_113] : memref<16x256x128xbf16, #tpu.memory_space<vmem>>, vector<1x256x128xbf16>
    %362 = vector.shape_cast %361 : vector<1x256x128xbf16> to vector<256x128xbf16>
    %cst_114 = arith.constant dense<0.000000e+00> : vector<2x128xf32>
    %363 = tpu.matmul %359, %362, %cst_114 {dimension_numbers = #tpu.dot_dimension_numbers<[1], [0], [0], [1], [0, 0, 1, 1], [], []>} : vector<2x256xbf16>, vector<256x128xbf16>, vector<2x128xf32> -> vector<2x128xf32>
    %364 = arith.addf %360, %363 : vector<2x128xf32>
    %c0_115 = arith.constant 0 : index
    %c0_116 = arith.constant 0 : index
    %365 = vector.load %arg9[%c0_115, %c0_116] : memref<2x128xf32, #tpu.memory_space<vmem>>, vector<2x128xf32>
    tpu.vector_store %arg9[%c0_115, %c0_116], %364 {strides = array<i32>} : memref<2x128xf32, #tpu.memory_space<vmem>>, vector<2x128xf32>,
    %c16_i32_117 = arith.constant 16 : i32
    %366 = arith.muli %arg0, %c16_i32_117 : i32
    %c6_i32 = arith.constant 6 : i32
    %367 = arith.addi %366, %c6_i32 : i32
    %c0_118 = arith.constant 0 : index
    %368 = arith.index_cast %367 : i32 to index
    %369 = memref.load %arg2[%c0_118, %368] : memref<9x32xf32, #tpu.memory_space<smem>>
    %370 = vector.broadcast %369 : f32 to vector<2x256xf32>
    %371 = arith.mulf %3, %370 : vector<2x256xf32>
    %c1_119 = arith.constant 1 : index
    %372 = arith.index_cast %367 : i32 to index
    %373 = memref.load %arg2[%c1_119, %372] : memref<9x32xf32, #tpu.memory_space<smem>>
    %374 = vector.broadcast %373 : f32 to vector<2x256xf32>
    %375 = arith.mulf %4, %374 : vector<2x256xf32>
    %376 = arith.addf %371, %375 : vector<2x256xf32>
    %c2_120 = arith.constant 2 : index
    %377 = arith.index_cast %367 : i32 to index
    %378 = memref.load %arg2[%c2_120, %377] : memref<9x32xf32, #tpu.memory_space<smem>>
    %379 = vector.broadcast %378 : f32 to vector<2x256xf32>
    %380 = arith.mulf %5, %379 : vector<2x256xf32>
    %381 = arith.addf %376, %380 : vector<2x256xf32>
    %c3_121 = arith.constant 3 : index
    %382 = arith.index_cast %367 : i32 to index
    %383 = memref.load %arg2[%c3_121, %382] : memref<9x32xf32, #tpu.memory_space<smem>>
    %384 = vector.broadcast %383 : f32 to vector<2x256xf32>
    %385 = arith.mulf %6, %384 : vector<2x256xf32>
    %386 = arith.addf %381, %385 : vector<2x256xf32>
    %c4_122 = arith.constant 4 : index
    %387 = arith.index_cast %367 : i32 to index
    %388 = memref.load %arg2[%c4_122, %387] : memref<9x32xf32, #tpu.memory_space<smem>>
    %389 = vector.broadcast %388 : f32 to vector<2x256xf32>
    %390 = arith.mulf %7, %389 : vector<2x256xf32>
    %391 = arith.addf %386, %390 : vector<2x256xf32>
    %c5_123 = arith.constant 5 : index
    %392 = arith.index_cast %367 : i32 to index
    %393 = memref.load %arg2[%c5_123, %392] : memref<9x32xf32, #tpu.memory_space<smem>>
    %394 = vector.broadcast %393 : f32 to vector<2x256xf32>
    %395 = arith.mulf %8, %394 : vector<2x256xf32>
    %396 = arith.addf %391, %395 : vector<2x256xf32>
    %c6_124 = arith.constant 6 : index
    %397 = arith.index_cast %367 : i32 to index
    %398 = memref.load %arg2[%c6_124, %397] : memref<9x32xf32, #tpu.memory_space<smem>>
    %399 = vector.broadcast %398 : f32 to vector<2x256xf32>
    %400 = arith.mulf %9, %399 : vector<2x256xf32>
    %401 = arith.addf %396, %400 : vector<2x256xf32>
    %c7_125 = arith.constant 7 : index
    %402 = arith.index_cast %367 : i32 to index
    %403 = memref.load %arg2[%c7_125, %402] : memref<9x32xf32, #tpu.memory_space<smem>>
    %404 = vector.broadcast %403 : f32 to vector<2x256xf32>
    %405 = arith.mulf %10, %404 : vector<2x256xf32>
    %406 = arith.addf %401, %405 : vector<2x256xf32>
    %c8_126 = arith.constant 8 : index
    %407 = arith.index_cast %367 : i32 to index
    %408 = memref.load %arg2[%c8_126, %407] : memref<9x32xf32, #tpu.memory_space<smem>>
    %409 = vector.broadcast %408 : f32 to vector<2x256xf32>
    %410 = arith.mulf %11, %409 : vector<2x256xf32>
    %411 = arith.addf %406, %410 : vector<2x256xf32>
    %412 = arith.index_cast %367 : i32 to index
    %413 = memref.load %arg3[%412] : memref<32xf32, #tpu.memory_space<smem>>
    %414 = vector.broadcast %413 : f32 to vector<2x256xf32>
    %415 = arith.addf %411, %414 : vector<2x256xf32>
    %cst_127 = arith.constant 0.000000e+00 : f32
    %416 = vector.broadcast %cst_127 : f32 to vector<2x256xf32>
    %417 = arith.maximumf %415, %416 : vector<2x256xf32>
    %418 = arith.truncf %417 : vector<2x256xf32> to vector<2x256xbf16>
    %c0_128 = arith.constant 0 : index
    %c0_129 = arith.constant 0 : index
    %419 = vector.load %arg9[%c0_128, %c0_129] : memref<2x128xf32, #tpu.memory_space<vmem>>, vector<2x128xf32>
    %c6_130 = arith.constant 6 : index
    %c0_131 = arith.constant 0 : index
    %c0_132 = arith.constant 0 : index
    %420 = vector.load %arg4[%c6_130, %c0_131, %c0_132] : memref<16x256x128xbf16, #tpu.memory_space<vmem>>, vector<1x256x128xbf16>
    %421 = vector.shape_cast %420 : vector<1x256x128xbf16> to vector<256x128xbf16>
    %cst_133 = arith.constant dense<0.000000e+00> : vector<2x128xf32>
    %422 = tpu.matmul %418, %421, %cst_133 {dimension_numbers = #tpu.dot_dimension_numbers<[1], [0], [0], [1], [0, 0, 1, 1], [], []>} : vector<2x256xbf16>, vector<256x128xbf16>, vector<2x128xf32> -> vector<2x128xf32>
    %423 = arith.addf %419, %422 : vector<2x128xf32>
    %c0_134 = arith.constant 0 : index
    %c0_135 = arith.constant 0 : index
    %424 = vector.load %arg9[%c0_134, %c0_135] : memref<2x128xf32, #tpu.memory_space<vmem>>, vector<2x128xf32>
    tpu.vector_store %arg9[%c0_134, %c0_135], %423 {strides = array<i32>} : memref<2x128xf32, #tpu.memory_space<vmem>>, vector<2x128xf32>,
    %c16_i32_136 = arith.constant 16 : i32
    %425 = arith.muli %arg0, %c16_i32_136 : i32
    %c7_i32 = arith.constant 7 : i32
    %426 = arith.addi %425, %c7_i32 : i32
    %c0_137 = arith.constant 0 : index
    %427 = arith.index_cast %426 : i32 to index
    %428 = memref.load %arg2[%c0_137, %427] : memref<9x32xf32, #tpu.memory_space<smem>>
    %429 = vector.broadcast %428 : f32 to vector<2x256xf32>
    %430 = arith.mulf %3, %429 : vector<2x256xf32>
    %c1_138 = arith.constant 1 : index
    %431 = arith.index_cast %426 : i32 to index
    %432 = memref.load %arg2[%c1_138, %431] : memref<9x32xf32, #tpu.memory_space<smem>>
    %433 = vector.broadcast %432 : f32 to vector<2x256xf32>
    %434 = arith.mulf %4, %433 : vector<2x256xf32>
    %435 = arith.addf %430, %434 : vector<2x256xf32>
    %c2_139 = arith.constant 2 : index
    %436 = arith.index_cast %426 : i32 to index
    %437 = memref.load %arg2[%c2_139, %436] : memref<9x32xf32, #tpu.memory_space<smem>>
    %438 = vector.broadcast %437 : f32 to vector<2x256xf32>
    %439 = arith.mulf %5, %438 : vector<2x256xf32>
    %440 = arith.addf %435, %439 : vector<2x256xf32>
    %c3_140 = arith.constant 3 : index
    %441 = arith.index_cast %426 : i32 to index
    %442 = memref.load %arg2[%c3_140, %441] : memref<9x32xf32, #tpu.memory_space<smem>>
    %443 = vector.broadcast %442 : f32 to vector<2x256xf32>
    %444 = arith.mulf %6, %443 : vector<2x256xf32>
    %445 = arith.addf %440, %444 : vector<2x256xf32>
    %c4_141 = arith.constant 4 : index
    %446 = arith.index_cast %426 : i32 to index
    %447 = memref.load %arg2[%c4_141, %446] : memref<9x32xf32, #tpu.memory_space<smem>>
    %448 = vector.broadcast %447 : f32 to vector<2x256xf32>
    %449 = arith.mulf %7, %448 : vector<2x256xf32>
    %450 = arith.addf %445, %449 : vector<2x256xf32>
    %c5_142 = arith.constant 5 : index
    %451 = arith.index_cast %426 : i32 to index
    %452 = memref.load %arg2[%c5_142, %451] : memref<9x32xf32, #tpu.memory_space<smem>>
    %453 = vector.broadcast %452 : f32 to vector<2x256xf32>
    %454 = arith.mulf %8, %453 : vector<2x256xf32>
    %455 = arith.addf %450, %454 : vector<2x256xf32>
    %c6_143 = arith.constant 6 : index
    %456 = arith.index_cast %426 : i32 to index
    %457 = memref.load %arg2[%c6_143, %456] : memref<9x32xf32, #tpu.memory_space<smem>>
    %458 = vector.broadcast %457 : f32 to vector<2x256xf32>
    %459 = arith.mulf %9, %458 : vector<2x256xf32>
    %460 = arith.addf %455, %459 : vector<2x256xf32>
    %c7_144 = arith.constant 7 : index
    %461 = arith.index_cast %426 : i32 to index
    %462 = memref.load %arg2[%c7_144, %461] : memref<9x32xf32, #tpu.memory_space<smem>>
    %463 = vector.broadcast %462 : f32 to vector<2x256xf32>
    %464 = arith.mulf %10, %463 : vector<2x256xf32>
    %465 = arith.addf %460, %464 : vector<2x256xf32>
    %c8_145 = arith.constant 8 : index
    %466 = arith.index_cast %426 : i32 to index
    %467 = memref.load %arg2[%c8_145, %466] : memref<9x32xf32, #tpu.memory_space<smem>>
    %468 = vector.broadcast %467 : f32 to vector<2x256xf32>
    %469 = arith.mulf %11, %468 : vector<2x256xf32>
    %470 = arith.addf %465, %469 : vector<2x256xf32>
    %471 = arith.index_cast %426 : i32 to index
    %472 = memref.load %arg3[%471] : memref<32xf32, #tpu.memory_space<smem>>
    %473 = vector.broadcast %472 : f32 to vector<2x256xf32>
    %474 = arith.addf %470, %473 : vector<2x256xf32>
    %cst_146 = arith.constant 0.000000e+00 : f32
    %475 = vector.broadcast %cst_146 : f32 to vector<2x256xf32>
    %476 = arith.maximumf %474, %475 : vector<2x256xf32>
    %477 = arith.truncf %476 : vector<2x256xf32> to vector<2x256xbf16>
    %c0_147 = arith.constant 0 : index
    %c0_148 = arith.constant 0 : index
    %478 = vector.load %arg9[%c0_147, %c0_148] : memref<2x128xf32, #tpu.memory_space<vmem>>, vector<2x128xf32>
    %c7_149 = arith.constant 7 : index
    %c0_150 = arith.constant 0 : index
    %c0_151 = arith.constant 0 : index
    %479 = vector.load %arg4[%c7_149, %c0_150, %c0_151] : memref<16x256x128xbf16, #tpu.memory_space<vmem>>, vector<1x256x128xbf16>
    %480 = vector.shape_cast %479 : vector<1x256x128xbf16> to vector<256x128xbf16>
    %cst_152 = arith.constant dense<0.000000e+00> : vector<2x128xf32>
    %481 = tpu.matmul %477, %480, %cst_152 {dimension_numbers = #tpu.dot_dimension_numbers<[1], [0], [0], [1], [0, 0, 1, 1], [], []>} : vector<2x256xbf16>, vector<256x128xbf16>, vector<2x128xf32> -> vector<2x128xf32>
    %482 = arith.addf %478, %481 : vector<2x128xf32>
    %c0_153 = arith.constant 0 : index
    %c0_154 = arith.constant 0 : index
    %483 = vector.load %arg9[%c0_153, %c0_154] : memref<2x128xf32, #tpu.memory_space<vmem>>, vector<2x128xf32>
    tpu.vector_store %arg9[%c0_153, %c0_154], %482 {strides = array<i32>} : memref<2x128xf32, #tpu.memory_space<vmem>>, vector<2x128xf32>,
    %c16_i32_155 = arith.constant 16 : i32
    %484 = arith.muli %arg0, %c16_i32_155 : i32
    %c8_i32 = arith.constant 8 : i32
    %485 = arith.addi %484, %c8_i32 : i32
    %c0_156 = arith.constant 0 : index
    %486 = arith.index_cast %485 : i32 to index
    %487 = memref.load %arg2[%c0_156, %486] : memref<9x32xf32, #tpu.memory_space<smem>>
    %488 = vector.broadcast %487 : f32 to vector<2x256xf32>
    %489 = arith.mulf %3, %488 : vector<2x256xf32>
    %c1_157 = arith.constant 1 : index
    %490 = arith.index_cast %485 : i32 to index
    %491 = memref.load %arg2[%c1_157, %490] : memref<9x32xf32, #tpu.memory_space<smem>>
    %492 = vector.broadcast %491 : f32 to vector<2x256xf32>
    %493 = arith.mulf %4, %492 : vector<2x256xf32>
    %494 = arith.addf %489, %493 : vector<2x256xf32>
    %c2_158 = arith.constant 2 : index
    %495 = arith.index_cast %485 : i32 to index
    %496 = memref.load %arg2[%c2_158, %495] : memref<9x32xf32, #tpu.memory_space<smem>>
    %497 = vector.broadcast %496 : f32 to vector<2x256xf32>
    %498 = arith.mulf %5, %497 : vector<2x256xf32>
    %499 = arith.addf %494, %498 : vector<2x256xf32>
    %c3_159 = arith.constant 3 : index
    %500 = arith.index_cast %485 : i32 to index
    %501 = memref.load %arg2[%c3_159, %500] : memref<9x32xf32, #tpu.memory_space<smem>>
    %502 = vector.broadcast %501 : f32 to vector<2x256xf32>
    %503 = arith.mulf %6, %502 : vector<2x256xf32>
    %504 = arith.addf %499, %503 : vector<2x256xf32>
    %c4_160 = arith.constant 4 : index
    %505 = arith.index_cast %485 : i32 to index
    %506 = memref.load %arg2[%c4_160, %505] : memref<9x32xf32, #tpu.memory_space<smem>>
    %507 = vector.broadcast %506 : f32 to vector<2x256xf32>
    %508 = arith.mulf %7, %507 : vector<2x256xf32>
    %509 = arith.addf %504, %508 : vector<2x256xf32>
    %c5_161 = arith.constant 5 : index
    %510 = arith.index_cast %485 : i32 to index
    %511 = memref.load %arg2[%c5_161, %510] : memref<9x32xf32, #tpu.memory_space<smem>>
    %512 = vector.broadcast %511 : f32 to vector<2x256xf32>
    %513 = arith.mulf %8, %512 : vector<2x256xf32>
    %514 = arith.addf %509, %513 : vector<2x256xf32>
    %c6_162 = arith.constant 6 : index
    %515 = arith.index_cast %485 : i32 to index
    %516 = memref.load %arg2[%c6_162, %515] : memref<9x32xf32, #tpu.memory_space<smem>>
    %517 = vector.broadcast %516 : f32 to vector<2x256xf32>
    %518 = arith.mulf %9, %517 : vector<2x256xf32>
    %519 = arith.addf %514, %518 : vector<2x256xf32>
    %c7_163 = arith.constant 7 : index
    %520 = arith.index_cast %485 : i32 to index
    %521 = memref.load %arg2[%c7_163, %520] : memref<9x32xf32, #tpu.memory_space<smem>>
    %522 = vector.broadcast %521 : f32 to vector<2x256xf32>
    %523 = arith.mulf %10, %522 : vector<2x256xf32>
    %524 = arith.addf %519, %523 : vector<2x256xf32>
    %c8_164 = arith.constant 8 : index
    %525 = arith.index_cast %485 : i32 to index
    %526 = memref.load %arg2[%c8_164, %525] : memref<9x32xf32, #tpu.memory_space<smem>>
    %527 = vector.broadcast %526 : f32 to vector<2x256xf32>
    %528 = arith.mulf %11, %527 : vector<2x256xf32>
    %529 = arith.addf %524, %528 : vector<2x256xf32>
    %530 = arith.index_cast %485 : i32 to index
    %531 = memref.load %arg3[%530] : memref<32xf32, #tpu.memory_space<smem>>
    %532 = vector.broadcast %531 : f32 to vector<2x256xf32>
    %533 = arith.addf %529, %532 : vector<2x256xf32>
    %cst_165 = arith.constant 0.000000e+00 : f32
    %534 = vector.broadcast %cst_165 : f32 to vector<2x256xf32>
    %535 = arith.maximumf %533, %534 : vector<2x256xf32>
    %536 = arith.truncf %535 : vector<2x256xf32> to vector<2x256xbf16>
    %c0_166 = arith.constant 0 : index
    %c0_167 = arith.constant 0 : index
    %537 = vector.load %arg9[%c0_166, %c0_167] : memref<2x128xf32, #tpu.memory_space<vmem>>, vector<2x128xf32>
    %c8_168 = arith.constant 8 : index
    %c0_169 = arith.constant 0 : index
    %c0_170 = arith.constant 0 : index
    %538 = vector.load %arg4[%c8_168, %c0_169, %c0_170] : memref<16x256x128xbf16, #tpu.memory_space<vmem>>, vector<1x256x128xbf16>
    %539 = vector.shape_cast %538 : vector<1x256x128xbf16> to vector<256x128xbf16>
    %cst_171 = arith.constant dense<0.000000e+00> : vector<2x128xf32>
    %540 = tpu.matmul %536, %539, %cst_171 {dimension_numbers = #tpu.dot_dimension_numbers<[1], [0], [0], [1], [0, 0, 1, 1], [], []>} : vector<2x256xbf16>, vector<256x128xbf16>, vector<2x128xf32> -> vector<2x128xf32>
    %541 = arith.addf %537, %540 : vector<2x128xf32>
    %c0_172 = arith.constant 0 : index
    %c0_173 = arith.constant 0 : index
    %542 = vector.load %arg9[%c0_172, %c0_173] : memref<2x128xf32, #tpu.memory_space<vmem>>, vector<2x128xf32>
    tpu.vector_store %arg9[%c0_172, %c0_173], %541 {strides = array<i32>} : memref<2x128xf32, #tpu.memory_space<vmem>>, vector<2x128xf32>,
    %c16_i32_174 = arith.constant 16 : i32
    %543 = arith.muli %arg0, %c16_i32_174 : i32
    %c9_i32 = arith.constant 9 : i32
    %544 = arith.addi %543, %c9_i32 : i32
    %c0_175 = arith.constant 0 : index
    %545 = arith.index_cast %544 : i32 to index
    %546 = memref.load %arg2[%c0_175, %545] : memref<9x32xf32, #tpu.memory_space<smem>>
    %547 = vector.broadcast %546 : f32 to vector<2x256xf32>
    %548 = arith.mulf %3, %547 : vector<2x256xf32>
    %c1_176 = arith.constant 1 : index
    %549 = arith.index_cast %544 : i32 to index
    %550 = memref.load %arg2[%c1_176, %549] : memref<9x32xf32, #tpu.memory_space<smem>>
    %551 = vector.broadcast %550 : f32 to vector<2x256xf32>
    %552 = arith.mulf %4, %551 : vector<2x256xf32>
    %553 = arith.addf %548, %552 : vector<2x256xf32>
    %c2_177 = arith.constant 2 : index
    %554 = arith.index_cast %544 : i32 to index
    %555 = memref.load %arg2[%c2_177, %554] : memref<9x32xf32, #tpu.memory_space<smem>>
    %556 = vector.broadcast %555 : f32 to vector<2x256xf32>
    %557 = arith.mulf %5, %556 : vector<2x256xf32>
    %558 = arith.addf %553, %557 : vector<2x256xf32>
    %c3_178 = arith.constant 3 : index
    %559 = arith.index_cast %544 : i32 to index
    %560 = memref.load %arg2[%c3_178, %559] : memref<9x32xf32, #tpu.memory_space<smem>>
    %561 = vector.broadcast %560 : f32 to vector<2x256xf32>
    %562 = arith.mulf %6, %561 : vector<2x256xf32>
    %563 = arith.addf %558, %562 : vector<2x256xf32>
    %c4_179 = arith.constant 4 : index
    %564 = arith.index_cast %544 : i32 to index
    %565 = memref.load %arg2[%c4_179, %564] : memref<9x32xf32, #tpu.memory_space<smem>>
    %566 = vector.broadcast %565 : f32 to vector<2x256xf32>
    %567 = arith.mulf %7, %566 : vector<2x256xf32>
    %568 = arith.addf %563, %567 : vector<2x256xf32>
    %c5_180 = arith.constant 5 : index
    %569 = arith.index_cast %544 : i32 to index
    %570 = memref.load %arg2[%c5_180, %569] : memref<9x32xf32, #tpu.memory_space<smem>>
    %571 = vector.broadcast %570 : f32 to vector<2x256xf32>
    %572 = arith.mulf %8, %571 : vector<2x256xf32>
    %573 = arith.addf %568, %572 : vector<2x256xf32>
    %c6_181 = arith.constant 6 : index
    %574 = arith.index_cast %544 : i32 to index
    %575 = memref.load %arg2[%c6_181, %574] : memref<9x32xf32, #tpu.memory_space<smem>>
    %576 = vector.broadcast %575 : f32 to vector<2x256xf32>
    %577 = arith.mulf %9, %576 : vector<2x256xf32>
    %578 = arith.addf %573, %577 : vector<2x256xf32>
    %c7_182 = arith.constant 7 : index
    %579 = arith.index_cast %544 : i32 to index
    %580 = memref.load %arg2[%c7_182, %579] : memref<9x32xf32, #tpu.memory_space<smem>>
    %581 = vector.broadcast %580 : f32 to vector<2x256xf32>
    %582 = arith.mulf %10, %581 : vector<2x256xf32>
    %583 = arith.addf %578, %582 : vector<2x256xf32>
    %c8_183 = arith.constant 8 : index
    %584 = arith.index_cast %544 : i32 to index
    %585 = memref.load %arg2[%c8_183, %584] : memref<9x32xf32, #tpu.memory_space<smem>>
    %586 = vector.broadcast %585 : f32 to vector<2x256xf32>
    %587 = arith.mulf %11, %586 : vector<2x256xf32>
    %588 = arith.addf %583, %587 : vector<2x256xf32>
    %589 = arith.index_cast %544 : i32 to index
    %590 = memref.load %arg3[%589] : memref<32xf32, #tpu.memory_space<smem>>
    %591 = vector.broadcast %590 : f32 to vector<2x256xf32>
    %592 = arith.addf %588, %591 : vector<2x256xf32>
    %cst_184 = arith.constant 0.000000e+00 : f32
    %593 = vector.broadcast %cst_184 : f32 to vector<2x256xf32>
    %594 = arith.maximumf %592, %593 : vector<2x256xf32>
    %595 = arith.truncf %594 : vector<2x256xf32> to vector<2x256xbf16>
    %c0_185 = arith.constant 0 : index
    %c0_186 = arith.constant 0 : index
    %596 = vector.load %arg9[%c0_185, %c0_186] : memref<2x128xf32, #tpu.memory_space<vmem>>, vector<2x128xf32>
    %c9 = arith.constant 9 : index
    %c0_187 = arith.constant 0 : index
    %c0_188 = arith.constant 0 : index
    %597 = vector.load %arg4[%c9, %c0_187, %c0_188] : memref<16x256x128xbf16, #tpu.memory_space<vmem>>, vector<1x256x128xbf16>
    %598 = vector.shape_cast %597 : vector<1x256x128xbf16> to vector<256x128xbf16>
    %cst_189 = arith.constant dense<0.000000e+00> : vector<2x128xf32>
    %599 = tpu.matmul %595, %598, %cst_189 {dimension_numbers = #tpu.dot_dimension_numbers<[1], [0], [0], [1], [0, 0, 1, 1], [], []>} : vector<2x256xbf16>, vector<256x128xbf16>, vector<2x128xf32> -> vector<2x128xf32>
    %600 = arith.addf %596, %599 : vector<2x128xf32>
    %c0_190 = arith.constant 0 : index
    %c0_191 = arith.constant 0 : index
    %601 = vector.load %arg9[%c0_190, %c0_191] : memref<2x128xf32, #tpu.memory_space<vmem>>, vector<2x128xf32>
    tpu.vector_store %arg9[%c0_190, %c0_191], %600 {strides = array<i32>} : memref<2x128xf32, #tpu.memory_space<vmem>>, vector<2x128xf32>,
    %c16_i32_192 = arith.constant 16 : i32
    %602 = arith.muli %arg0, %c16_i32_192 : i32
    %c10_i32 = arith.constant 10 : i32
    %603 = arith.addi %602, %c10_i32 : i32
    %c0_193 = arith.constant 0 : index
    %604 = arith.index_cast %603 : i32 to index
    %605 = memref.load %arg2[%c0_193, %604] : memref<9x32xf32, #tpu.memory_space<smem>>
    %606 = vector.broadcast %605 : f32 to vector<2x256xf32>
    %607 = arith.mulf %3, %606 : vector<2x256xf32>
    %c1_194 = arith.constant 1 : index
    %608 = arith.index_cast %603 : i32 to index
    %609 = memref.load %arg2[%c1_194, %608] : memref<9x32xf32, #tpu.memory_space<smem>>
    %610 = vector.broadcast %609 : f32 to vector<2x256xf32>
    %611 = arith.mulf %4, %610 : vector<2x256xf32>
    %612 = arith.addf %607, %611 : vector<2x256xf32>
    %c2_195 = arith.constant 2 : index
    %613 = arith.index_cast %603 : i32 to index
    %614 = memref.load %arg2[%c2_195, %613] : memref<9x32xf32, #tpu.memory_space<smem>>
    %615 = vector.broadcast %614 : f32 to vector<2x256xf32>
    %616 = arith.mulf %5, %615 : vector<2x256xf32>
    %617 = arith.addf %612, %616 : vector<2x256xf32>
    %c3_196 = arith.constant 3 : index
    %618 = arith.index_cast %603 : i32 to index
    %619 = memref.load %arg2[%c3_196, %618] : memref<9x32xf32, #tpu.memory_space<smem>>
    %620 = vector.broadcast %619 : f32 to vector<2x256xf32>
    %621 = arith.mulf %6, %620 : vector<2x256xf32>
    %622 = arith.addf %617, %621 : vector<2x256xf32>
    %c4_197 = arith.constant 4 : index
    %623 = arith.index_cast %603 : i32 to index
    %624 = memref.load %arg2[%c4_197, %623] : memref<9x32xf32, #tpu.memory_space<smem>>
    %625 = vector.broadcast %624 : f32 to vector<2x256xf32>
    %626 = arith.mulf %7, %625 : vector<2x256xf32>
    %627 = arith.addf %622, %626 : vector<2x256xf32>
    %c5_198 = arith.constant 5 : index
    %628 = arith.index_cast %603 : i32 to index
    %629 = memref.load %arg2[%c5_198, %628] : memref<9x32xf32, #tpu.memory_space<smem>>
    %630 = vector.broadcast %629 : f32 to vector<2x256xf32>
    %631 = arith.mulf %8, %630 : vector<2x256xf32>
    %632 = arith.addf %627, %631 : vector<2x256xf32>
    %c6_199 = arith.constant 6 : index
    %633 = arith.index_cast %603 : i32 to index
    %634 = memref.load %arg2[%c6_199, %633] : memref<9x32xf32, #tpu.memory_space<smem>>
    %635 = vector.broadcast %634 : f32 to vector<2x256xf32>
    %636 = arith.mulf %9, %635 : vector<2x256xf32>
    %637 = arith.addf %632, %636 : vector<2x256xf32>
    %c7_200 = arith.constant 7 : index
    %638 = arith.index_cast %603 : i32 to index
    %639 = memref.load %arg2[%c7_200, %638] : memref<9x32xf32, #tpu.memory_space<smem>>
    %640 = vector.broadcast %639 : f32 to vector<2x256xf32>
    %641 = arith.mulf %10, %640 : vector<2x256xf32>
    %642 = arith.addf %637, %641 : vector<2x256xf32>
    %c8_201 = arith.constant 8 : index
    %643 = arith.index_cast %603 : i32 to index
    %644 = memref.load %arg2[%c8_201, %643] : memref<9x32xf32, #tpu.memory_space<smem>>
    %645 = vector.broadcast %644 : f32 to vector<2x256xf32>
    %646 = arith.mulf %11, %645 : vector<2x256xf32>
    %647 = arith.addf %642, %646 : vector<2x256xf32>
    %648 = arith.index_cast %603 : i32 to index
    %649 = memref.load %arg3[%648] : memref<32xf32, #tpu.memory_space<smem>>
    %650 = vector.broadcast %649 : f32 to vector<2x256xf32>
    %651 = arith.addf %647, %650 : vector<2x256xf32>
    %cst_202 = arith.constant 0.000000e+00 : f32
    %652 = vector.broadcast %cst_202 : f32 to vector<2x256xf32>
    %653 = arith.maximumf %651, %652 : vector<2x256xf32>
    %654 = arith.truncf %653 : vector<2x256xf32> to vector<2x256xbf16>
    %c0_203 = arith.constant 0 : index
    %c0_204 = arith.constant 0 : index
    %655 = vector.load %arg9[%c0_203, %c0_204] : memref<2x128xf32, #tpu.memory_space<vmem>>, vector<2x128xf32>
    %c10 = arith.constant 10 : index
    %c0_205 = arith.constant 0 : index
    %c0_206 = arith.constant 0 : index
    %656 = vector.load %arg4[%c10, %c0_205, %c0_206] : memref<16x256x128xbf16, #tpu.memory_space<vmem>>, vector<1x256x128xbf16>
    %657 = vector.shape_cast %656 : vector<1x256x128xbf16> to vector<256x128xbf16>
    %cst_207 = arith.constant dense<0.000000e+00> : vector<2x128xf32>
    %658 = tpu.matmul %654, %657, %cst_207 {dimension_numbers = #tpu.dot_dimension_numbers<[1], [0], [0], [1], [0, 0, 1, 1], [], []>} : vector<2x256xbf16>, vector<256x128xbf16>, vector<2x128xf32> -> vector<2x128xf32>
    %659 = arith.addf %655, %658 : vector<2x128xf32>
    %c0_208 = arith.constant 0 : index
    %c0_209 = arith.constant 0 : index
    %660 = vector.load %arg9[%c0_208, %c0_209] : memref<2x128xf32, #tpu.memory_space<vmem>>, vector<2x128xf32>
    tpu.vector_store %arg9[%c0_208, %c0_209], %659 {strides = array<i32>} : memref<2x128xf32, #tpu.memory_space<vmem>>, vector<2x128xf32>,
    %c16_i32_210 = arith.constant 16 : i32
    %661 = arith.muli %arg0, %c16_i32_210 : i32
    %c11_i32 = arith.constant 11 : i32
    %662 = arith.addi %661, %c11_i32 : i32
    %c0_211 = arith.constant 0 : index
    %663 = arith.index_cast %662 : i32 to index
    %664 = memref.load %arg2[%c0_211, %663] : memref<9x32xf32, #tpu.memory_space<smem>>
    %665 = vector.broadcast %664 : f32 to vector<2x256xf32>
    %666 = arith.mulf %3, %665 : vector<2x256xf32>
    %c1_212 = arith.constant 1 : index
    %667 = arith.index_cast %662 : i32 to index
    %668 = memref.load %arg2[%c1_212, %667] : memref<9x32xf32, #tpu.memory_space<smem>>
    %669 = vector.broadcast %668 : f32 to vector<2x256xf32>
    %670 = arith.mulf %4, %669 : vector<2x256xf32>
    %671 = arith.addf %666, %670 : vector<2x256xf32>
    %c2_213 = arith.constant 2 : index
    %672 = arith.index_cast %662 : i32 to index
    %673 = memref.load %arg2[%c2_213, %672] : memref<9x32xf32, #tpu.memory_space<smem>>
    %674 = vector.broadcast %673 : f32 to vector<2x256xf32>
    %675 = arith.mulf %5, %674 : vector<2x256xf32>
    %676 = arith.addf %671, %675 : vector<2x256xf32>
    %c3_214 = arith.constant 3 : index
    %677 = arith.index_cast %662 : i32 to index
    %678 = memref.load %arg2[%c3_214, %677] : memref<9x32xf32, #tpu.memory_space<smem>>
    %679 = vector.broadcast %678 : f32 to vector<2x256xf32>
    %680 = arith.mulf %6, %679 : vector<2x256xf32>
    %681 = arith.addf %676, %680 : vector<2x256xf32>
    %c4_215 = arith.constant 4 : index
    %682 = arith.index_cast %662 : i32 to index
    %683 = memref.load %arg2[%c4_215, %682] : memref<9x32xf32, #tpu.memory_space<smem>>
    %684 = vector.broadcast %683 : f32 to vector<2x256xf32>
    %685 = arith.mulf %7, %684 : vector<2x256xf32>
    %686 = arith.addf %681, %685 : vector<2x256xf32>
    %c5_216 = arith.constant 5 : index
    %687 = arith.index_cast %662 : i32 to index
    %688 = memref.load %arg2[%c5_216, %687] : memref<9x32xf32, #tpu.memory_space<smem>>
    %689 = vector.broadcast %688 : f32 to vector<2x256xf32>
    %690 = arith.mulf %8, %689 : vector<2x256xf32>
    %691 = arith.addf %686, %690 : vector<2x256xf32>
    %c6_217 = arith.constant 6 : index
    %692 = arith.index_cast %662 : i32 to index
    %693 = memref.load %arg2[%c6_217, %692] : memref<9x32xf32, #tpu.memory_space<smem>>
    %694 = vector.broadcast %693 : f32 to vector<2x256xf32>
    %695 = arith.mulf %9, %694 : vector<2x256xf32>
    %696 = arith.addf %691, %695 : vector<2x256xf32>
    %c7_218 = arith.constant 7 : index
    %697 = arith.index_cast %662 : i32 to index
    %698 = memref.load %arg2[%c7_218, %697] : memref<9x32xf32, #tpu.memory_space<smem>>
    %699 = vector.broadcast %698 : f32 to vector<2x256xf32>
    %700 = arith.mulf %10, %699 : vector<2x256xf32>
    %701 = arith.addf %696, %700 : vector<2x256xf32>
    %c8_219 = arith.constant 8 : index
    %702 = arith.index_cast %662 : i32 to index
    %703 = memref.load %arg2[%c8_219, %702] : memref<9x32xf32, #tpu.memory_space<smem>>
    %704 = vector.broadcast %703 : f32 to vector<2x256xf32>
    %705 = arith.mulf %11, %704 : vector<2x256xf32>
    %706 = arith.addf %701, %705 : vector<2x256xf32>
    %707 = arith.index_cast %662 : i32 to index
    %708 = memref.load %arg3[%707] : memref<32xf32, #tpu.memory_space<smem>>
    %709 = vector.broadcast %708 : f32 to vector<2x256xf32>
    %710 = arith.addf %706, %709 : vector<2x256xf32>
    %cst_220 = arith.constant 0.000000e+00 : f32
    %711 = vector.broadcast %cst_220 : f32 to vector<2x256xf32>
    %712 = arith.maximumf %710, %711 : vector<2x256xf32>
    %713 = arith.truncf %712 : vector<2x256xf32> to vector<2x256xbf16>
    %c0_221 = arith.constant 0 : index
    %c0_222 = arith.constant 0 : index
    %714 = vector.load %arg9[%c0_221, %c0_222] : memref<2x128xf32, #tpu.memory_space<vmem>>, vector<2x128xf32>
    %c11 = arith.constant 11 : index
    %c0_223 = arith.constant 0 : index
    %c0_224 = arith.constant 0 : index
    %715 = vector.load %arg4[%c11, %c0_223, %c0_224] : memref<16x256x128xbf16, #tpu.memory_space<vmem>>, vector<1x256x128xbf16>
    %716 = vector.shape_cast %715 : vector<1x256x128xbf16> to vector<256x128xbf16>
    %cst_225 = arith.constant dense<0.000000e+00> : vector<2x128xf32>
    %717 = tpu.matmul %713, %716, %cst_225 {dimension_numbers = #tpu.dot_dimension_numbers<[1], [0], [0], [1], [0, 0, 1, 1], [], []>} : vector<2x256xbf16>, vector<256x128xbf16>, vector<2x128xf32> -> vector<2x128xf32>
    %718 = arith.addf %714, %717 : vector<2x128xf32>
    %c0_226 = arith.constant 0 : index
    %c0_227 = arith.constant 0 : index
    %719 = vector.load %arg9[%c0_226, %c0_227] : memref<2x128xf32, #tpu.memory_space<vmem>>, vector<2x128xf32>
    tpu.vector_store %arg9[%c0_226, %c0_227], %718 {strides = array<i32>} : memref<2x128xf32, #tpu.memory_space<vmem>>, vector<2x128xf32>,
    %c16_i32_228 = arith.constant 16 : i32
    %720 = arith.muli %arg0, %c16_i32_228 : i32
    %c12_i32 = arith.constant 12 : i32
    %721 = arith.addi %720, %c12_i32 : i32
    %c0_229 = arith.constant 0 : index
    %722 = arith.index_cast %721 : i32 to index
    %723 = memref.load %arg2[%c0_229, %722] : memref<9x32xf32, #tpu.memory_space<smem>>
    %724 = vector.broadcast %723 : f32 to vector<2x256xf32>
    %725 = arith.mulf %3, %724 : vector<2x256xf32>
    %c1_230 = arith.constant 1 : index
    %726 = arith.index_cast %721 : i32 to index
    %727 = memref.load %arg2[%c1_230, %726] : memref<9x32xf32, #tpu.memory_space<smem>>
    %728 = vector.broadcast %727 : f32 to vector<2x256xf32>
    %729 = arith.mulf %4, %728 : vector<2x256xf32>
    %730 = arith.addf %725, %729 : vector<2x256xf32>
    %c2_231 = arith.constant 2 : index
    %731 = arith.index_cast %721 : i32 to index
    %732 = memref.load %arg2[%c2_231, %731] : memref<9x32xf32, #tpu.memory_space<smem>>
    %733 = vector.broadcast %732 : f32 to vector<2x256xf32>
    %734 = arith.mulf %5, %733 : vector<2x256xf32>
    %735 = arith.addf %730, %734 : vector<2x256xf32>
    %c3_232 = arith.constant 3 : index
    %736 = arith.index_cast %721 : i32 to index
    %737 = memref.load %arg2[%c3_232, %736] : memref<9x32xf32, #tpu.memory_space<smem>>
    %738 = vector.broadcast %737 : f32 to vector<2x256xf32>
    %739 = arith.mulf %6, %738 : vector<2x256xf32>
    %740 = arith.addf %735, %739 : vector<2x256xf32>
    %c4_233 = arith.constant 4 : index
    %741 = arith.index_cast %721 : i32 to index
    %742 = memref.load %arg2[%c4_233, %741] : memref<9x32xf32, #tpu.memory_space<smem>>
    %743 = vector.broadcast %742 : f32 to vector<2x256xf32>
    %744 = arith.mulf %7, %743 : vector<2x256xf32>
    %745 = arith.addf %740, %744 : vector<2x256xf32>
    %c5_234 = arith.constant 5 : index
    %746 = arith.index_cast %721 : i32 to index
    %747 = memref.load %arg2[%c5_234, %746] : memref<9x32xf32, #tpu.memory_space<smem>>
    %748 = vector.broadcast %747 : f32 to vector<2x256xf32>
    %749 = arith.mulf %8, %748 : vector<2x256xf32>
    %750 = arith.addf %745, %749 : vector<2x256xf32>
    %c6_235 = arith.constant 6 : index
    %751 = arith.index_cast %721 : i32 to index
    %752 = memref.load %arg2[%c6_235, %751] : memref<9x32xf32, #tpu.memory_space<smem>>
    %753 = vector.broadcast %752 : f32 to vector<2x256xf32>
    %754 = arith.mulf %9, %753 : vector<2x256xf32>
    %755 = arith.addf %750, %754 : vector<2x256xf32>
    %c7_236 = arith.constant 7 : index
    %756 = arith.index_cast %721 : i32 to index
    %757 = memref.load %arg2[%c7_236, %756] : memref<9x32xf32, #tpu.memory_space<smem>>
    %758 = vector.broadcast %757 : f32 to vector<2x256xf32>
    %759 = arith.mulf %10, %758 : vector<2x256xf32>
    %760 = arith.addf %755, %759 : vector<2x256xf32>
    %c8_237 = arith.constant 8 : index
    %761 = arith.index_cast %721 : i32 to index
    %762 = memref.load %arg2[%c8_237, %761] : memref<9x32xf32, #tpu.memory_space<smem>>
    %763 = vector.broadcast %762 : f32 to vector<2x256xf32>
    %764 = arith.mulf %11, %763 : vector<2x256xf32>
    %765 = arith.addf %760, %764 : vector<2x256xf32>
    %766 = arith.index_cast %721 : i32 to index
    %767 = memref.load %arg3[%766] : memref<32xf32, #tpu.memory_space<smem>>
    %768 = vector.broadcast %767 : f32 to vector<2x256xf32>
    %769 = arith.addf %765, %768 : vector<2x256xf32>
    %cst_238 = arith.constant 0.000000e+00 : f32
    %770 = vector.broadcast %cst_238 : f32 to vector<2x256xf32>
    %771 = arith.maximumf %769, %770 : vector<2x256xf32>
    %772 = arith.truncf %771 : vector<2x256xf32> to vector<2x256xbf16>
    %c0_239 = arith.constant 0 : index
    %c0_240 = arith.constant 0 : index
    %773 = vector.load %arg9[%c0_239, %c0_240] : memref<2x128xf32, #tpu.memory_space<vmem>>, vector<2x128xf32>
    %c12 = arith.constant 12 : index
    %c0_241 = arith.constant 0 : index
    %c0_242 = arith.constant 0 : index
    %774 = vector.load %arg4[%c12, %c0_241, %c0_242] : memref<16x256x128xbf16, #tpu.memory_space<vmem>>, vector<1x256x128xbf16>
    %775 = vector.shape_cast %774 : vector<1x256x128xbf16> to vector<256x128xbf16>
    %cst_243 = arith.constant dense<0.000000e+00> : vector<2x128xf32>
    %776 = tpu.matmul %772, %775, %cst_243 {dimension_numbers = #tpu.dot_dimension_numbers<[1], [0], [0], [1], [0, 0, 1, 1], [], []>} : vector<2x256xbf16>, vector<256x128xbf16>, vector<2x128xf32> -> vector<2x128xf32>
    %777 = arith.addf %773, %776 : vector<2x128xf32>
    %c0_244 = arith.constant 0 : index
    %c0_245 = arith.constant 0 : index
    %778 = vector.load %arg9[%c0_244, %c0_245] : memref<2x128xf32, #tpu.memory_space<vmem>>, vector<2x128xf32>
    tpu.vector_store %arg9[%c0_244, %c0_245], %777 {strides = array<i32>} : memref<2x128xf32, #tpu.memory_space<vmem>>, vector<2x128xf32>,
    %c16_i32_246 = arith.constant 16 : i32
    %779 = arith.muli %arg0, %c16_i32_246 : i32
    %c13_i32 = arith.constant 13 : i32
    %780 = arith.addi %779, %c13_i32 : i32
    %c0_247 = arith.constant 0 : index
    %781 = arith.index_cast %780 : i32 to index
    %782 = memref.load %arg2[%c0_247, %781] : memref<9x32xf32, #tpu.memory_space<smem>>
    %783 = vector.broadcast %782 : f32 to vector<2x256xf32>
    %784 = arith.mulf %3, %783 : vector<2x256xf32>
    %c1_248 = arith.constant 1 : index
    %785 = arith.index_cast %780 : i32 to index
    %786 = memref.load %arg2[%c1_248, %785] : memref<9x32xf32, #tpu.memory_space<smem>>
    %787 = vector.broadcast %786 : f32 to vector<2x256xf32>
    %788 = arith.mulf %4, %787 : vector<2x256xf32>
    %789 = arith.addf %784, %788 : vector<2x256xf32>
    %c2_249 = arith.constant 2 : index
    %790 = arith.index_cast %780 : i32 to index
    %791 = memref.load %arg2[%c2_249, %790] : memref<9x32xf32, #tpu.memory_space<smem>>
    %792 = vector.broadcast %791 : f32 to vector<2x256xf32>
    %793 = arith.mulf %5, %792 : vector<2x256xf32>
    %794 = arith.addf %789, %793 : vector<2x256xf32>
    %c3_250 = arith.constant 3 : index
    %795 = arith.index_cast %780 : i32 to index
    %796 = memref.load %arg2[%c3_250, %795] : memref<9x32xf32, #tpu.memory_space<smem>>
    %797 = vector.broadcast %796 : f32 to vector<2x256xf32>
    %798 = arith.mulf %6, %797 : vector<2x256xf32>
    %799 = arith.addf %794, %798 : vector<2x256xf32>
    %c4_251 = arith.constant 4 : index
    %800 = arith.index_cast %780 : i32 to index
    %801 = memref.load %arg2[%c4_251, %800] : memref<9x32xf32, #tpu.memory_space<smem>>
    %802 = vector.broadcast %801 : f32 to vector<2x256xf32>
    %803 = arith.mulf %7, %802 : vector<2x256xf32>
    %804 = arith.addf %799, %803 : vector<2x256xf32>
    %c5_252 = arith.constant 5 : index
    %805 = arith.index_cast %780 : i32 to index
    %806 = memref.load %arg2[%c5_252, %805] : memref<9x32xf32, #tpu.memory_space<smem>>
    %807 = vector.broadcast %806 : f32 to vector<2x256xf32>
    %808 = arith.mulf %8, %807 : vector<2x256xf32>
    %809 = arith.addf %804, %808 : vector<2x256xf32>
    %c6_253 = arith.constant 6 : index
    %810 = arith.index_cast %780 : i32 to index
    %811 = memref.load %arg2[%c6_253, %810] : memref<9x32xf32, #tpu.memory_space<smem>>
    %812 = vector.broadcast %811 : f32 to vector<2x256xf32>
    %813 = arith.mulf %9, %812 : vector<2x256xf32>
    %814 = arith.addf %809, %813 : vector<2x256xf32>
    %c7_254 = arith.constant 7 : index
    %815 = arith.index_cast %780 : i32 to index
    %816 = memref.load %arg2[%c7_254, %815] : memref<9x32xf32, #tpu.memory_space<smem>>
    %817 = vector.broadcast %816 : f32 to vector<2x256xf32>
    %818 = arith.mulf %10, %817 : vector<2x256xf32>
    %819 = arith.addf %814, %818 : vector<2x256xf32>
    %c8_255 = arith.constant 8 : index
    %820 = arith.index_cast %780 : i32 to index
    %821 = memref.load %arg2[%c8_255, %820] : memref<9x32xf32, #tpu.memory_space<smem>>
    %822 = vector.broadcast %821 : f32 to vector<2x256xf32>
    %823 = arith.mulf %11, %822 : vector<2x256xf32>
    %824 = arith.addf %819, %823 : vector<2x256xf32>
    %825 = arith.index_cast %780 : i32 to index
    %826 = memref.load %arg3[%825] : memref<32xf32, #tpu.memory_space<smem>>
    %827 = vector.broadcast %826 : f32 to vector<2x256xf32>
    %828 = arith.addf %824, %827 : vector<2x256xf32>
    %cst_256 = arith.constant 0.000000e+00 : f32
    %829 = vector.broadcast %cst_256 : f32 to vector<2x256xf32>
    %830 = arith.maximumf %828, %829 : vector<2x256xf32>
    %831 = arith.truncf %830 : vector<2x256xf32> to vector<2x256xbf16>
    %c0_257 = arith.constant 0 : index
    %c0_258 = arith.constant 0 : index
    %832 = vector.load %arg9[%c0_257, %c0_258] : memref<2x128xf32, #tpu.memory_space<vmem>>, vector<2x128xf32>
    %c13 = arith.constant 13 : index
    %c0_259 = arith.constant 0 : index
    %c0_260 = arith.constant 0 : index
    %833 = vector.load %arg4[%c13, %c0_259, %c0_260] : memref<16x256x128xbf16, #tpu.memory_space<vmem>>, vector<1x256x128xbf16>
    %834 = vector.shape_cast %833 : vector<1x256x128xbf16> to vector<256x128xbf16>
    %cst_261 = arith.constant dense<0.000000e+00> : vector<2x128xf32>
    %835 = tpu.matmul %831, %834, %cst_261 {dimension_numbers = #tpu.dot_dimension_numbers<[1], [0], [0], [1], [0, 0, 1, 1], [], []>} : vector<2x256xbf16>, vector<256x128xbf16>, vector<2x128xf32> -> vector<2x128xf32>
    %836 = arith.addf %832, %835 : vector<2x128xf32>
    %c0_262 = arith.constant 0 : index
    %c0_263 = arith.constant 0 : index
    %837 = vector.load %arg9[%c0_262, %c0_263] : memref<2x128xf32, #tpu.memory_space<vmem>>, vector<2x128xf32>
    tpu.vector_store %arg9[%c0_262, %c0_263], %836 {strides = array<i32>} : memref<2x128xf32, #tpu.memory_space<vmem>>, vector<2x128xf32>,
    %c16_i32_264 = arith.constant 16 : i32
    %838 = arith.muli %arg0, %c16_i32_264 : i32
    %c14_i32 = arith.constant 14 : i32
    %839 = arith.addi %838, %c14_i32 : i32
    %c0_265 = arith.constant 0 : index
    %840 = arith.index_cast %839 : i32 to index
    %841 = memref.load %arg2[%c0_265, %840] : memref<9x32xf32, #tpu.memory_space<smem>>
    %842 = vector.broadcast %841 : f32 to vector<2x256xf32>
    %843 = arith.mulf %3, %842 : vector<2x256xf32>
    %c1_266 = arith.constant 1 : index
    %844 = arith.index_cast %839 : i32 to index
    %845 = memref.load %arg2[%c1_266, %844] : memref<9x32xf32, #tpu.memory_space<smem>>
    %846 = vector.broadcast %845 : f32 to vector<2x256xf32>
    %847 = arith.mulf %4, %846 : vector<2x256xf32>
    %848 = arith.addf %843, %847 : vector<2x256xf32>
    %c2_267 = arith.constant 2 : index
    %849 = arith.index_cast %839 : i32 to index
    %850 = memref.load %arg2[%c2_267, %849] : memref<9x32xf32, #tpu.memory_space<smem>>
    %851 = vector.broadcast %850 : f32 to vector<2x256xf32>
    %852 = arith.mulf %5, %851 : vector<2x256xf32>
    %853 = arith.addf %848, %852 : vector<2x256xf32>
    %c3_268 = arith.constant 3 : index
    %854 = arith.index_cast %839 : i32 to index
    %855 = memref.load %arg2[%c3_268, %854] : memref<9x32xf32, #tpu.memory_space<smem>>
    %856 = vector.broadcast %855 : f32 to vector<2x256xf32>
    %857 = arith.mulf %6, %856 : vector<2x256xf32>
    %858 = arith.addf %853, %857 : vector<2x256xf32>
    %c4_269 = arith.constant 4 : index
    %859 = arith.index_cast %839 : i32 to index
    %860 = memref.load %arg2[%c4_269, %859] : memref<9x32xf32, #tpu.memory_space<smem>>
    %861 = vector.broadcast %860 : f32 to vector<2x256xf32>
    %862 = arith.mulf %7, %861 : vector<2x256xf32>
    %863 = arith.addf %858, %862 : vector<2x256xf32>
    %c5_270 = arith.constant 5 : index
    %864 = arith.index_cast %839 : i32 to index
    %865 = memref.load %arg2[%c5_270, %864] : memref<9x32xf32, #tpu.memory_space<smem>>
    %866 = vector.broadcast %865 : f32 to vector<2x256xf32>
    %867 = arith.mulf %8, %866 : vector<2x256xf32>
    %868 = arith.addf %863, %867 : vector<2x256xf32>
    %c6_271 = arith.constant 6 : index
    %869 = arith.index_cast %839 : i32 to index
    %870 = memref.load %arg2[%c6_271, %869] : memref<9x32xf32, #tpu.memory_space<smem>>
    %871 = vector.broadcast %870 : f32 to vector<2x256xf32>
    %872 = arith.mulf %9, %871 : vector<2x256xf32>
    %873 = arith.addf %868, %872 : vector<2x256xf32>
    %c7_272 = arith.constant 7 : index
    %874 = arith.index_cast %839 : i32 to index
    %875 = memref.load %arg2[%c7_272, %874] : memref<9x32xf32, #tpu.memory_space<smem>>
    %876 = vector.broadcast %875 : f32 to vector<2x256xf32>
    %877 = arith.mulf %10, %876 : vector<2x256xf32>
    %878 = arith.addf %873, %877 : vector<2x256xf32>
    %c8_273 = arith.constant 8 : index
    %879 = arith.index_cast %839 : i32 to index
    %880 = memref.load %arg2[%c8_273, %879] : memref<9x32xf32, #tpu.memory_space<smem>>
    %881 = vector.broadcast %880 : f32 to vector<2x256xf32>
    %882 = arith.mulf %11, %881 : vector<2x256xf32>
    %883 = arith.addf %878, %882 : vector<2x256xf32>
    %884 = arith.index_cast %839 : i32 to index
    %885 = memref.load %arg3[%884] : memref<32xf32, #tpu.memory_space<smem>>
    %886 = vector.broadcast %885 : f32 to vector<2x256xf32>
    %887 = arith.addf %883, %886 : vector<2x256xf32>
    %cst_274 = arith.constant 0.000000e+00 : f32
    %888 = vector.broadcast %cst_274 : f32 to vector<2x256xf32>
    %889 = arith.maximumf %887, %888 : vector<2x256xf32>
    %890 = arith.truncf %889 : vector<2x256xf32> to vector<2x256xbf16>
    %c0_275 = arith.constant 0 : index
    %c0_276 = arith.constant 0 : index
    %891 = vector.load %arg9[%c0_275, %c0_276] : memref<2x128xf32, #tpu.memory_space<vmem>>, vector<2x128xf32>
    %c14 = arith.constant 14 : index
    %c0_277 = arith.constant 0 : index
    %c0_278 = arith.constant 0 : index
    %892 = vector.load %arg4[%c14, %c0_277, %c0_278] : memref<16x256x128xbf16, #tpu.memory_space<vmem>>, vector<1x256x128xbf16>
    %893 = vector.shape_cast %892 : vector<1x256x128xbf16> to vector<256x128xbf16>
    %cst_279 = arith.constant dense<0.000000e+00> : vector<2x128xf32>
    %894 = tpu.matmul %890, %893, %cst_279 {dimension_numbers = #tpu.dot_dimension_numbers<[1], [0], [0], [1], [0, 0, 1, 1], [], []>} : vector<2x256xbf16>, vector<256x128xbf16>, vector<2x128xf32> -> vector<2x128xf32>
    %895 = arith.addf %891, %894 : vector<2x128xf32>
    %c0_280 = arith.constant 0 : index
    %c0_281 = arith.constant 0 : index
    %896 = vector.load %arg9[%c0_280, %c0_281] : memref<2x128xf32, #tpu.memory_space<vmem>>, vector<2x128xf32>
    tpu.vector_store %arg9[%c0_280, %c0_281], %895 {strides = array<i32>} : memref<2x128xf32, #tpu.memory_space<vmem>>, vector<2x128xf32>,
    %c16_i32_282 = arith.constant 16 : i32
    %897 = arith.muli %arg0, %c16_i32_282 : i32
    %c15_i32 = arith.constant 15 : i32
    %898 = arith.addi %897, %c15_i32 : i32
    %c0_283 = arith.constant 0 : index
    %899 = arith.index_cast %898 : i32 to index
    %900 = memref.load %arg2[%c0_283, %899] : memref<9x32xf32, #tpu.memory_space<smem>>
    %901 = vector.broadcast %900 : f32 to vector<2x256xf32>
    %902 = arith.mulf %3, %901 : vector<2x256xf32>
    %c1_284 = arith.constant 1 : index
    %903 = arith.index_cast %898 : i32 to index
    %904 = memref.load %arg2[%c1_284, %903] : memref<9x32xf32, #tpu.memory_space<smem>>
    %905 = vector.broadcast %904 : f32 to vector<2x256xf32>
    %906 = arith.mulf %4, %905 : vector<2x256xf32>
    %907 = arith.addf %902, %906 : vector<2x256xf32>
    %c2_285 = arith.constant 2 : index
    %908 = arith.index_cast %898 : i32 to index
    %909 = memref.load %arg2[%c2_285, %908] : memref<9x32xf32, #tpu.memory_space<smem>>
    %910 = vector.broadcast %909 : f32 to vector<2x256xf32>
    %911 = arith.mulf %5, %910 : vector<2x256xf32>
    %912 = arith.addf %907, %911 : vector<2x256xf32>
    %c3_286 = arith.constant 3 : index
    %913 = arith.index_cast %898 : i32 to index
    %914 = memref.load %arg2[%c3_286, %913] : memref<9x32xf32, #tpu.memory_space<smem>>
    %915 = vector.broadcast %914 : f32 to vector<2x256xf32>
    %916 = arith.mulf %6, %915 : vector<2x256xf32>
    %917 = arith.addf %912, %916 : vector<2x256xf32>
    %c4_287 = arith.constant 4 : index
    %918 = arith.index_cast %898 : i32 to index
    %919 = memref.load %arg2[%c4_287, %918] : memref<9x32xf32, #tpu.memory_space<smem>>
    %920 = vector.broadcast %919 : f32 to vector<2x256xf32>
    %921 = arith.mulf %7, %920 : vector<2x256xf32>
    %922 = arith.addf %917, %921 : vector<2x256xf32>
    %c5_288 = arith.constant 5 : index
    %923 = arith.index_cast %898 : i32 to index
    %924 = memref.load %arg2[%c5_288, %923] : memref<9x32xf32, #tpu.memory_space<smem>>
    %925 = vector.broadcast %924 : f32 to vector<2x256xf32>
    %926 = arith.mulf %8, %925 : vector<2x256xf32>
    %927 = arith.addf %922, %926 : vector<2x256xf32>
    %c6_289 = arith.constant 6 : index
    %928 = arith.index_cast %898 : i32 to index
    %929 = memref.load %arg2[%c6_289, %928] : memref<9x32xf32, #tpu.memory_space<smem>>
    %930 = vector.broadcast %929 : f32 to vector<2x256xf32>
    %931 = arith.mulf %9, %930 : vector<2x256xf32>
    %932 = arith.addf %927, %931 : vector<2x256xf32>
    %c7_290 = arith.constant 7 : index
    %933 = arith.index_cast %898 : i32 to index
    %934 = memref.load %arg2[%c7_290, %933] : memref<9x32xf32, #tpu.memory_space<smem>>
    %935 = vector.broadcast %934 : f32 to vector<2x256xf32>
    %936 = arith.mulf %10, %935 : vector<2x256xf32>
    %937 = arith.addf %932, %936 : vector<2x256xf32>
    %c8_291 = arith.constant 8 : index
    %938 = arith.index_cast %898 : i32 to index
    %939 = memref.load %arg2[%c8_291, %938] : memref<9x32xf32, #tpu.memory_space<smem>>
    %940 = vector.broadcast %939 : f32 to vector<2x256xf32>
    %941 = arith.mulf %11, %940 : vector<2x256xf32>
    %942 = arith.addf %937, %941 : vector<2x256xf32>
    %943 = arith.index_cast %898 : i32 to index
    %944 = memref.load %arg3[%943] : memref<32xf32, #tpu.memory_space<smem>>
    %945 = vector.broadcast %944 : f32 to vector<2x256xf32>
    %946 = arith.addf %942, %945 : vector<2x256xf32>
    %cst_292 = arith.constant 0.000000e+00 : f32
    %947 = vector.broadcast %cst_292 : f32 to vector<2x256xf32>
    %948 = arith.maximumf %946, %947 : vector<2x256xf32>
    %949 = arith.truncf %948 : vector<2x256xf32> to vector<2x256xbf16>
    %c0_293 = arith.constant 0 : index
    %c0_294 = arith.constant 0 : index
    %950 = vector.load %arg9[%c0_293, %c0_294] : memref<2x128xf32, #tpu.memory_space<vmem>>, vector<2x128xf32>
    %c15 = arith.constant 15 : index
    %c0_295 = arith.constant 0 : index
    %c0_296 = arith.constant 0 : index
    %951 = vector.load %arg4[%c15, %c0_295, %c0_296] : memref<16x256x128xbf16, #tpu.memory_space<vmem>>, vector<1x256x128xbf16>
    %952 = vector.shape_cast %951 : vector<1x256x128xbf16> to vector<256x128xbf16>
    %cst_297 = arith.constant dense<0.000000e+00> : vector<2x128xf32>
    %953 = tpu.matmul %949, %952, %cst_297 {dimension_numbers = #tpu.dot_dimension_numbers<[1], [0], [0], [1], [0, 0, 1, 1], [], []>} : vector<2x256xbf16>, vector<256x128xbf16>, vector<2x128xf32> -> vector<2x128xf32>
    %954 = arith.addf %950, %953 : vector<2x128xf32>
    %c0_298 = arith.constant 0 : index
    %c0_299 = arith.constant 0 : index
    %955 = vector.load %arg9[%c0_298, %c0_299] : memref<2x128xf32, #tpu.memory_space<vmem>>, vector<2x128xf32>
    tpu.vector_store %arg9[%c0_298, %c0_299], %954 {strides = array<i32>} : memref<2x128xf32, #tpu.memory_space<vmem>>, vector<2x128xf32>,
    %c1_i32_300 = arith.constant 1 : i32
    %956 = arith.cmpi eq, %arg0, %c1_i32_300 : i32
    %957 = arith.extui %956 : i1 to i32
    %c0_i32_301 = arith.constant 0 : i32
    %958 = arith.cmpi ne, %957, %c0_i32_301 : i32
    scf.if %958 {
      %c0_302 = arith.constant 0 : index
      %c0_303 = arith.constant 0 : index
      %959 = vector.load %arg9[%c0_302, %c0_303] : memref<2x128xf32, #tpu.memory_space<vmem>>, vector<2x128xf32>
      %c0_304 = arith.constant 0 : index
      %c0_305 = arith.constant 0 : index
      %960 = vector.load %arg5[%c0_304, %c0_305] : memref<1x128xf32, #tpu.memory_space<vmem>>, vector<1x128xf32>
      %961 = vector.broadcast %960 : vector<1x128xf32> to vector<2x128xf32>
      %962 = arith.addf %959, %961 : vector<2x128xf32>
      %cst_306 = arith.constant 0.000000e+00 : f32
      %963 = vector.broadcast %cst_306 : f32 to vector<2x128xf32>
      %964 = arith.maximumf %962, %963 : vector<2x128xf32>
      %c0_307 = arith.constant 0 : index
      %c0_308 = arith.constant 0 : index
      %965 = vector.load %arg6[%c0_307, %c0_308] : memref<1x128xf32, #tpu.memory_space<vmem>>, vector<1x128xf32>
      %966 = vector.broadcast %965 : vector<1x128xf32> to vector<2x128xf32>
      %967 = arith.mulf %964, %966 : vector<2x128xf32>
      %cst_309 = arith.constant dense<0.000000e+00> : vector<2xf32>
      %968 = vector.multi_reduction <add>, %967, %cst_309 [1] : vector<2x128xf32> to vector<2xf32>
      %969 = vector.shape_cast %968 : vector<2xf32> to vector<2x1xf32>
      %c0_310 = arith.constant 0 : index
      %c0_311 = arith.constant 0 : index
      %970 = vector.load %arg7[%c0_310, %c0_311] : memref<1x1xf32, #tpu.memory_space<vmem>>, vector<1x1xf32>
      %971 = vector.broadcast %970 : vector<1x1xf32> to vector<2x1xf32>
      %972 = arith.addf %969, %971 : vector<2x1xf32>
      %cst_312 = arith.constant 0.000000e+00 : f32
      %973 = vector.broadcast %cst_312 : f32 to vector<2x1xf32>
      %974 = arith.subf %973, %972 : vector<2x1xf32>
      %975 = math.exp %974 : vector<2x1xf32>
      %cst_313 = arith.constant 1.000000e+00 : f32
      %976 = vector.broadcast %cst_313 : f32 to vector<2x1xf32>
      %977 = arith.addf %976, %975 : vector<2x1xf32>
      %cst_314 = arith.constant 1.000000e+00 : f32
      %978 = vector.broadcast %cst_314 : f32 to vector<2x1xf32>
      %979 = arith.divf %978, %977 : vector<2x1xf32>
      %c0_315 = arith.constant 0 : index
      %c0_316 = arith.constant 0 : index
      %980 = vector.load %arg8[%c0_315, %c0_316] : memref<2x1xf32, #tpu.memory_space<vmem>>, vector<2x1xf32>
      tpu.vector_store %arg8[%c0_315, %c0_316], %979 {strides = array<i32>} : memref<2x1xf32, #tpu.memory_space<vmem>>, vector<2x1xf32>,
    } else {
    }
    return
  }
  func.func @transform_0(%arg0: i32) -> (i32, i32) {
    %c0_i32 = arith.constant 0 : i32
    %c0_i32_0 = arith.constant 0 : i32
    %c0_i32_1 = arith.constant 0 : i32
    return %c0_i32, %c0_i32_0 : i32, i32
  }
  func.func @transform_1(%arg0: i32) -> (i32, i32) {
    %c0_i32 = arith.constant 0 : i32
    %c0_i32_0 = arith.constant 0 : i32
    %c0_i32_1 = arith.constant 0 : i32
    return %c0_i32, %c0_i32_0 : i32, i32
  }
  func.func @transform_2(%arg0: i32) -> i32 {
    %c0_i32 = arith.constant 0 : i32
    %c0_i32_0 = arith.constant 0 : i32
    return %c0_i32 : i32
  }
  func.func @transform_3(%arg0: i32) -> (i32, i32, i32) {
    %c0_i32 = arith.constant 0 : i32
    %c0_i32_0 = arith.constant 0 : i32
    %c0_i32_1 = arith.constant 0 : i32
    return %arg0, %c0_i32, %c0_i32_0 : i32, i32, i32
  }
  func.func @transform_4(%arg0: i32) -> (i32, i32) {
    %c0_i32 = arith.constant 0 : i32
    %c0_i32_0 = arith.constant 0 : i32
    %c0_i32_1 = arith.constant 0 : i32
    return %c0_i32, %c0_i32_0 : i32, i32
  }
  func.func @transform_5(%arg0: i32) -> (i32, i32) {
    %c0_i32 = arith.constant 0 : i32
    %c0_i32_0 = arith.constant 0 : i32
    %c0_i32_1 = arith.constant 0 : i32
    return %c0_i32, %c0_i32_0 : i32, i32
  }
  func.func @transform_6(%arg0: i32) -> (i32, i32) {
    %c0_i32 = arith.constant 0 : i32
    %c0_i32_0 = arith.constant 0 : i32
    %c0_i32_1 = arith.constant 0 : i32
    return %c0_i32, %c0_i32_0 : i32, i32
  }
  func.func @transform_7(%arg0: i32) -> (i32, i32) {
    %c0_i32 = arith.constant 0 : i32
    %c0_i32_0 = arith.constant 0 : i32
    %c0_i32_1 = arith.constant 0 : i32
    return %c0_i32, %c0_i32_0 : i32, i32
  }
}

</mosaic_0001>

<llo_original>
// kernel: temp_speech_classifier_forward.1
$region0: #{temp_speech_classifier_forward.1}
  #allocation0 [shape = 'u32[]', space=smem, size = 0x4, offset = 0x4, fixed_abs, tag = 'smem constant byte address 0x4 - core index']
  #allocation1 [shape = 'u32[72,128]{1,0:T(1,128)}', space=vmem, size = 0x9000, scoped, tag = 'internal scratch']
  #allocation2 [shape = 'f32[2,128]{1,0:T(2,128)}', space=vmem, size = 0x400, scoped, tag = 'scratch operand']
  #allocation3 [shape = 'f32[2,384]{1,0:T(2,128)}', space=vmem, size = 0xc00, scoped, tag = 'scratch operand']
  #allocation4 [shape = 'f32[1,1]{1,0:T(1,128)S(1)}', space=vmem, size = 0x200, scoped, tag = 'scoped memory for temp_speech_classifier_forward.1']
  %s0 = inlined_call_operand.vmem [shape: f32[2,256], index: 0, kind: input, shape index: {}]
  %s1 = inlined_call_operand.hbm [shape: f32[9,32], index: 1, kind: input, shape index: {}]
  %s2 = inlined_call_operand.hbm [shape: f32[32], index: 2, kind: input, shape index: {}]
  %s3 = inlined_call_operand.hbm [shape: bf16[32,256,128], index: 3, kind: input, shape index: {}]
  %s4 = inlined_call_operand.hbm [shape: f32[1,128], index: 4, kind: input, shape index: {}]
  %s5 = inlined_call_operand.hbm [shape: f32[1,128], index: 5, kind: input, shape index: {}]
  %s6 = inlined_call_operand.<no memory space> [shape: f32[1,1], index: 6, kind: input, shape index: {}]
  %s7 = inlined_call_operand.vmem [shape: f32[2,1], index: 7, kind: output, shape index: {}]
  %s8 = sld [smem:[#allocation0]]
  $region89: #{temp_speech_classifier_forward.1} parent=0
    _
  %s10 = ssub.s32 1, %s8
  %s11 = scalar_select 0, %s10, %s8
  %v12 = vstv %s6
  %13 = vst [vmem:[#allocation4] sm:$0x1] %v12
  $region1: #{temp_speech_classifier_forward.1} parent=0
    #allocation5 [shape = 'u8[8192]{0}', space=smem, size = 0x2000, scoped, tag = 'input window, operand 1, single buffered']
    #allocation6 [shape = 's32[2]{0}', space=sflag, size = 0x8, scoped, tag = 'scoped memory for temp_speech_classifier_forward.1']
    #allocation7 [shape = 's32[2]{0}', space=sflag, size = 0x8, scoped, tag = 'scoped memory for temp_speech_classifier_forward.1']
    #allocation8 [shape = 'u8[512]{0}', space=smem, size = 0x200, scoped, tag = 'input window, operand 2, single buffered']
    #allocation9 [shape = 's32[1]{0}', space=sflag, size = 0x4, scoped, tag = 'scoped memory for temp_speech_classifier_forward.1']
    #allocation10 [shape = 'u8[2097152]{0}', space=vmem, size = 0x200000, scoped, tag = 'input window, operand 3']
    #allocation11 [shape = 'u8[512]{0}', space=vmem, size = 0x400, scoped, tag = 'input window, operand 4, single buffered']
    #allocation12 [shape = 's32[1]{0}', space=sflag, size = 0x4, scoped, tag = 'scoped memory for temp_speech_classifier_forward.1']
    #allocation13 [shape = 'u8[512]{0}', space=vmem, size = 0x400, scoped, tag = 'input window, operand 5, single buffered']
    %14 = vsyncpa [#allocation7], 0
    %15 = vsyncpa [#allocation9], 0
    %16 = vsyncpa [#allocation6], 0
    %s17 = scalar_lea.sflag [#allocation6], 1
    %18 = vsyncpa %s17, 0
    %19 = vsyncpa [#allocation12], 0
    loop: start=0, step=1, limit=4
    $region2: #{temp_speech_classifier_forward.1} parent=1 // loop_pre_header
      _
    $region3: #{temp_speech_classifier_forward.1} parent=1 // loop_header
      %s21 = sphi 0, %s25
      %p22 = scmp.ge.s32.totalorder %s21, 4
      %s29 = sphi 0, %s29
      %s31 = sphi 0, %s29
      %s32 = sphi 0, %s31
      %s46 = sphi 0, %s32
      %s50 = sphi 0, %s50
      %s52 = sphi 0, %s50
      %s53 = sphi 0, %s52
      %s67 = sphi 0, %s53
      %s71 = sphi 0, %s71
      %s73 = sphi 0, %s71
      %s74 = sphi 0, %s73
      %s88 = sphi 0, %s74
      %s94 = sphi 0, %s96
      %s97 = sphi 0, %s94
      %s98 = sphi 0, %s97
      %s114 = sphi 0, %s98
      %s118 = sphi 0, %s118
      %s120 = sphi 0, %s118
      %s121 = sphi 0, %s120
      %s135 = sphi 0, %s121
      %s139 = sphi 0, %s139
      %s141 = sphi 0, %s139
      %s142 = sphi 0, %s141
      %s156 = sphi 0, %s142
      %s160 = sphi 0, %s160
      %s162 = sphi 0, %s160
      %s163 = sphi 0, %s162
      %s177 = sphi 0, %s163
      %s181 = sphi 0, %s181
      %s183 = sphi 0, %s181
      %s184 = sphi 0, %s183
      %s198 = sphi 0, %s184
    $region4: #{temp_speech_classifier_forward.1} parent=1 // loop_header_branch
      %24 = sbr.rel (%p22) target = $region8
    $region5: #{temp_speech_classifier_forward.1} parent=1 // loop_body
      %s26 = ssub.s32 %s21, 1
      %s27 = ssub.s32 %s21, 2
      %s28 = sadd.s32 %s21, 1
      %s30 = sadd.s32 %s29, 1
      %p33 = scmp.eq.s32.totalorder %s21, 1
      %p34 = scmp.ne.s32.totalorder %s29, %s31
      %p35 = scmp.eq.s32.totalorder %s21, 0
      %p36 = por %p34, %p35
      %p37 = scmp.ne.s32.totalorder %s29, %s31
      %p38 = scmp.eq.s32.totalorder %s26, 1
      %p39 = por %p37, %p38
      %p40 = scmp.ne.s32.totalorder %s31, %s32
      %p41 = scmp.eq.s32.totalorder %s26, 0
      %p42 = por %p40, %p41
      %p43 = scmp.ne.s32.totalorder %s31, %s32
      %p44 = scmp.eq.s32.totalorder %s27, 1
      %p45 = por %p43, %p44
      %p47 = scmp.ne.s32.totalorder %s32, %s46
      %p48 = scmp.eq.s32.totalorder %s27, 0
      %p49 = por %p47, %p48
      %s51 = sadd.s32 %s50, 1
      %p54 = scmp.eq.s32.totalorder %s21, 1
      %p55 = scmp.ne.s32.totalorder %s50, %s52
      %p56 = scmp.eq.s32.totalorder %s21, 0
      %p57 = por %p55, %p56
      %p58 = scmp.ne.s32.totalorder %s50, %s52
      %p59 = scmp.eq.s32.totalorder %s26, 1
      %p60 = por %p58, %p59
      %p61 = scmp.ne.s32.totalorder %s52, %s53
      %p62 = scmp.eq.s32.totalorder %s26, 0
      %p63 = por %p61, %p62
      %p64 = scmp.ne.s32.totalorder %s52, %s53
      %p65 = scmp.eq.s32.totalorder %s27, 1
      %p66 = por %p64, %p65
      %p68 = scmp.ne.s32.totalorder %s53, %s67
      %p69 = scmp.eq.s32.totalorder %s27, 0
      %p70 = por %p68, %p69
      %s72 = sadd.s32 %s71, 1
      %p75 = scmp.eq.s32.totalorder %s21, 1
      %p76 = scmp.ne.s32.totalorder %s71, %s73
      %p77 = scmp.eq.s32.totalorder %s21, 0
      %p78 = por %p76, %p77
      %p79 = scmp.ne.s32.totalorder %s71, %s73
      %p80 = scmp.eq.s32.totalorder %s26, 1
      %p81 = por %p79, %p80
      %p82 = scmp.ne.s32.totalorder %s73, %s74
      %p83 = scmp.eq.s32.totalorder %s26, 0
      %p84 = por %p82, %p83
      %p85 = scmp.ne.s32.totalorder %s73, %s74
      %p86 = scmp.eq.s32.totalorder %s27, 1
      %p87 = por %p85, %p86
      %p89 = scmp.ne.s32.totalorder %s74, %s88
      %p90 = scmp.eq.s32.totalorder %s27, 0
      %p91 = por %p89, %p90
      %s92 = ssub.s32 %s21, %s28
      %p93 = scmp.eq.s32.totalorder %s92, 0
      %s95 = sadd.s32 %s94, 1
      %s96 = scalar_select %p93, %s94, %s95
      %p99 = pneg %p93
      %p100 = scmp.eq.s32.totalorder %s21, 1
      %p101 = por %p99, %p100
      %p102 = scmp.ne.s32.totalorder %s94, %s97
      %p103 = scmp.eq.s32.totalorder %s21, 0
      %p104 = por %p102, %p103
      %p105 = scmp.ne.s32.totalorder %s94, %s97
      %p106 = scmp.eq.s32.totalorder %s26, 1
      %p107 = por %p105, %p106
      %p108 = scmp.ne.s32.totalorder %s97, %s98
      %p109 = scmp.eq.s32.totalorder %s26, 0
      %p110 = por %p108, %p109
      %p111 = scmp.ne.s32.totalorder %s97, %s98
      %p112 = scmp.eq.s32.totalorder %s27, 1
      %p113 = por %p111, %p112
      %p115 = scmp.ne.s32.totalorder %s98, %s114
      %p116 = scmp.eq.s32.totalorder %s27, 0
      %p117 = por %p115, %p116
      %s119 = sadd.s32 %s118, 1
      %p122 = scmp.eq.s32.totalorder %s21, 1
      %p123 = scmp.ne.s32.totalorder %s118, %s120
      %p124 = scmp.eq.s32.totalorder %s21, 0
      %p125 = por %p123, %p124
      %p126 = scmp.ne.s32.totalorder %s118, %s120
      %p127 = scmp.eq.s32.totalorder %s26, 1
      %p128 = por %p126, %p127
      %p129 = scmp.ne.s32.totalorder %s120, %s121
      %p130 = scmp.eq.s32.totalorder %s26, 0
      %p131 = por %p129, %p130
      %p132 = scmp.ne.s32.totalorder %s120, %s121
      %p133 = scmp.eq.s32.totalorder %s27, 1
      %p134 = por %p132, %p133
      %p136 = scmp.ne.s32.totalorder %s121, %s135
      %p137 = scmp.eq.s32.totalorder %s27, 0
      %p138 = por %p136, %p137
      %s140 = sadd.s32 %s139, 1
      %p143 = scmp.eq.s32.totalorder %s21, 1
      %p144 = scmp.ne.s32.totalorder %s139, %s141
      %p145 = scmp.eq.s32.totalorder %s21, 0
      %p146 = por %p144, %p145
      %p147 = scmp.ne.s32.totalorder %s139, %s141
      %p148 = scmp.eq.s32.totalorder %s26, 1
      %p149 = por %p147, %p148
      %p150 = scmp.ne.s32.totalorder %s141, %s142
      %p151 = scmp.eq.s32.totalorder %s26, 0
      %p152 = por %p150, %p151
      %p153 = scmp.ne.s32.totalorder %s141, %s142
      %p154 = scmp.eq.s32.totalorder %s27, 1
      %p155 = por %p153, %p154
      %p157 = scmp.ne.s32.totalorder %s142, %s156
      %p158 = scmp.eq.s32.totalorder %s27, 0
      %p159 = por %p157, %p158
      %s161 = sadd.s32 %s160, 1
      %p164 = scmp.eq.s32.totalorder %s21, 1
      %p165 = scmp.ne.s32.totalorder %s160, %s162
      %p166 = scmp.eq.s32.totalorder %s21, 0
      %p167 = por %p165, %p166
      %p168 = scmp.ne.s32.totalorder %s160, %s162
      %p169 = scmp.eq.s32.totalorder %s26, 1
      %p170 = por %p168, %p169
      %p171 = scmp.ne.s32.totalorder %s162, %s163
      %p172 = scmp.eq.s32.totalorder %s26, 0
      %p173 = por %p171, %p172
      %p174 = scmp.ne.s32.totalorder %s162, %s163
      %p175 = scmp.eq.s32.totalorder %s27, 1
      %p176 = por %p174, %p175
      %p178 = scmp.ne.s32.totalorder %s163, %s177
      %p179 = scmp.eq.s32.totalorder %s27, 0
      %p180 = por %p178, %p179
      %s182 = sadd.s32 %s181, 1
      %p185 = scmp.eq.s32.totalorder %s21, 1
      %p186 = scmp.ne.s32.totalorder %s181, %s183
      %p187 = scmp.eq.s32.totalorder %s21, 0
      %p188 = por %p186, %p187
      %p189 = scmp.ne.s32.totalorder %s181, %s183
      %p190 = scmp.eq.s32.totalorder %s26, 1
      %p191 = por %p189, %p190
      %p192 = scmp.ne.s32.totalorder %s183, %s184
      %p193 = scmp.eq.s32.totalorder %s26, 0
      %p194 = por %p192, %p193
      %p195 = scmp.ne.s32.totalorder %s183, %s184
      %p196 = scmp.eq.s32.totalorder %s27, 1
      %p197 = por %p195, %p196
      %p199 = scmp.ne.s32.totalorder %s184, %s198
      %p200 = scmp.eq.s32.totalorder %s27, 0
      %p201 = por %p199, %p200
      %p202 = scmp.le.s32.totalorder 1, %s21
      %p203 = scmp.lt.s32.totalorder %s21, 3
      %p204 = pnand %p202, %p203
      %p205 = pneg %p204
      // Predicated region
      $region9: #{temp_speech_classifier_forward.1} parent=5 // pred_check
        _
      $region10: #{temp_speech_classifier_forward.1} parent=5 // pred_check_branch
        %207 = sbr.rel (%p204) target = $region12
      $region11: #{temp_speech_classifier_forward.1} parent=5 // pred_region
        %s208 = ssub.s32 %s21, 1
        // Predicated region
        $region13: #{temp_speech_classifier_forward.1} parent=11 // pred_check
          %p209 = pneg %p42
        $region14: #{temp_speech_classifier_forward.1} parent=11 // pred_check_branch
          %211 = sbr.rel (%p209) target = $region16
        $region15: #{temp_speech_classifier_forward.1} parent=11 // pred_region
          _
        $region16: #{temp_speech_classifier_forward.1} parent=11 // pred_fallthru
          _
        // Predicated region
        $region17: #{temp_speech_classifier_forward.1} parent=11 // pred_check
          %p212 = pneg %p63
        $region18: #{temp_speech_classifier_forward.1} parent=11 // pred_check_branch
          %214 = sbr.rel (%p212) target = $region20
        $region19: #{temp_speech_classifier_forward.1} parent=11 // pred_region
          %216 = vsyncadd [#allocation7], 0
          %s217 = sshll.u32 %s1, 4
          %s218 = int_to_ptr.hbm [resolvable:$true] %s217
          %223 = dma.hbm_to_smem %s218, 256, [#allocation5], [#allocation7], 128, 128, 8
        $region20: #{temp_speech_classifier_forward.1} parent=11 // pred_fallthru
          _
        // Predicated region
        $region21: #{temp_speech_classifier_forward.1} parent=11 // pred_check
          %p224 = pneg %p84
        $region22: #{temp_speech_classifier_forward.1} parent=11 // pred_check_branch
          %226 = sbr.rel (%p224) target = $region24
        $region23: #{temp_speech_classifier_forward.1} parent=11 // pred_region
          %228 = vsyncadd [#allocation9], 0
          %s230 = sshll.u32 %s2, 4
          %s231 = int_to_ptr.hbm [resolvable:$true] %s230
          %233 = dma.hbm_to_smem %s231, 16, [#allocation8], [#allocation9]
        $region24: #{temp_speech_classifier_forward.1} parent=11 // pred_fallthru
          _
        // Predicated region
        $region25: #{temp_speech_classifier_forward.1} parent=11 // pred_check
          %p234 = pneg %p131
        $region26: #{temp_speech_classifier_forward.1} parent=11 // pred_check_branch
          %236 = sbr.rel (%p234) target = $region28
        $region27: #{temp_speech_classifier_forward.1} parent=11 // pred_region
          %238 = vsyncadd [#allocation12], 0
          %s240 = sshll.u32 %s4, 4
          %s241 = int_to_ptr.hbm [resolvable:$true] %s240
          %s242 = sshll.u32 [#allocation11], 4
          %s243 = int_to_ptr.vmem [resolvable:$true] %s242
          %245 = dma.hbm_to_vmem [thread:$0]  %s241, 16, %s243, [#allocation12]
        $region28: #{temp_speech_classifier_forward.1} parent=11 // pred_fallthru
          _
        // Predicated region
        $region29: #{temp_speech_classifier_forward.1} parent=11 // pred_check
          %p246 = pneg %p152
        $region30: #{temp_speech_classifier_forward.1} parent=11 // pred_check_branch
          %248 = sbr.rel (%p246) target = $region32
        $region31: #{temp_speech_classifier_forward.1} parent=11 // pred_region
          %250 = vsyncadd [#allocation12], 0
          %s252 = sshll.u32 %s5, 4
          %s253 = int_to_ptr.hbm [resolvable:$true] %s252
          %s254 = sshll.u32 [#allocation13], 4
          %s255 = int_to_ptr.vmem [resolvable:$true] %s254
          %257 = dma.hbm_to_vmem [thread:$0]  %s253, 16, %s255, [#allocation12]
        $region32: #{temp_speech_classifier_forward.1} parent=11 // pred_fallthru
          _
        // Predicated region
        $region33: #{temp_speech_classifier_forward.1} parent=11 // pred_check
          %p258 = pneg %p173
        $region34: #{temp_speech_classifier_forward.1} parent=11 // pred_check_branch
          %260 = sbr.rel (%p258) target = $region36
        $region35: #{temp_speech_classifier_forward.1} parent=11 // pred_region
          _
        $region36: #{temp_speech_classifier_forward.1} parent=11 // pred_fallthru
          _
      $region12: #{temp_speech_classifier_forward.1} parent=5 // pred_fallthru
        _
      %p261 = scmp.lt.s32.totalorder %s21, 2
      // Predicated region
      $region37: #{temp_speech_classifier_forward.1} parent=5 // pred_check
        %p262 = pneg %p261
      $region38: #{temp_speech_classifier_forward.1} parent=5 // pred_check_branch
        %264 = sbr.rel (%p262) target = $region40
      $region39: #{temp_speech_classifier_forward.1} parent=5 // pred_region
        // Predicated region
        $region41: #{temp_speech_classifier_forward.1} parent=39 // pred_check
          %p265 = pneg %p104
        $region42: #{temp_speech_classifier_forward.1} parent=39 // pred_check_branch
          %267 = sbr.rel (%p265) target = $region44
        $region43: #{temp_speech_classifier_forward.1} parent=39 // pred_region
          %s268 = sand.u32 %s94, 1
          %s269 = scalar_lea.sflag [#allocation6], %s268
          %s270 = sand.u32 %s94, 1
          %s271 = smul.addr %s270, 2048
          %s272 = scalar_lea.vmem [#allocation10], %s271
          %s273 = smul.u32 16, %s21
          %275 = vsyncadd %s269, 0
          %s276 = smul.addr %s273, 32
          %s277 = smul.addr %s276, 4
          %s278 = scalar_lea.hbm %s3, %s277
          %s279 = sshll.u32 %s278, 4
          %s280 = int_to_ptr.hbm [resolvable:$true] %s279
          %s281 = sshll.u32 %s272, 4
          %s282 = int_to_ptr.vmem [resolvable:$true] %s281
          %287 = dma.hbm_to_vmem [thread:$0]  %s280, 32768, %s282, %s269, 64, 64, 4
        $region44: #{temp_speech_classifier_forward.1} parent=39 // pred_fallthru
          _
      $region40: #{temp_speech_classifier_forward.1} parent=5 // pred_fallthru
        _
      %p288 = scmp.le.s32.totalorder 1, %s21
      %p289 = scmp.lt.s32.totalorder %s21, 3
      %p290 = pnand %p288, %p289
      %p291 = pneg %p290
      // Predicated region
      $region45: #{temp_speech_classifier_forward.1} parent=5 // pred_check
        _
      $region46: #{temp_speech_classifier_forward.1} parent=5 // pred_check_branch
        %293 = sbr.rel (%p290) target = $region48
      $region47: #{temp_speech_classifier_forward.1} parent=5 // pred_region
        %s294 = ssub.s32 %s21, 1
        // Predicated region
        $region49: #{temp_speech_classifier_forward.1} parent=47 // pred_check
          %p295 = pneg %p63
        $region50: #{temp_speech_classifier_forward.1} parent=47 // pred_check_branch
          %297 = sbr.rel (%p295) target = $region52
        $region51: #{temp_speech_classifier_forward.1} parent=47 // pred_region
          %299 = dma.done [#allocation7], 256
        $region52: #{temp_speech_classifier_forward.1} parent=47 // pred_fallthru
          _
        // Predicated region
        $region53: #{temp_speech_classifier_forward.1} parent=47 // pred_check
          %p300 = pneg %p84
        $region54: #{temp_speech_classifier_forward.1} parent=47 // pred_check_branch
          %302 = sbr.rel (%p300) target = $region56
        $region55: #{temp_speech_classifier_forward.1} parent=47 // pred_region
          %304 = dma.done [#allocation9], 16
        $region56: #{temp_speech_classifier_forward.1} parent=47 // pred_fallthru
          _
        %s305 = sand.u32 %s97, 1
        %s306 = scalar_lea.sflag [#allocation6], %s305
        %s307 = sand.u32 %s97, 1
        %s308 = smul.addr %s307, 2048
        %s309 = scalar_lea.vmem [#allocation10], %s308
        // Predicated region
        $region57: #{temp_speech_classifier_forward.1} parent=47 // pred_check
          %p310 = pneg %p110
        $region58: #{temp_speech_classifier_forward.1} parent=47 // pred_check_branch
          %312 = sbr.rel (%p310) target = $region60
        $region59: #{temp_speech_classifier_forward.1} parent=47 // pred_region
          %314 = dma.done %s306, 32768
        $region60: #{temp_speech_classifier_forward.1} parent=47 // pred_fallthru
          _
        // Predicated region
        $region61: #{temp_speech_classifier_forward.1} parent=47 // pred_check
          %p315 = pneg %p131
        $region62: #{temp_speech_classifier_forward.1} parent=47 // pred_check_branch
          %317 = sbr.rel (%p315) target = $region64
        $region63: #{temp_speech_classifier_forward.1} parent=47 // pred_region
          %319 = dma.done [#allocation12], 16
        $region64: #{temp_speech_classifier_forward.1} parent=47 // pred_fallthru
          _
        // Predicated region
        $region65: #{temp_speech_classifier_forward.1} parent=47 // pred_check
          %p320 = pneg %p152
        $region66: #{temp_speech_classifier_forward.1} parent=47 // pred_check_branch
          %322 = sbr.rel (%p320) target = $region68
        $region67: #{temp_speech_classifier_forward.1} parent=47 // pred_region
          %324 = dma.done [#allocation12], 16
        $region68: #{temp_speech_classifier_forward.1} parent=47 // pred_fallthru
          _
        %325 = sfence
        %p326 = pneg %p42
        %p327 = pneg %p39
        %p328 = pneg %p63
        %p329 = pneg %p60
        %p330 = pneg %p84
        %p331 = pneg %p81
        %s332 = sand.u32 %s97, 1
        %s333 = scalar_lea.sflag [#allocation6], %s332
        %s334 = sand.u32 %s97, 1
        %s335 = smul.addr %s334, 2048
        %s336 = scalar_lea.vmem [#allocation10], %s335
        %p337 = pneg %p110
        %p338 = pneg %p107
        %p339 = pneg %p131
        %p340 = pneg %p128
        %p341 = pneg %p152
        %p342 = pneg %p149
        %p343 = pneg %p173
        %p344 = pneg %p170
        %p345 = pneg %p194
        %p346 = pneg %p191
        %s347 = smul.u32 16, %s26
        %p348 = scmp.eq.s32.totalorder %s26, 0
        // Predicated region
        $region69: #{temp_speech_classifier_forward.1} parent=47 // pred_check
          %p349 = pneg %p348
        $region70: #{temp_speech_classifier_forward.1} parent=47 // pred_check_branch
          %351 = sbr.rel (%p349) target = $region72
        $region71: #{temp_speech_classifier_forward.1} parent=47 // pred_region
          %352 = vst [vmem:[#allocation2] sm:$0x3] 0.0
          %353 = vst [vmem:[#allocation3] sm:$0x3f] 0.0
          %v354 = vld [vmem:[%s0] sm:$0xf]
          %355 = vst [vmem:[#allocation3] sm:$0xf] %v354
        $region72: #{temp_speech_classifier_forward.1} parent=47 // pred_fallthru
          _
        %v356 = vld [vmem:[#allocation3] sm:$0xf]
        %v357 = vld [vmem:[#allocation3] sm:$0x3f]
        %s358 = smul.u32 %s26, 16
        %s359 = sld [smem:[#allocation5 + %s358]]
        %v360 = vstv %s359
        %v361 = vmul.f32 %v356, %v360
        %s362 = sshra.s32 %s358, 7
        %s363 = sand.u32 %s358, 127
        %s364 = sadd.s32 %s362, 1
        %s365 = smul.u32 %s364, 128
        %s366 = sshra.s32 %s358, 7
        %s367 = sand.u32 %s358, 127
        %s368 = sadd.s32 %s365, %s367
        %s369 = sld [smem:[#allocation5 + %s368]]
        %v370 = vstv %s369
        %v371 = vmul.f32 %v357, %v370
        %373 = vrot.lane.b32.xlu0 %v371, 127
        %v374 = vpop.permute.xlu0 %373
        %v375 = vrot.slane %v374, 2
        %vm376 = vcmask 1039360
        %v377 = vsel %vm376, %v374, %v375
        %v379 = vadd.f32 %v361, %v377
        %s380 = sadd.s32 %s362, 2
        %s381 = smul.u32 %s380, 128
        %s382 = sadd.s32 %s381, %s367
        %s383 = sld [smem:[#allocation5 + %s382]]
        %v384 = vstv %s383
        %v385 = vmul.f32 %v357, %v384
        %387 = vrot.lane.b32.xlu0 %v385, 126
        %v388 = vpop.permute.xlu0 %387
        %v389 = vrot.slane %v388, 2
        %vm390 = vcmask 1031168
        %v391 = vsel %vm390, %v388, %v389
        %v393 = vadd.f32 %v379, %v391
        %s394 = sadd.s32 %s362, 3
        %s395 = smul.u32 %s394, 128
        %s396 = sadd.s32 %s395, %s367
        %s397 = sld [smem:[#allocation5 + %s396]]
        %v398 = vstv %s397
        %v399 = vmul.f32 %v357, %v398
        %401 = vrot.lane.b32.xlu0 %v399, 112
        %v402 = vpop.permute.xlu0 %401
        %v403 = vrot.slane %v402, 2
        %vm404 = vcmask 916480
        %v405 = vsel %vm404, %v402, %v403
        %v407 = vadd.f32 %v393, %v405
        %s408 = sadd.s32 %s362, 4
        %s409 = smul.u32 %s408, 128
        %s410 = sadd.s32 %s409, %s367
        %s411 = sld [smem:[#allocation5 + %s410]]
        %v412 = vstv %s411
        %v413 = vmul.f32 %v357, %v412
        %415 = vrot.lane.b32.xlu0 %v413, 111
        %v416 = vpop.permute.xlu0 %415
        %v417 = vrot.slane %v416, 2
        %vm418 = vcmask 908288
        %v419 = vsel %vm418, %v416, %v417
        %v421 = vadd.f32 %v407, %v419
        %s422 = sadd.s32 %s362, 5
        %s423 = smul.u32 %s422, 128
        %s424 = sadd.s32 %s423, %s367
        %s425 = sld [smem:[#allocation5 + %s424]]
        %v426 = vstv %s425
        %v427 = vmul.f32 %v357, %v426
        %429 = vrot.lane.b32.xlu0 %v427, 110
        %v430 = vpop.permute.xlu0 %429
        %v431 = vrot.slane %v430, 2
        %vm432 = vcmask 900096
        %v433 = vsel %vm432, %v430, %v431
        %v435 = vadd.f32 %v421, %v433
        %s436 = sadd.s32 %s362, 6
        %s437 = smul.u32 %s436, 128
        %s438 = sadd.s32 %s437, %s367
        %s439 = sld [smem:[#allocation5 + %s438]]
        %v440 = vstv %s439
        %v441 = vmul.f32 %v357, %v440
        %443 = vrot.lane.b32.xlu0 %v441, 96
        %v444 = vpop.permute.xlu0 %443
        %v445 = vrot.slane %v444, 2
        %vm446 = vcmask 785408
        %v447 = vsel %vm446, %v444, %v445
        %v449 = vadd.f32 %v435, %v447
        %s450 = sadd.s32 %s362, 7
        %s451 = smul.u32 %s450, 128
        %s452 = sadd.s32 %s451, %s367
        %s453 = sld [smem:[#allocation5 + %s452]]
        %v454 = vstv %s453
        %v455 = vmul.f32 %v357, %v454
        %457 = vrot.lane.b32.xlu0 %v455, 95
        %v458 = vpop.permute.xlu0 %457
        %v459 = vrot.slane %v458, 2
        %vm460 = vcmask 777216
        %v461 = vsel %vm460, %v458, %v459
        %v463 = vadd.f32 %v449, %v461
        %s464 = sadd.s32 %s362, 8
        %s465 = smul.u32 %s464, 128
        %s466 = sadd.s32 %s465, %s367
        %s467 = sld [smem:[#allocation5 + %s466]]
        %v468 = vstv %s467
        %v469 = vmul.f32 %v357, %v468
        %471 = vrot.lane.b32.xlu0 %v469, 94
        %v472 = vpop.permute.xlu0 %471
        %v473 = vrot.slane %v472, 2
        %vm474 = vcmask 769024
        %v475 = vsel %vm474, %v472, %v473
        %v477 = vadd.f32 %v463, %v475
        %s478 = sld [smem:[#allocation8 + %s358]]
        %v479 = vstv %s478
        %v480 = vadd.f32 %v477, %v479
        %v481 = vmax.f32 %v480, 0.0
        %483 = vst [vmem:[#allocation1] ss:$4 sm:$0xff] %v481
        %v484 = vld.sshfl [vmem:[#allocation1] sm:$0xff pattern:$0x73625140]
        %v485 = vld.sshfl [vmem:[#allocation1 + $0x8] sm:$0xff pattern:$0x73625140]
        %v488 = vpack.c.bf16 %v484, %v484
        %v489 = vpack.c.bf16 %v485, %v485
        %v490 = vld [vmem:[#allocation2] sm:$0x3]
        %v491 = vld [vmem:[%s309] sm:$0xf]
        %v492 = vld [vmem:[%s309 + $0x4] sm:$0xf]
        %v493 = vld [vmem:[%s309 + $0x8] sm:$0xf]
        %v494 = vld [vmem:[%s309 + $0xc] sm:$0xf]
        %v495 = vld [vmem:[%s309 + $0x10] sm:$0xf]
        %v496 = vld [vmem:[%s309 + $0x14] sm:$0xf]
        %v497 = vld [vmem:[%s309 + $0x18] sm:$0xf]
        %v498 = vld [vmem:[%s309 + $0x1c] sm:$0xf]
        %v499 = vld [vmem:[%s309 + $0x20] sm:$0xf]
        %v500 = vld [vmem:[%s309 + $0x24] sm:$0xf]
        %v501 = vld [vmem:[%s309 + $0x28] sm:$0xf]
        %v502 = vld [vmem:[%s309 + $0x2c] sm:$0xf]
        %v503 = vld [vmem:[%s309 + $0x30] sm:$0xf]
        %v504 = vld [vmem:[%s309 + $0x34] sm:$0xf]
        %v505 = vld [vmem:[%s309 + $0x38] sm:$0xf]
        %v506 = vld [vmem:[%s309 + $0x3c] sm:$0xf]
        %v507 = vld [vmem:[%s309 + $0x40] sm:$0xf]
        %v508 = vld [vmem:[%s309 + $0x44] sm:$0xf]
        %v509 = vld [vmem:[%s309 + $0x48] sm:$0xf]
        %v510 = vld [vmem:[%s309 + $0x4c] sm:$0xf]
        %v511 = vld [vmem:[%s309 + $0x50] sm:$0xf]
        %v512 = vld [vmem:[%s309 + $0x54] sm:$0xf]
        %v513 = vld [vmem:[%s309 + $0x58] sm:$0xf]
        %v514 = vld [vmem:[%s309 + $0x5c] sm:$0xf]
        %v515 = vld [vmem:[%s309 + $0x60] sm:$0xf]
        %v516 = vld [vmem:[%s309 + $0x64] sm:$0xf]
        %v517 = vld [vmem:[%s309 + $0x68] sm:$0xf]
        %v518 = vld [vmem:[%s309 + $0x6c] sm:$0xf]
        %v519 = vld [vmem:[%s309 + $0x70] sm:$0xf]
        %v520 = vld [vmem:[%s309 + $0x74] sm:$0xf]
        %v521 = vld [vmem:[%s309 + $0x78] sm:$0xf]
        %v522 = vld [vmem:[%s309 + $0x7c] sm:$0xf]
        %v555 = vunpack.c.l.b16 %v491
        %v556 = vunpack.c.l.b16 %v492
        %v557 = vunpack.c.l.b16 %v493
        %v558 = vunpack.c.l.b16 %v494
        %v559 = vunpack.c.l.b16 %v495
        %v560 = vunpack.c.l.b16 %v496
        %v561 = vunpack.c.l.b16 %v497
        %v562 = vunpack.c.l.b16 %v498
        %v563 = vunpack.c.l.b16 %v499
        %v564 = vunpack.c.l.b16 %v500
        %v565 = vunpack.c.l.b16 %v501
        %v566 = vunpack.c.l.b16 %v502
        %v567 = vunpack.c.l.b16 %v503
        %v568 = vunpack.c.l.b16 %v504
        %v569 = vunpack.c.l.b16 %v505
        %v570 = vunpack.c.l.b16 %v506
        %v571 = vunpack.c.l.b16 %v507
        %v572 = vunpack.c.l.b16 %v508
        %v573 = vunpack.c.l.b16 %v509
        %v574 = vunpack.c.l.b16 %v510
        %v575 = vunpack.c.l.b16 %v511
        %v576 = vunpack.c.l.b16 %v512
        %v577 = vunpack.c.l.b16 %v513
        %v578 = vunpack.c.l.b16 %v514
        %v579 = vunpack.c.l.b16 %v515
        %v580 = vunpack.c.l.b16 %v516
        %v581 = vunpack.c.l.b16 %v517
        %v582 = vunpack.c.l.b16 %v518
        %v583 = vunpack.c.l.b16 %v519
        %v584 = vunpack.c.l.b16 %v520
        %v585 = vunpack.c.l.b16 %v521
        %v586 = vunpack.c.l.b16 %v522
        %v587 = vpack.c.b16 %v556, %v555
        %v588 = vpack.c.b16 %v558, %v557
        %v589 = vpack.c.b16 %v560, %v559
        %v590 = vpack.c.b16 %v562, %v561
        %v591 = vpack.c.b16 %v564, %v563
        %v592 = vpack.c.b16 %v566, %v565
        %v593 = vpack.c.b16 %v568, %v567
        %v594 = vpack.c.b16 %v570, %v569
        %v595 = vpack.c.b16 %v572, %v571
        %v596 = vpack.c.b16 %v574, %v573
        %v597 = vpack.c.b16 %v576, %v575
        %v598 = vpack.c.b16 %v578, %v577
        %v599 = vpack.c.b16 %v580, %v579
        %v600 = vpack.c.b16 %v582, %v581
        %v601 = vpack.c.b16 %v584, %v583
        %v602 = vpack.c.b16 %v586, %v585
        %619 = vmatpush.bf16.msra.mxu0 %v594
        %620 = vmatpush.bf16.msra.mxu0 %v593
        %621 = vmatpush.bf16.msra.mxu0 %v592
        %622 = vmatpush.bf16.msra.mxu0 %v591
        %623 = vmatpush.bf16.msra.mxu0 %v590
        %624 = vmatpush.bf16.msra.mxu0 %v589
        %625 = vmatpush.bf16.msra.mxu0 %v588
        %626 = vmatpush.bf16.msra.mxu0 %v587
        %627 = vmatmul.bf16.gmra.mxu0 %v488
        %v628 = vpop.f32.mrf.mxu0
        %v629 = vadd.f32 0.0, %v628
        %v630 = vpop.f32.mrf.mxu0
        %631 = vdwg.mxu0
        %632 = vmatpush.bf16.msra.mxu0 %v602
        %633 = vmatpush.bf16.msra.mxu0 %v601
        %634 = vmatpush.bf16.msra.mxu0 %v600
        %635 = vmatpush.bf16.msra.mxu0 %v599
        %636 = vmatpush.bf16.msra.mxu0 %v598
        %637 = vmatpush.bf16.msra.mxu0 %v597
        %638 = vmatpush.bf16.msra.mxu0 %v596
        %639 = vmatpush.bf16.msra.mxu0 %v595
        %640 = vmatmul.bf16.gmra.mxu0 %v489
        %v641 = vpop.f32.mrf.mxu0
        %v642 = vadd.f32 %v629, %v641
        %v643 = vpop.f32.mrf.mxu0
        %644 = vdwg.mxu0
        %v645 = vadd.f32 %v490, %v642
        %646 = vst [vmem:[#allocation2] sm:$0x3] %v645
        %s647 = sadd.s32 %s358, 1
        %s648 = sld [smem:[#allocation5 + %s647]]
        %v649 = vstv %s648
        %v650 = vmul.f32 %v356, %v649
        %s651 = sshra.s32 %s647, 7
        %s652 = sand.u32 %s647, 127
        %s653 = sadd.s32 %s651, 1
        %s654 = smul.u32 %s653, 128
        %s655 = sshra.s32 %s647, 7
        %s656 = sand.u32 %s647, 127
        %s657 = sadd.s32 %s654, %s656
        %s658 = sld [smem:[#allocation5 + %s657]]
        %v659 = vstv %s658
        %v660 = vmul.f32 %v357, %v659
        %662 = vrot.lane.b32.xlu0 %v660, 127
        %v663 = vpop.permute.xlu0 %662
        %v664 = vrot.slane %v663, 2
        %v665 = vsel %vm376, %v663, %v664
        %v667 = vadd.f32 %v650, %v665
        %s668 = sadd.s32 %s651, 2
        %s669 = smul.u32 %s668, 128
        %s670 = sadd.s32 %s669, %s656
        %s671 = sld [smem:[#allocation5 + %s670]]
        %v672 = vstv %s671
        %v673 = vmul.f32 %v357, %v672
        %675 = vrot.lane.b32.xlu0 %v673, 126
        %v676 = vpop.permute.xlu0 %675
        %v677 = vrot.slane %v676, 2
        %v678 = vsel %vm390, %v676, %v677
        %v680 = vadd.f32 %v667, %v678
        %s681 = sadd.s32 %s651, 3
        %s682 = smul.u32 %s681, 128
        %s683 = sadd.s32 %s682, %s656
        %s684 = sld [smem:[#allocation5 + %s683]]
        %v685 = vstv %s684
        %v686 = vmul.f32 %v357, %v685
        %688 = vrot.lane.b32.xlu0 %v686, 112
        %v689 = vpop.permute.xlu0 %688
        %v690 = vrot.slane %v689, 2
        %v691 = vsel %vm404, %v689, %v690
        %v693 = vadd.f32 %v680, %v691
        %s694 = sadd.s32 %s651, 4
        %s695 = smul.u32 %s694, 128
        %s696 = sadd.s32 %s695, %s656
        %s697 = sld [smem:[#allocation5 + %s696]]
        %v698 = vstv %s697
        %v699 = vmul.f32 %v357, %v698
        %701 = vrot.lane.b32.xlu0 %v699, 111
        %v702 = vpop.permute.xlu0 %701
        %v703 = vrot.slane %v702, 2
        %v704 = vsel %vm418, %v702, %v703
        %v706 = vadd.f32 %v693, %v704
        %s707 = sadd.s32 %s651, 5
        %s708 = smul.u32 %s707, 128
        %s709 = sadd.s32 %s708, %s656
        %s710 = sld [smem:[#allocation5 + %s709]]
        %v711 = vstv %s710
        %v712 = vmul.f32 %v357, %v711
        %714 = vrot.lane.b32.xlu0 %v712, 110
        %v715 = vpop.permute.xlu0 %714
        %v716 = vrot.slane %v715, 2
        %v717 = vsel %vm432, %v715, %v716
        %v719 = vadd.f32 %v706, %v717
        %s720 = sadd.s32 %s651, 6
        %s721 = smul.u32 %s720, 128
        %s722 = sadd.s32 %s721, %s656
        %s723 = sld [smem:[#allocation5 + %s722]]
        %v724 = vstv %s723
        %v725 = vmul.f32 %v357, %v724
        %727 = vrot.lane.b32.xlu0 %v725, 96
        %v728 = vpop.permute.xlu0 %727
        %v729 = vrot.slane %v728, 2
        %v730 = vsel %vm446, %v728, %v729
        %v732 = vadd.f32 %v719, %v730
        %s733 = sadd.s32 %s651, 7
        %s734 = smul.u32 %s733, 128
        %s735 = sadd.s32 %s734, %s656
        %s736 = sld [smem:[#allocation5 + %s735]]
        %v737 = vstv %s736
        %v738 = vmul.f32 %v357, %v737
        %740 = vrot.lane.b32.xlu0 %v738, 95
        %v741 = vpop.permute.xlu0 %740
        %v742 = vrot.slane %v741, 2
        %v743 = vsel %vm460, %v741, %v742
        %v745 = vadd.f32 %v732, %v743
        %s746 = sadd.s32 %s651, 8
        %s747 = smul.u32 %s746, 128
        %s748 = sadd.s32 %s747, %s656
        %s749 = sld [smem:[#allocation5 + %s748]]
        %v750 = vstv %s749
        %v751 = vmul.f32 %v357, %v750
        %753 = vrot.lane.b32.xlu0 %v751, 94
        %v754 = vpop.permute.xlu0 %753
        %v755 = vrot.slane %v754, 2
        %v756 = vsel %vm474, %v754, %v755
        %v758 = vadd.f32 %v745, %v756
        %s759 = sld [smem:[#allocation8 + %s647]]
        %v760 = vstv %s759
        %v761 = vadd.f32 %v758, %v760
        %v762 = vmax.f32 %v761, 0.0
        %764 = vst [vmem:[#allocation1] ss:$4 sm:$0xff] %v762
        %v765 = vld.sshfl [vmem:[#allocation1] sm:$0xff pattern:$0x73625140]
        %v766 = vld.sshfl [vmem:[#allocation1 + $0x8] sm:$0xff pattern:$0x73625140]
        %v769 = vpack.c.bf16 %v765, %v765
        %v770 = vpack.c.bf16 %v766, %v766
        %v771 = vld [vmem:[#allocation2] sm:$0x3]
        %s772 = scalar_lea.vmem %s309, 128 [#allocation10]
        %v773 = vld [vmem:[%s772] sm:$0xf]
        %v774 = vld [vmem:[%s772 + $0x4] sm:$0xf]
        %v775 = vld [vmem:[%s772 + $0x8] sm:$0xf]
        %v776 = vld [vmem:[%s772 + $0xc] sm:$0xf]
        %v777 = vld [vmem:[%s772 + $0x10] sm:$0xf]
        %v778 = vld [vmem:[%s772 + $0x14] sm:$0xf]
        %v779 = vld [vmem:[%s772 + $0x18] sm:$0xf]
        %v780 = vld [vmem:[%s772 + $0x1c] sm:$0xf]
        %v781 = vld [vmem:[%s772 + $0x20] sm:$0xf]
        %v782 = vld [vmem:[%s772 + $0x24] sm:$0xf]
        %v783 = vld [vmem:[%s772 + $0x28] sm:$0xf]
        %v784 = vld [vmem:[%s772 + $0x2c] sm:$0xf]
        %v785 = vld [vmem:[%s772 + $0x30] sm:$0xf]
        %v786 = vld [vmem:[%s772 + $0x34] sm:$0xf]
        %v787 = vld [vmem:[%s772 + $0x38] sm:$0xf]
        %v788 = vld [vmem:[%s772 + $0x3c] sm:$0xf]
        %v789 = vld [vmem:[%s772 + $0x40] sm:$0xf]
        %v790 = vld [vmem:[%s772 + $0x44] sm:$0xf]
        %v791 = vld [vmem:[%s772 + $0x48] sm:$0xf]
        %v792 = vld [vmem:[%s772 + $0x4c] sm:$0xf]
        %v793 = vld [vmem:[%s772 + $0x50] sm:$0xf]
        %v794 = vld [vmem:[%s772 + $0x54] sm:$0xf]
        %v795 = vld [vmem:[%s772 + $0x58] sm:$0xf]
        %v796 = vld [vmem:[%s772 + $0x5c] sm:$0xf]
        %v797 = vld [vmem:[%s772 + $0x60] sm:$0xf]
        %v798 = vld [vmem:[%s772 + $0x64] sm:$0xf]
        %v799 = vld [vmem:[%s772 + $0x68] sm:$0xf]
        %v800 = vld [vmem:[%s772 + $0x6c] sm:$0xf]
        %v801 = vld [vmem:[%s772 + $0x70] sm:$0xf]
        %v802 = vld [vmem:[%s772 + $0x74] sm:$0xf]
        %v803 = vld [vmem:[%s772 + $0x78] sm:$0xf]
        %v804 = vld [vmem:[%s772 + $0x7c] sm:$0xf]
        %v837 = vunpack.c.l.b16 %v773
        %v838 = vunpack.c.l.b16 %v774
        %v839 = vunpack.c.l.b16 %v775
        %v840 = vunpack.c.l.b16 %v776
        %v841 = vunpack.c.l.b16 %v777
        %v842 = vunpack.c.l.b16 %v778
        %v843 = vunpack.c.l.b16 %v779
        %v844 = vunpack.c.l.b16 %v780
        %v845 = vunpack.c.l.b16 %v781
        %v846 = vunpack.c.l.b16 %v782
        %v847 = vunpack.c.l.b16 %v783
        %v848 = vunpack.c.l.b16 %v784
        %v849 = vunpack.c.l.b16 %v785
        %v850 = vunpack.c.l.b16 %v786
        %v851 = vunpack.c.l.b16 %v787
        %v852 = vunpack.c.l.b16 %v788
        %v853 = vunpack.c.l.b16 %v789
        %v854 = vunpack.c.l.b16 %v790
        %v855 = vunpack.c.l.b16 %v791
        %v856 = vunpack.c.l.b16 %v792
        %v857 = vunpack.c.l.b16 %v793
        %v858 = vunpack.c.l.b16 %v794
        %v859 = vunpack.c.l.b16 %v795
        %v860 = vunpack.c.l.b16 %v796
        %v861 = vunpack.c.l.b16 %v797
        %v862 = vunpack.c.l.b16 %v798
        %v863 = vunpack.c.l.b16 %v799
        %v864 = vunpack.c.l.b16 %v800
        %v865 = vunpack.c.l.b16 %v801
        %v866 = vunpack.c.l.b16 %v802
        %v867 = vunpack.c.l.b16 %v803
        %v868 = vunpack.c.l.b16 %v804
        %v869 = vpack.c.b16 %v838, %v837
        %v870 = vpack.c.b16 %v840, %v839
        %v871 = vpack.c.b16 %v842, %v841
        %v872 = vpack.c.b16 %v844, %v843
        %v873 = vpack.c.b16 %v846, %v845
        %v874 = vpack.c.b16 %v848, %v847
        %v875 = vpack.c.b16 %v850, %v849
        %v876 = vpack.c.b16 %v852, %v851
        %v877 = vpack.c.b16 %v854, %v853
        %v878 = vpack.c.b16 %v856, %v855
        %v879 = vpack.c.b16 %v858, %v857
        %v880 = vpack.c.b16 %v860, %v859
        %v881 = vpack.c.b16 %v862, %v861
        %v882 = vpack.c.b16 %v864, %v863
        %v883 = vpack.c.b16 %v866, %v865
        %v884 = vpack.c.b16 %v868, %v867
        %901 = vmatpush.bf16.msra.mxu0 %v876
        %902 = vmatpush.bf16.msra.mxu0 %v875
        %903 = vmatpush.bf16.msra.mxu0 %v874
        %904 = vmatpush.bf16.msra.mxu0 %v873
        %905 = vmatpush.bf16.msra.mxu0 %v872
        %906 = vmatpush.bf16.msra.mxu0 %v871
        %907 = vmatpush.bf16.msra.mxu0 %v870
        %908 = vmatpush.bf16.msra.mxu0 %v869
        %909 = vmatmul.bf16.gmra.mxu0 %v769
        %v910 = vpop.f32.mrf.mxu0
        %v911 = vadd.f32 0.0, %v910
        %v912 = vpop.f32.mrf.mxu0
        %913 = vdwg.mxu0
        %914 = vmatpush.bf16.msra.mxu0 %v884
        %915 = vmatpush.bf16.msra.mxu0 %v883
        %916 = vmatpush.bf16.msra.mxu0 %v882
        %917 = vmatpush.bf16.msra.mxu0 %v881
        %918 = vmatpush.bf16.msra.mxu0 %v880
        %919 = vmatpush.bf16.msra.mxu0 %v879
        %920 = vmatpush.bf16.msra.mxu0 %v878
        %921 = vmatpush.bf16.msra.mxu0 %v877
        %922 = vmatmul.bf16.gmra.mxu0 %v770
        %v923 = vpop.f32.mrf.mxu0
        %v924 = vadd.f32 %v911, %v923
        %v925 = vpop.f32.mrf.mxu0
        %926 = vdwg.mxu0
        %v927 = vadd.f32 %v771, %v924
        %928 = vst [vmem:[#allocation2] sm:$0x3] %v927
        %s929 = sadd.s32 %s358, 2
        %s930 = sld [smem:[#allocation5 + %s929]]
        %v931 = vstv %s930
        %v932 = vmul.f32 %v356, %v931
        %s933 = sshra.s32 %s929, 7
        %s934 = sand.u32 %s929, 127
        %s935 = sadd.s32 %s933, 1
        %s936 = smul.u32 %s935, 128
        %s937 = sshra.s32 %s929, 7
        %s938 = sand.u32 %s929, 127
        %s939 = sadd.s32 %s936, %s938
        %s940 = sld [smem:[#allocation5 + %s939]]
        %v941 = vstv %s940
        %v942 = vmul.f32 %v357, %v941
        %944 = vrot.lane.b32.xlu0 %v942, 127
        %v945 = vpop.permute.xlu0 %944
        %v946 = vrot.slane %v945, 2
        %v947 = vsel %vm376, %v945, %v946
        %v949 = vadd.f32 %v932, %v947
        %s950 = sadd.s32 %s933, 2
        %s951 = smul.u32 %s950, 128
        %s952 = sadd.s32 %s951, %s938
        %s953 = sld [smem:[#allocation5 + %s952]]
        %v954 = vstv %s953
        %v955 = vmul.f32 %v357, %v954
        %957 = vrot.lane.b32.xlu0 %v955, 126
        %v958 = vpop.permute.xlu0 %957
        %v959 = vrot.slane %v958, 2
        %v960 = vsel %vm390, %v958, %v959
        %v962 = vadd.f32 %v949, %v960
        %s963 = sadd.s32 %s933, 3
        %s964 = smul.u32 %s963, 128
        %s965 = sadd.s32 %s964, %s938
        %s966 = sld [smem:[#allocation5 + %s965]]
        %v967 = vstv %s966
        %v968 = vmul.f32 %v357, %v967
        %970 = vrot.lane.b32.xlu0 %v968, 112
        %v971 = vpop.permute.xlu0 %970
        %v972 = vrot.slane %v971, 2
        %v973 = vsel %vm404, %v971, %v972
        %v975 = vadd.f32 %v962, %v973
        %s976 = sadd.s32 %s933, 4
        %s977 = smul.u32 %s976, 128
        %s978 = sadd.s32 %s977, %s938
        %s979 = sld [smem:[#allocation5 + %s978]]
        %v980 = vstv %s979
        %v981 = vmul.f32 %v357, %v980
        %983 = vrot.lane.b32.xlu0 %v981, 111
        %v984 = vpop.permute.xlu0 %983
        %v985 = vrot.slane %v984, 2
        %v986 = vsel %vm418, %v984, %v985
        %v988 = vadd.f32 %v975, %v986
        %s989 = sadd.s32 %s933, 5
        %s990 = smul.u32 %s989, 128
        %s991 = sadd.s32 %s990, %s938
        %s992 = sld [smem:[#allocation5 + %s991]]
        %v993 = vstv %s992
        %v994 = vmul.f32 %v357, %v993
        %996 = vrot.lane.b32.xlu0 %v994, 110
        %v997 = vpop.permute.xlu0 %996
        %v998 = vrot.slane %v997, 2
        %v999 = vsel %vm432, %v997, %v998
        %v1001 = vadd.f32 %v988, %v999
        %s1002 = sadd.s32 %s933, 6
        %s1003 = smul.u32 %s1002, 128
        %s1004 = sadd.s32 %s1003, %s938
        %s1005 = sld [smem:[#allocation5 + %s1004]]
        %v1006 = vstv %s1005
        %v1007 = vmul.f32 %v357, %v1006
        %1009 = vrot.lane.b32.xlu0 %v1007, 96
        %v1010 = vpop.permute.xlu0 %1009
        %v1011 = vrot.slane %v1010, 2
        %v1012 = vsel %vm446, %v1010, %v1011
        %v1014 = vadd.f32 %v1001, %v1012
        %s1015 = sadd.s32 %s933, 7
        %s1016 = smul.u32 %s1015, 128
        %s1017 = sadd.s32 %s1016, %s938
        %s1018 = sld [smem:[#allocation5 + %s1017]]
        %v1019 = vstv %s1018
        %v1020 = vmul.f32 %v357, %v1019
        %1022 = vrot.lane.b32.xlu0 %v1020, 95
        %v1023 = vpop.permute.xlu0 %1022
        %v1024 = vrot.slane %v1023, 2
        %v1025 = vsel %vm460, %v1023, %v1024
        %v1027 = vadd.f32 %v1014, %v1025
        %s1028 = sadd.s32 %s933, 8
        %s1029 = smul.u32 %s1028, 128
        %s1030 = sadd.s32 %s1029, %s938
        %s1031 = sld [smem:[#allocation5 + %s1030]]
        %v1032 = vstv %s1031
        %v1033 = vmul.f32 %v357, %v1032
        %1035 = vrot.lane.b32.xlu0 %v1033, 94
        %v1036 = vpop.permute.xlu0 %1035
        %v1037 = vrot.slane %v1036, 2
        %v1038 = vsel %vm474, %v1036, %v1037
        %v1040 = vadd.f32 %v1027, %v1038
        %s1041 = sld [smem:[#allocation8 + %s929]]
        %v1042 = vstv %s1041
        %v1043 = vadd.f32 %v1040, %v1042
        %v1044 = vmax.f32 %v1043, 0.0
        %1046 = vst [vmem:[#allocation1] ss:$4 sm:$0xff] %v1044
        %v1047 = vld.sshfl [vmem:[#allocation1] sm:$0xff pattern:$0x73625140]
        %v1048 = vld.sshfl [vmem:[#allocation1 + $0x8] sm:$0xff pattern:$0x73625140]
        %v1051 = vpack.c.bf16 %v1047, %v1047
        %v1052 = vpack.c.bf16 %v1048, %v1048
        %v1053 = vld [vmem:[#allocation2] sm:$0x3]
        %s1054 = scalar_lea.vmem %s309, 256 [#allocation10]
        %v1055 = vld [vmem:[%s1054] sm:$0xf]
        %v1056 = vld [vmem:[%s1054 + $0x4] sm:$0xf]
        %v1057 = vld [vmem:[%s1054 + $0x8] sm:$0xf]
        %v1058 = vld [vmem:[%s1054 + $0xc] sm:$0xf]
        %v1059 = vld [vmem:[%s1054 + $0x10] sm:$0xf]
        %v1060 = vld [vmem:[%s1054 + $0x14] sm:$0xf]
        %v1061 = vld [vmem:[%s1054 + $0x18] sm:$0xf]
        %v1062 = vld [vmem:[%s1054 + $0x1c] sm:$0xf]
        %v1063 = vld [vmem:[%s1054 + $0x20] sm:$0xf]
        %v1064 = vld [vmem:[%s1054 + $0x24] sm:$0xf]
        %v1065 = vld [vmem:[%s1054 + $0x28] sm:$0xf]
        %v1066 = vld [vmem:[%s1054 + $0x2c] sm:$0xf]
        %v1067 = vld [vmem:[%s1054 + $0x30] sm:$0xf]
        %v1068 = vld [vmem:[%s1054 + $0x34] sm:$0xf]
        %v1069 = vld [vmem:[%s1054 + $0x38] sm:$0xf]
        %v1070 = vld [vmem:[%s1054 + $0x3c] sm:$0xf]
        %v1071 = vld [vmem:[%s1054 + $0x40] sm:$0xf]
        %v1072 = vld [vmem:[%s1054 + $0x44] sm:$0xf]
        %v1073 = vld [vmem:[%s1054 + $0x48] sm:$0xf]
        %v1074 = vld [vmem:[%s1054 + $0x4c] sm:$0xf]
        %v1075 = vld [vmem:[%s1054 + $0x50] sm:$0xf]
        %v1076 = vld [vmem:[%s1054 + $0x54] sm:$0xf]
        %v1077 = vld [vmem:[%s1054 + $0x58] sm:$0xf]
        %v1078 = vld [vmem:[%s1054 + $0x5c] sm:$0xf]
        %v1079 = vld [vmem:[%s1054 + $0x60] sm:$0xf]
        %v1080 = vld [vmem:[%s1054 + $0x64] sm:$0xf]
        %v1081 = vld [vmem:[%s1054 + $0x68] sm:$0xf]
        %v1082 = vld [vmem:[%s1054 + $0x6c] sm:$0xf]
        %v1083 = vld [vmem:[%s1054 + $0x70] sm:$0xf]
        %v1084 = vld [vmem:[%s1054 + $0x74] sm:$0xf]
        %v1085 = vld [vmem:[%s1054 + $0x78] sm:$0xf]
        %v1086 = vld [vmem:[%s1054 + $0x7c] sm:$0xf]
        %v1119 = vunpack.c.l.b16 %v1055
        %v1120 = vunpack.c.l.b16 %v1056
        %v1121 = vunpack.c.l.b16 %v1057
        %v1122 = vunpack.c.l.b16 %v1058
        %v1123 = vunpack.c.l.b16 %v1059
        %v1124 = vunpack.c.l.b16 %v1060
        %v1125 = vunpack.c.l.b16 %v1061
        %v1126 = vunpack.c.l.b16 %v1062
        %v1127 = vunpack.c.l.b16 %v1063
        %v1128 = vunpack.c.l.b16 %v1064
        %v1129 = vunpack.c.l.b16 %v1065
        %v1130 = vunpack.c.l.b16 %v1066
        %v1131 = vunpack.c.l.b16 %v1067
        %v1132 = vunpack.c.l.b16 %v1068
        %v1133 = vunpack.c.l.b16 %v1069
        %v1134 = vunpack.c.l.b16 %v1070
        %v1135 = vunpack.c.l.b16 %v1071
        %v1136 = vunpack.c.l.b16 %v1072
        %v1137 = vunpack.c.l.b16 %v1073
        %v1138 = vunpack.c.l.b16 %v1074
        %v1139 = vunpack.c.l.b16 %v1075
        %v1140 = vunpack.c.l.b16 %v1076
        %v1141 = vunpack.c.l.b16 %v1077
        %v1142 = vunpack.c.l.b16 %v1078
        %v1143 = vunpack.c.l.b16 %v1079
        %v1144 = vunpack.c.l.b16 %v1080
        %v1145 = vunpack.c.l.b16 %v1081
        %v1146 = vunpack.c.l.b16 %v1082
        %v1147 = vunpack.c.l.b16 %v1083
        %v1148 = vunpack.c.l.b16 %v1084
        %v1149 = vunpack.c.l.b16 %v1085
        %v1150 = vunpack.c.l.b16 %v1086
        %v1151 = vpack.c.b16 %v1120, %v1119
        %v1152 = vpack.c.b16 %v1122, %v1121
        %v1153 = vpack.c.b16 %v1124, %v1123
        %v1154 = vpack.c.b16 %v1126, %v1125
        %v1155 = vpack.c.b16 %v1128, %v1127
        %v1156 = vpack.c.b16 %v1130, %v1129
        %v1157 = vpack.c.b16 %v1132, %v1131
        %v1158 = vpack.c.b16 %v1134, %v1133
        %v1159 = vpack.c.b16 %v1136, %v1135
        %v1160 = vpack.c.b16 %v1138, %v1137
        %v1161 = vpack.c.b16 %v1140, %v1139
        %v1162 = vpack.c.b16 %v1142, %v1141
        %v1163 = vpack.c.b16 %v1144, %v1143
        %v1164 = vpack.c.b16 %v1146, %v1145
        %v1165 = vpack.c.b16 %v1148, %v1147
        %v1166 = vpack.c.b16 %v1150, %v1149
        %1183 = vmatpush.bf16.msra.mxu0 %v1158
        %1184 = vmatpush.bf16.msra.mxu0 %v1157
        %1185 = vmatpush.bf16.msra.mxu0 %v1156
        %1186 = vmatpush.bf16.msra.mxu0 %v1155
        %1187 = vmatpush.bf16.msra.mxu0 %v1154
        %1188 = vmatpush.bf16.msra.mxu0 %v1153
        %1189 = vmatpush.bf16.msra.mxu0 %v1152
        %1190 = vmatpush.bf16.msra.mxu0 %v1151
        %1191 = vmatmul.bf16.gmra.mxu0 %v1051
        %v1192 = vpop.f32.mrf.mxu0
        %v1193 = vadd.f32 0.0, %v1192
        %v1194 = vpop.f32.mrf.mxu0
        %1195 = vdwg.mxu0
        %1196 = vmatpush.bf16.msra.mxu0 %v1166
        %1197 = vmatpush.bf16.msra.mxu0 %v1165
        %1198 = vmatpush.bf16.msra.mxu0 %v1164
        %1199 = vmatpush.bf16.msra.mxu0 %v1163
        %1200 = vmatpush.bf16.msra.mxu0 %v1162
        %1201 = vmatpush.bf16.msra.mxu0 %v1161
        %1202 = vmatpush.bf16.msra.mxu0 %v1160
        %1203 = vmatpush.bf16.msra.mxu0 %v1159
        %1204 = vmatmul.bf16.gmra.mxu0 %v1052
        %v1205 = vpop.f32.mrf.mxu0
        %v1206 = vadd.f32 %v1193, %v1205
        %v1207 = vpop.f32.mrf.mxu0
        %1208 = vdwg.mxu0
        %v1209 = vadd.f32 %v1053, %v1206
        %1210 = vst [vmem:[#allocation2] sm:$0x3] %v1209
        %s1211 = sadd.s32 %s358, 3
        %s1212 = sld [smem:[#allocation5 + %s1211]]
        %v1213 = vstv %s1212
        %v1214 = vmul.f32 %v356, %v1213
        %s1215 = sshra.s32 %s1211, 7
        %s1216 = sand.u32 %s1211, 127
        %s1217 = sadd.s32 %s1215, 1
        %s1218 = smul.u32 %s1217, 128
        %s1219 = sshra.s32 %s1211, 7
        %s1220 = sand.u32 %s1211, 127
        %s1221 = sadd.s32 %s1218, %s1220
        %s1222 = sld [smem:[#allocation5 + %s1221]]
        %v1223 = vstv %s1222
        %v1224 = vmul.f32 %v357, %v1223
        %1226 = vrot.lane.b32.xlu0 %v1224, 127
        %v1227 = vpop.permute.xlu0 %1226
        %v1228 = vrot.slane %v1227, 2
        %v1229 = vsel %vm376, %v1227, %v1228
        %v1231 = vadd.f32 %v1214, %v1229
        %s1232 = sadd.s32 %s1215, 2
        %s1233 = smul.u32 %s1232, 128
        %s1234 = sadd.s32 %s1233, %s1220
        %s1235 = sld [smem:[#allocation5 + %s1234]]
        %v1236 = vstv %s1235
        %v1237 = vmul.f32 %v357, %v1236
        %1239 = vrot.lane.b32.xlu0 %v1237, 126
        %v1240 = vpop.permute.xlu0 %1239
        %v1241 = vrot.slane %v1240, 2
        %v1242 = vsel %vm390, %v1240, %v1241
        %v1244 = vadd.f32 %v1231, %v1242
        %s1245 = sadd.s32 %s1215, 3
        %s1246 = smul.u32 %s1245, 128
        %s1247 = sadd.s32 %s1246, %s1220
        %s1248 = sld [smem:[#allocation5 + %s1247]]
        %v1249 = vstv %s1248
        %v1250 = vmul.f32 %v357, %v1249
        %1252 = vrot.lane.b32.xlu0 %v1250, 112
        %v1253 = vpop.permute.xlu0 %1252
        %v1254 = vrot.slane %v1253, 2
        %v1255 = vsel %vm404, %v1253, %v1254
        %v1257 = vadd.f32 %v1244, %v1255
        %s1258 = sadd.s32 %s1215, 4
        %s1259 = smul.u32 %s1258, 128
        %s1260 = sadd.s32 %s1259, %s1220
        %s1261 = sld [smem:[#allocation5 + %s1260]]
        %v1262 = vstv %s1261
        %v1263 = vmul.f32 %v357, %v1262
        %1265 = vrot.lane.b32.xlu0 %v1263, 111
        %v1266 = vpop.permute.xlu0 %1265
        %v1267 = vrot.slane %v1266, 2
        %v1268 = vsel %vm418, %v1266, %v1267
        %v1270 = vadd.f32 %v1257, %v1268
        %s1271 = sadd.s32 %s1215, 5
        %s1272 = smul.u32 %s1271, 128
        %s1273 = sadd.s32 %s1272, %s1220
        %s1274 = sld [smem:[#allocation5 + %s1273]]
        %v1275 = vstv %s1274
        %v1276 = vmul.f32 %v357, %v1275
        %1278 = vrot.lane.b32.xlu0 %v1276, 110
        %v1279 = vpop.permute.xlu0 %1278
        %v1280 = vrot.slane %v1279, 2
        %v1281 = vsel %vm432, %v1279, %v1280
        %v1283 = vadd.f32 %v1270, %v1281
        %s1284 = sadd.s32 %s1215, 6
        %s1285 = smul.u32 %s1284, 128
        %s1286 = sadd.s32 %s1285, %s1220
        %s1287 = sld [smem:[#allocation5 + %s1286]]
        %v1288 = vstv %s1287
        %v1289 = vmul.f32 %v357, %v1288
        %1291 = vrot.lane.b32.xlu0 %v1289, 96
        %v1292 = vpop.permute.xlu0 %1291
        %v1293 = vrot.slane %v1292, 2
        %v1294 = vsel %vm446, %v1292, %v1293
        %v1296 = vadd.f32 %v1283, %v1294
        %s1297 = sadd.s32 %s1215, 7
        %s1298 = smul.u32 %s1297, 128
        %s1299 = sadd.s32 %s1298, %s1220
        %s1300 = sld [smem:[#allocation5 + %s1299]]
        %v1301 = vstv %s1300
        %v1302 = vmul.f32 %v357, %v1301
        %1304 = vrot.lane.b32.xlu0 %v1302, 95
        %v1305 = vpop.permute.xlu0 %1304
        %v1306 = vrot.slane %v1305, 2
        %v1307 = vsel %vm460, %v1305, %v1306
        %v1309 = vadd.f32 %v1296, %v1307
        %s1310 = sadd.s32 %s1215, 8
        %s1311 = smul.u32 %s1310, 128
        %s1312 = sadd.s32 %s1311, %s1220
        %s1313 = sld [smem:[#allocation5 + %s1312]]
        %v1314 = vstv %s1313
        %v1315 = vmul.f32 %v357, %v1314
        %1317 = vrot.lane.b32.xlu0 %v1315, 94
        %v1318 = vpop.permute.xlu0 %1317
        %v1319 = vrot.slane %v1318, 2
        %v1320 = vsel %vm474, %v1318, %v1319
        %v1322 = vadd.f32 %v1309, %v1320
        %s1323 = sld [smem:[#allocation8 + %s1211]]
        %v1324 = vstv %s1323
        %v1325 = vadd.f32 %v1322, %v1324
        %v1326 = vmax.f32 %v1325, 0.0
        %1328 = vst [vmem:[#allocation1] ss:$4 sm:$0xff] %v1326
        %v1329 = vld.sshfl [vmem:[#allocation1] sm:$0xff pattern:$0x73625140]
        %v1330 = vld.sshfl [vmem:[#allocation1 + $0x8] sm:$0xff pattern:$0x73625140]
        %v1333 = vpack.c.bf16 %v1329, %v1329
        %v1334 = vpack.c.bf16 %v1330, %v1330
        %v1335 = vld [vmem:[#allocation2] sm:$0x3]
        %s1336 = scalar_lea.vmem %s309, 384 [#allocation10]
        %v1337 = vld [vmem:[%s1336] sm:$0xf]
        %v1338 = vld [vmem:[%s1336 + $0x4] sm:$0xf]
        %v1339 = vld [vmem:[%s1336 + $0x8] sm:$0xf]
        %v1340 = vld [vmem:[%s1336 + $0xc] sm:$0xf]
        %v1341 = vld [vmem:[%s1336 + $0x10] sm:$0xf]
        %v1342 = vld [vmem:[%s1336 + $0x14] sm:$0xf]
        %v1343 = vld [vmem:[%s1336 + $0x18] sm:$0xf]
        %v1344 = vld [vmem:[%s1336 + $0x1c] sm:$0xf]
        %v1345 = vld [vmem:[%s1336 + $0x20] sm:$0xf]
        %v1346 = vld [vmem:[%s1336 + $0x24] sm:$0xf]
        %v1347 = vld [vmem:[%s1336 + $0x28] sm:$0xf]
        %v1348 = vld [vmem:[%s1336 + $0x2c] sm:$0xf]
        %v1349 = vld [vmem:[%s1336 + $0x30] sm:$0xf]
        %v1350 = vld [vmem:[%s1336 + $0x34] sm:$0xf]
        %v1351 = vld [vmem:[%s1336 + $0x38] sm:$0xf]
        %v1352 = vld [vmem:[%s1336 + $0x3c] sm:$0xf]
        %v1353 = vld [vmem:[%s1336 + $0x40] sm:$0xf]
        %v1354 = vld [vmem:[%s1336 + $0x44] sm:$0xf]
        %v1355 = vld [vmem:[%s1336 + $0x48] sm:$0xf]
        %v1356 = vld [vmem:[%s1336 + $0x4c] sm:$0xf]
        %v1357 = vld [vmem:[%s1336 + $0x50] sm:$0xf]
        %v1358 = vld [vmem:[%s1336 + $0x54] sm:$0xf]
        %v1359 = vld [vmem:[%s1336 + $0x58] sm:$0xf]
        %v1360 = vld [vmem:[%s1336 + $0x5c] sm:$0xf]
        %v1361 = vld [vmem:[%s1336 + $0x60] sm:$0xf]
        %v1362 = vld [vmem:[%s1336 + $0x64] sm:$0xf]
        %v1363 = vld [vmem:[%s1336 + $0x68] sm:$0xf]
        %v1364 = vld [vmem:[%s1336 + $0x6c] sm:$0xf]
        %v1365 = vld [vmem:[%s1336 + $0x70] sm:$0xf]
        %v1366 = vld [vmem:[%s1336 + $0x74] sm:$0xf]
        %v1367 = vld [vmem:[%s1336 + $0x78] sm:$0xf]
        %v1368 = vld [vmem:[%s1336 + $0x7c] sm:$0xf]
        %v1401 = vunpack.c.l.b16 %v1337
        %v1402 = vunpack.c.l.b16 %v1338
        %v1403 = vunpack.c.l.b16 %v1339
        %v1404 = vunpack.c.l.b16 %v1340
        %v1405 = vunpack.c.l.b16 %v1341
        %v1406 = vunpack.c.l.b16 %v1342
        %v1407 = vunpack.c.l.b16 %v1343
        %v1408 = vunpack.c.l.b16 %v1344
        %v1409 = vunpack.c.l.b16 %v1345
        %v1410 = vunpack.c.l.b16 %v1346
        %v1411 = vunpack.c.l.b16 %v1347
        %v1412 = vunpack.c.l.b16 %v1348
        %v1413 = vunpack.c.l.b16 %v1349
        %v1414 = vunpack.c.l.b16 %v1350
        %v1415 = vunpack.c.l.b16 %v1351
        %v1416 = vunpack.c.l.b16 %v1352
        %v1417 = vunpack.c.l.b16 %v1353
        %v1418 = vunpack.c.l.b16 %v1354
        %v1419 = vunpack.c.l.b16 %v1355
        %v1420 = vunpack.c.l.b16 %v1356
        %v1421 = vunpack.c.l.b16 %v1357
        %v1422 = vunpack.c.l.b16 %v1358
        %v1423 = vunpack.c.l.b16 %v1359
        %v1424 = vunpack.c.l.b16 %v1360
        %v1425 = vunpack.c.l.b16 %v1361
        %v1426 = vunpack.c.l.b16 %v1362
        %v1427 = vunpack.c.l.b16 %v1363
        %v1428 = vunpack.c.l.b16 %v1364
        %v1429 = vunpack.c.l.b16 %v1365
        %v1430 = vunpack.c.l.b16 %v1366
        %v1431 = vunpack.c.l.b16 %v1367
        %v1432 = vunpack.c.l.b16 %v1368
        %v1433 = vpack.c.b16 %v1402, %v1401
        %v1434 = vpack.c.b16 %v1404, %v1403
        %v1435 = vpack.c.b16 %v1406, %v1405
        %v1436 = vpack.c.b16 %v1408, %v1407
        %v1437 = vpack.c.b16 %v1410, %v1409
        %v1438 = vpack.c.b16 %v1412, %v1411
        %v1439 = vpack.c.b16 %v1414, %v1413
        %v1440 = vpack.c.b16 %v1416, %v1415
        %v1441 = vpack.c.b16 %v1418, %v1417
        %v1442 = vpack.c.b16 %v1420, %v1419
        %v1443 = vpack.c.b16 %v1422, %v1421
        %v1444 = vpack.c.b16 %v1424, %v1423
        %v1445 = vpack.c.b16 %v1426, %v1425
        %v1446 = vpack.c.b16 %v1428, %v1427
        %v1447 = vpack.c.b16 %v1430, %v1429
        %v1448 = vpack.c.b16 %v1432, %v1431
        %1465 = vmatpush.bf16.msra.mxu0 %v1440
        %1466 = vmatpush.bf16.msra.mxu0 %v1439
        %1467 = vmatpush.bf16.msra.mxu0 %v1438
        %1468 = vmatpush.bf16.msra.mxu0 %v1437
        %1469 = vmatpush.bf16.msra.mxu0 %v1436
        %1470 = vmatpush.bf16.msra.mxu0 %v1435
        %1471 = vmatpush.bf16.msra.mxu0 %v1434
        %1472 = vmatpush.bf16.msra.mxu0 %v1433
        %1473 = vmatmul.bf16.gmra.mxu0 %v1333
        %v1474 = vpop.f32.mrf.mxu0
        %v1475 = vadd.f32 0.0, %v1474
        %v1476 = vpop.f32.mrf.mxu0
        %1477 = vdwg.mxu0
        %1478 = vmatpush.bf16.msra.mxu0 %v1448
        %1479 = vmatpush.bf16.msra.mxu0 %v1447
        %1480 = vmatpush.bf16.msra.mxu0 %v1446
        %1481 = vmatpush.bf16.msra.mxu0 %v1445
        %1482 = vmatpush.bf16.msra.mxu0 %v1444
        %1483 = vmatpush.bf16.msra.mxu0 %v1443
        %1484 = vmatpush.bf16.msra.mxu0 %v1442
        %1485 = vmatpush.bf16.msra.mxu0 %v1441
        %1486 = vmatmul.bf16.gmra.mxu0 %v1334
        %v1487 = vpop.f32.mrf.mxu0
        %v1488 = vadd.f32 %v1475, %v1487
        %v1489 = vpop.f32.mrf.mxu0
        %1490 = vdwg.mxu0
        %v1491 = vadd.f32 %v1335, %v1488
        %1492 = vst [vmem:[#allocation2] sm:$0x3] %v1491
        %s1493 = sadd.s32 %s358, 4
        %s1494 = sld [smem:[#allocation5 + %s1493]]
        %v1495 = vstv %s1494
        %v1496 = vmul.f32 %v356, %v1495
        %s1497 = sshra.s32 %s1493, 7
        %s1498 = sand.u32 %s1493, 127
        %s1499 = sadd.s32 %s1497, 1
        %s1500 = smul.u32 %s1499, 128
        %s1501 = sshra.s32 %s1493, 7
        %s1502 = sand.u32 %s1493, 127
        %s1503 = sadd.s32 %s1500, %s1502
        %s1504 = sld [smem:[#allocation5 + %s1503]]
        %v1505 = vstv %s1504
        %v1506 = vmul.f32 %v357, %v1505
        %1508 = vrot.lane.b32.xlu0 %v1506, 127
        %v1509 = vpop.permute.xlu0 %1508
        %v1510 = vrot.slane %v1509, 2
        %v1511 = vsel %vm376, %v1509, %v1510
        %v1513 = vadd.f32 %v1496, %v1511
        %s1514 = sadd.s32 %s1497, 2
        %s1515 = smul.u32 %s1514, 128
        %s1516 = sadd.s32 %s1515, %s1502
        %s1517 = sld [smem:[#allocation5 + %s1516]]
        %v1518 = vstv %s1517
        %v1519 = vmul.f32 %v357, %v1518
        %1521 = vrot.lane.b32.xlu0 %v1519, 126
        %v1522 = vpop.permute.xlu0 %1521
        %v1523 = vrot.slane %v1522, 2
        %v1524 = vsel %vm390, %v1522, %v1523
        %v1526 = vadd.f32 %v1513, %v1524
        %s1527 = sadd.s32 %s1497, 3
        %s1528 = smul.u32 %s1527, 128
        %s1529 = sadd.s32 %s1528, %s1502
        %s1530 = sld [smem:[#allocation5 + %s1529]]
        %v1531 = vstv %s1530
        %v1532 = vmul.f32 %v357, %v1531
        %1534 = vrot.lane.b32.xlu0 %v1532, 112
        %v1535 = vpop.permute.xlu0 %1534
        %v1536 = vrot.slane %v1535, 2
        %v1537 = vsel %vm404, %v1535, %v1536
        %v1539 = vadd.f32 %v1526, %v1537
        %s1540 = sadd.s32 %s1497, 4
        %s1541 = smul.u32 %s1540, 128
        %s1542 = sadd.s32 %s1541, %s1502
        %s1543 = sld [smem:[#allocation5 + %s1542]]
        %v1544 = vstv %s1543
        %v1545 = vmul.f32 %v357, %v1544
        %1547 = vrot.lane.b32.xlu0 %v1545, 111
        %v1548 = vpop.permute.xlu0 %1547
        %v1549 = vrot.slane %v1548, 2
        %v1550 = vsel %vm418, %v1548, %v1549
        %v1552 = vadd.f32 %v1539, %v1550
        %s1553 = sadd.s32 %s1497, 5
        %s1554 = smul.u32 %s1553, 128
        %s1555 = sadd.s32 %s1554, %s1502
        %s1556 = sld [smem:[#allocation5 + %s1555]]
        %v1557 = vstv %s1556
        %v1558 = vmul.f32 %v357, %v1557
        %1560 = vrot.lane.b32.xlu0 %v1558, 110
        %v1561 = vpop.permute.xlu0 %1560
        %v1562 = vrot.slane %v1561, 2
        %v1563 = vsel %vm432, %v1561, %v1562
        %v1565 = vadd.f32 %v1552, %v1563
        %s1566 = sadd.s32 %s1497, 6
        %s1567 = smul.u32 %s1566, 128
        %s1568 = sadd.s32 %s1567, %s1502
        %s1569 = sld [smem:[#allocation5 + %s1568]]
        %v1570 = vstv %s1569
        %v1571 = vmul.f32 %v357, %v1570
        %1573 = vrot.lane.b32.xlu0 %v1571, 96
        %v1574 = vpop.permute.xlu0 %1573
        %v1575 = vrot.slane %v1574, 2
        %v1576 = vsel %vm446, %v1574, %v1575
        %v1578 = vadd.f32 %v1565, %v1576
        %s1579 = sadd.s32 %s1497, 7
        %s1580 = smul.u32 %s1579, 128
        %s1581 = sadd.s32 %s1580, %s1502
        %s1582 = sld [smem:[#allocation5 + %s1581]]
        %v1583 = vstv %s1582
        %v1584 = vmul.f32 %v357, %v1583
        %1586 = vrot.lane.b32.xlu0 %v1584, 95
        %v1587 = vpop.permute.xlu0 %1586
        %v1588 = vrot.slane %v1587, 2
        %v1589 = vsel %vm460, %v1587, %v1588
        %v1591 = vadd.f32 %v1578, %v1589
        %s1592 = sadd.s32 %s1497, 8
        %s1593 = smul.u32 %s1592, 128
        %s1594 = sadd.s32 %s1593, %s1502
        %s1595 = sld [smem:[#allocation5 + %s1594]]
        %v1596 = vstv %s1595
        %v1597 = vmul.f32 %v357, %v1596
        %1599 = vrot.lane.b32.xlu0 %v1597, 94
        %v1600 = vpop.permute.xlu0 %1599
        %v1601 = vrot.slane %v1600, 2
        %v1602 = vsel %vm474, %v1600, %v1601
        %v1604 = vadd.f32 %v1591, %v1602
        %s1605 = sld [smem:[#allocation8 + %s1493]]
        %v1606 = vstv %s1605
        %v1607 = vadd.f32 %v1604, %v1606
        %v1608 = vmax.f32 %v1607, 0.0
        %1610 = vst [vmem:[#allocation1] ss:$4 sm:$0xff] %v1608
        %v1611 = vld.sshfl [vmem:[#allocation1] sm:$0xff pattern:$0x73625140]
        %v1612 = vld.sshfl [vmem:[#allocation1 + $0x8] sm:$0xff pattern:$0x73625140]
        %v1615 = vpack.c.bf16 %v1611, %v1611
        %v1616 = vpack.c.bf16 %v1612, %v1612
        %v1617 = vld [vmem:[#allocation2] sm:$0x3]
        %s1618 = scalar_lea.vmem %s309, 512 [#allocation10]
        %v1619 = vld [vmem:[%s1618] sm:$0xf]
        %v1620 = vld [vmem:[%s1618 + $0x4] sm:$0xf]
        %v1621 = vld [vmem:[%s1618 + $0x8] sm:$0xf]
        %v1622 = vld [vmem:[%s1618 + $0xc] sm:$0xf]
        %v1623 = vld [vmem:[%s1618 + $0x10] sm:$0xf]
        %v1624 = vld [vmem:[%s1618 + $0x14] sm:$0xf]
        %v1625 = vld [vmem:[%s1618 + $0x18] sm:$0xf]
        %v1626 = vld [vmem:[%s1618 + $0x1c] sm:$0xf]
        %v1627 = vld [vmem:[%s1618 + $0x20] sm:$0xf]
        %v1628 = vld [vmem:[%s1618 + $0x24] sm:$0xf]
        %v1629 = vld [vmem:[%s1618 + $0x28] sm:$0xf]
        %v1630 = vld [vmem:[%s1618 + $0x2c] sm:$0xf]
        %v1631 = vld [vmem:[%s1618 + $0x30] sm:$0xf]
        %v1632 = vld [vmem:[%s1618 + $0x34] sm:$0xf]
        %v1633 = vld [vmem:[%s1618 + $0x38] sm:$0xf]
        %v1634 = vld [vmem:[%s1618 + $0x3c] sm:$0xf]
        %v1635 = vld [vmem:[%s1618 + $0x40] sm:$0xf]
        %v1636 = vld [vmem:[%s1618 + $0x44] sm:$0xf]
        %v1637 = vld [vmem:[%s1618 + $0x48] sm:$0xf]
        %v1638 = vld [vmem:[%s1618 + $0x4c] sm:$0xf]
        %v1639 = vld [vmem:[%s1618 + $0x50] sm:$0xf]
        %v1640 = vld [vmem:[%s1618 + $0x54] sm:$0xf]
        %v1641 = vld [vmem:[%s1618 + $0x58] sm:$0xf]
        %v1642 = vld [vmem:[%s1618 + $0x5c] sm:$0xf]
        %v1643 = vld [vmem:[%s1618 + $0x60] sm:$0xf]
        %v1644 = vld [vmem:[%s1618 + $0x64] sm:$0xf]
        %v1645 = vld [vmem:[%s1618 + $0x68] sm:$0xf]
        %v1646 = vld [vmem:[%s1618 + $0x6c] sm:$0xf]
        %v1647 = vld [vmem:[%s1618 + $0x70] sm:$0xf]
        %v1648 = vld [vmem:[%s1618 + $0x74] sm:$0xf]
        %v1649 = vld [vmem:[%s1618 + $0x78] sm:$0xf]
        %v1650 = vld [vmem:[%s1618 + $0x7c] sm:$0xf]
        %v1683 = vunpack.c.l.b16 %v1619
        %v1684 = vunpack.c.l.b16 %v1620
        %v1685 = vunpack.c.l.b16 %v1621
        %v1686 = vunpack.c.l.b16 %v1622
        %v1687 = vunpack.c.l.b16 %v1623
        %v1688 = vunpack.c.l.b16 %v1624
        %v1689 = vunpack.c.l.b16 %v1625
        %v1690 = vunpack.c.l.b16 %v1626
        %v1691 = vunpack.c.l.b16 %v1627
        %v1692 = vunpack.c.l.b16 %v1628
        %v1693 = vunpack.c.l.b16 %v1629
        %v1694 = vunpack.c.l.b16 %v1630
        %v1695 = vunpack.c.l.b16 %v1631
        %v1696 = vunpack.c.l.b16 %v1632
        %v1697 = vunpack.c.l.b16 %v1633
        %v1698 = vunpack.c.l.b16 %v1634
        %v1699 = vunpack.c.l.b16 %v1635
        %v1700 = vunpack.c.l.b16 %v1636
        %v1701 = vunpack.c.l.b16 %v1637
        %v1702 = vunpack.c.l.b16 %v1638
        %v1703 = vunpack.c.l.b16 %v1639
        %v1704 = vunpack.c.l.b16 %v1640
        %v1705 = vunpack.c.l.b16 %v1641
        %v1706 = vunpack.c.l.b16 %v1642
        %v1707 = vunpack.c.l.b16 %v1643
        %v1708 = vunpack.c.l.b16 %v1644
        %v1709 = vunpack.c.l.b16 %v1645
        %v1710 = vunpack.c.l.b16 %v1646
        %v1711 = vunpack.c.l.b16 %v1647
        %v1712 = vunpack.c.l.b16 %v1648
        %v1713 = vunpack.c.l.b16 %v1649
        %v1714 = vunpack.c.l.b16 %v1650
        %v1715 = vpack.c.b16 %v1684, %v1683
        %v1716 = vpack.c.b16 %v1686, %v1685
        %v1717 = vpack.c.b16 %v1688, %v1687
        %v1718 = vpack.c.b16 %v1690, %v1689
        %v1719 = vpack.c.b16 %v1692, %v1691
        %v1720 = vpack.c.b16 %v1694, %v1693
        %v1721 = vpack.c.b16 %v1696, %v1695
        %v1722 = vpack.c.b16 %v1698, %v1697
        %v1723 = vpack.c.b16 %v1700, %v1699
        %v1724 = vpack.c.b16 %v1702, %v1701
        %v1725 = vpack.c.b16 %v1704, %v1703
        %v1726 = vpack.c.b16 %v1706, %v1705
        %v1727 = vpack.c.b16 %v1708, %v1707
        %v1728 = vpack.c.b16 %v1710, %v1709
        %v1729 = vpack.c.b16 %v1712, %v1711
        %v1730 = vpack.c.b16 %v1714, %v1713
        %1747 = vmatpush.bf16.msra.mxu0 %v1722
        %1748 = vmatpush.bf16.msra.mxu0 %v1721
        %1749 = vmatpush.bf16.msra.mxu0 %v1720
        %1750 = vmatpush.bf16.msra.mxu0 %v1719
        %1751 = vmatpush.bf16.msra.mxu0 %v1718
        %1752 = vmatpush.bf16.msra.mxu0 %v1717
        %1753 = vmatpush.bf16.msra.mxu0 %v1716
        %1754 = vmatpush.bf16.msra.mxu0 %v1715
        %1755 = vmatmul.bf16.gmra.mxu0 %v1615
        %v1756 = vpop.f32.mrf.mxu0
        %v1757 = vadd.f32 0.0, %v1756
        %v1758 = vpop.f32.mrf.mxu0
        %1759 = vdwg.mxu0
        %1760 = vmatpush.bf16.msra.mxu0 %v1730
        %1761 = vmatpush.bf16.msra.mxu0 %v1729
        %1762 = vmatpush.bf16.msra.mxu0 %v1728
        %1763 = vmatpush.bf16.msra.mxu0 %v1727
        %1764 = vmatpush.bf16.msra.mxu0 %v1726
        %1765 = vmatpush.bf16.msra.mxu0 %v1725
        %1766 = vmatpush.bf16.msra.mxu0 %v1724
        %1767 = vmatpush.bf16.msra.mxu0 %v1723
        %1768 = vmatmul.bf16.gmra.mxu0 %v1616
        %v1769 = vpop.f32.mrf.mxu0
        %v1770 = vadd.f32 %v1757, %v1769
        %v1771 = vpop.f32.mrf.mxu0
        %1772 = vdwg.mxu0
        %v1773 = vadd.f32 %v1617, %v1770
        %1774 = vst [vmem:[#allocation2] sm:$0x3] %v1773
        %s1775 = sadd.s32 %s358, 5
        %s1776 = sld [smem:[#allocation5 + %s1775]]
        %v1777 = vstv %s1776
        %v1778 = vmul.f32 %v356, %v1777
        %s1779 = sshra.s32 %s1775, 7
        %s1780 = sand.u32 %s1775, 127
        %s1781 = sadd.s32 %s1779, 1
        %s1782 = smul.u32 %s1781, 128
        %s1783 = sshra.s32 %s1775, 7
        %s1784 = sand.u32 %s1775, 127
        %s1785 = sadd.s32 %s1782, %s1784
        %s1786 = sld [smem:[#allocation5 + %s1785]]
        %v1787 = vstv %s1786
        %v1788 = vmul.f32 %v357, %v1787
        %1790 = vrot.lane.b32.xlu0 %v1788, 127
        %v1791 = vpop.permute.xlu0 %1790
        %v1792 = vrot.slane %v1791, 2
        %v1793 = vsel %vm376, %v1791, %v1792
        %v1795 = vadd.f32 %v1778, %v1793
        %s1796 = sadd.s32 %s1779, 2
        %s1797 = smul.u32 %s1796, 128
        %s1798 = sadd.s32 %s1797, %s1784
        %s1799 = sld [smem:[#allocation5 + %s1798]]
        %v1800 = vstv %s1799
        %v1801 = vmul.f32 %v357, %v1800
        %1803 = vrot.lane.b32.xlu0 %v1801, 126
        %v1804 = vpop.permute.xlu0 %1803
        %v1805 = vrot.slane %v1804, 2
        %v1806 = vsel %vm390, %v1804, %v1805
        %v1808 = vadd.f32 %v1795, %v1806
        %s1809 = sadd.s32 %s1779, 3
        %s1810 = smul.u32 %s1809, 128
        %s1811 = sadd.s32 %s1810, %s1784
        %s1812 = sld [smem:[#allocation5 + %s1811]]
        %v1813 = vstv %s1812
        %v1814 = vmul.f32 %v357, %v1813
        %1816 = vrot.lane.b32.xlu0 %v1814, 112
        %v1817 = vpop.permute.xlu0 %1816
        %v1818 = vrot.slane %v1817, 2
        %v1819 = vsel %vm404, %v1817, %v1818
        %v1821 = vadd.f32 %v1808, %v1819
        %s1822 = sadd.s32 %s1779, 4
        %s1823 = smul.u32 %s1822, 128
        %s1824 = sadd.s32 %s1823, %s1784
        %s1825 = sld [smem:[#allocation5 + %s1824]]
        %v1826 = vstv %s1825
        %v1827 = vmul.f32 %v357, %v1826
        %1829 = vrot.lane.b32.xlu0 %v1827, 111
        %v1830 = vpop.permute.xlu0 %1829
        %v1831 = vrot.slane %v1830, 2
        %v1832 = vsel %vm418, %v1830, %v1831
        %v1834 = vadd.f32 %v1821, %v1832
        %s1835 = sadd.s32 %s1779, 5
        %s1836 = smul.u32 %s1835, 128
        %s1837 = sadd.s32 %s1836, %s1784
        %s1838 = sld [smem:[#allocation5 + %s1837]]
        %v1839 = vstv %s1838
        %v1840 = vmul.f32 %v357, %v1839
        %1842 = vrot.lane.b32.xlu0 %v1840, 110
        %v1843 = vpop.permute.xlu0 %1842
        %v1844 = vrot.slane %v1843, 2
        %v1845 = vsel %vm432, %v1843, %v1844
        %v1847 = vadd.f32 %v1834, %v1845
        %s1848 = sadd.s32 %s1779, 6
        %s1849 = smul.u32 %s1848, 128
        %s1850 = sadd.s32 %s1849, %s1784
        %s1851 = sld [smem:[#allocation5 + %s1850]]
        %v1852 = vstv %s1851
        %v1853 = vmul.f32 %v357, %v1852
        %1855 = vrot.lane.b32.xlu0 %v1853, 96
        %v1856 = vpop.permute.xlu0 %1855
        %v1857 = vrot.slane %v1856, 2
        %v1858 = vsel %vm446, %v1856, %v1857
        %v1860 = vadd.f32 %v1847, %v1858
        %s1861 = sadd.s32 %s1779, 7
        %s1862 = smul.u32 %s1861, 128
        %s1863 = sadd.s32 %s1862, %s1784
        %s1864 = sld [smem:[#allocation5 + %s1863]]
        %v1865 = vstv %s1864
        %v1866 = vmul.f32 %v357, %v1865
        %1868 = vrot.lane.b32.xlu0 %v1866, 95
        %v1869 = vpop.permute.xlu0 %1868
        %v1870 = vrot.slane %v1869, 2
        %v1871 = vsel %vm460, %v1869, %v1870
        %v1873 = vadd.f32 %v1860, %v1871
        %s1874 = sadd.s32 %s1779, 8
        %s1875 = smul.u32 %s1874, 128
        %s1876 = sadd.s32 %s1875, %s1784
        %s1877 = sld [smem:[#allocation5 + %s1876]]
        %v1878 = vstv %s1877
        %v1879 = vmul.f32 %v357, %v1878
        %1881 = vrot.lane.b32.xlu0 %v1879, 94
        %v1882 = vpop.permute.xlu0 %1881
        %v1883 = vrot.slane %v1882, 2
        %v1884 = vsel %vm474, %v1882, %v1883
        %v1886 = vadd.f32 %v1873, %v1884
        %s1887 = sld [smem:[#allocation8 + %s1775]]
        %v1888 = vstv %s1887
        %v1889 = vadd.f32 %v1886, %v1888
        %v1890 = vmax.f32 %v1889, 0.0
        %1892 = vst [vmem:[#allocation1] ss:$4 sm:$0xff] %v1890
        %v1893 = vld.sshfl [vmem:[#allocation1] sm:$0xff pattern:$0x73625140]
        %v1894 = vld.sshfl [vmem:[#allocation1 + $0x8] sm:$0xff pattern:$0x73625140]
        %v1897 = vpack.c.bf16 %v1893, %v1893
        %v1898 = vpack.c.bf16 %v1894, %v1894
        %v1899 = vld [vmem:[#allocation2] sm:$0x3]
        %s1900 = scalar_lea.vmem %s309, 640 [#allocation10]
        %v1901 = vld [vmem:[%s1900] sm:$0xf]
        %v1902 = vld [vmem:[%s1900 + $0x4] sm:$0xf]
        %v1903 = vld [vmem:[%s1900 + $0x8] sm:$0xf]
        %v1904 = vld [vmem:[%s1900 + $0xc] sm:$0xf]
        %v1905 = vld [vmem:[%s1900 + $0x10] sm:$0xf]
        %v1906 = vld [vmem:[%s1900 + $0x14] sm:$0xf]
        %v1907 = vld [vmem:[%s1900 + $0x18] sm:$0xf]
        %v1908 = vld [vmem:[%s1900 + $0x1c] sm:$0xf]
        %v1909 = vld [vmem:[%s1900 + $0x20] sm:$0xf]
        %v1910 = vld [vmem:[%s1900 + $0x24] sm:$0xf]
        %v1911 = vld [vmem:[%s1900 + $0x28] sm:$0xf]
        %v1912 = vld [vmem:[%s1900 + $0x2c] sm:$0xf]
        %v1913 = vld [vmem:[%s1900 + $0x30] sm:$0xf]
        %v1914 = vld [vmem:[%s1900 + $0x34] sm:$0xf]
        %v1915 = vld [vmem:[%s1900 + $0x38] sm:$0xf]
        %v1916 = vld [vmem:[%s1900 + $0x3c] sm:$0xf]
        %v1917 = vld [vmem:[%s1900 + $0x40] sm:$0xf]
        %v1918 = vld [vmem:[%s1900 + $0x44] sm:$0xf]
        %v1919 = vld [vmem:[%s1900 + $0x48] sm:$0xf]
        %v1920 = vld [vmem:[%s1900 + $0x4c] sm:$0xf]
        %v1921 = vld [vmem:[%s1900 + $0x50] sm:$0xf]
        %v1922 = vld [vmem:[%s1900 + $0x54] sm:$0xf]
        %v1923 = vld [vmem:[%s1900 + $0x58] sm:$0xf]
        %v1924 = vld [vmem:[%s1900 + $0x5c] sm:$0xf]
        %v1925 = vld [vmem:[%s1900 + $0x60] sm:$0xf]
        %v1926 = vld [vmem:[%s1900 + $0x64] sm:$0xf]
        %v1927 = vld [vmem:[%s1900 + $0x68] sm:$0xf]
        %v1928 = vld [vmem:[%s1900 + $0x6c] sm:$0xf]
        %v1929 = vld [vmem:[%s1900 + $0x70] sm:$0xf]
        %v1930 = vld [vmem:[%s1900 + $0x74] sm:$0xf]
        %v1931 = vld [vmem:[%s1900 + $0x78] sm:$0xf]
        %v1932 = vld [vmem:[%s1900 + $0x7c] sm:$0xf]
        %v1965 = vunpack.c.l.b16 %v1901
        %v1966 = vunpack.c.l.b16 %v1902
        %v1967 = vunpack.c.l.b16 %v1903
        %v1968 = vunpack.c.l.b16 %v1904
        %v1969 = vunpack.c.l.b16 %v1905
        %v1970 = vunpack.c.l.b16 %v1906
        %v1971 = vunpack.c.l.b16 %v1907
        %v1972 = vunpack.c.l.b16 %v1908
        %v1973 = vunpack.c.l.b16 %v1909
        %v1974 = vunpack.c.l.b16 %v1910
        %v1975 = vunpack.c.l.b16 %v1911
        %v1976 = vunpack.c.l.b16 %v1912
        %v1977 = vunpack.c.l.b16 %v1913
        %v1978 = vunpack.c.l.b16 %v1914
        %v1979 = vunpack.c.l.b16 %v1915
        %v1980 = vunpack.c.l.b16 %v1916
        %v1981 = vunpack.c.l.b16 %v1917
        %v1982 = vunpack.c.l.b16 %v1918
        %v1983 = vunpack.c.l.b16 %v1919
        %v1984 = vunpack.c.l.b16 %v1920
        %v1985 = vunpack.c.l.b16 %v1921
        %v1986 = vunpack.c.l.b16 %v1922
        %v1987 = vunpack.c.l.b16 %v1923
        %v1988 = vunpack.c.l.b16 %v1924
        %v1989 = vunpack.c.l.b16 %v1925
        %v1990 = vunpack.c.l.b16 %v1926
        %v1991 = vunpack.c.l.b16 %v1927
        %v1992 = vunpack.c.l.b16 %v1928
        %v1993 = vunpack.c.l.b16 %v1929
        %v1994 = vunpack.c.l.b16 %v1930
        %v1995 = vunpack.c.l.b16 %v1931
        %v1996 = vunpack.c.l.b16 %v1932
        %v1997 = vpack.c.b16 %v1966, %v1965
        %v1998 = vpack.c.b16 %v1968, %v1967
        %v1999 = vpack.c.b16 %v1970, %v1969
        %v2000 = vpack.c.b16 %v1972, %v1971
        %v2001 = vpack.c.b16 %v1974, %v1973
        %v2002 = vpack.c.b16 %v1976, %v1975
        %v2003 = vpack.c.b16 %v1978, %v1977
        %v2004 = vpack.c.b16 %v1980, %v1979
        %v2005 = vpack.c.b16 %v1982, %v1981
        %v2006 = vpack.c.b16 %v1984, %v1983
        %v2007 = vpack.c.b16 %v1986, %v1985
        %v2008 = vpack.c.b16 %v1988, %v1987
        %v2009 = vpack.c.b16 %v1990, %v1989
        %v2010 = vpack.c.b16 %v1992, %v1991
        %v2011 = vpack.c.b16 %v1994, %v1993
        %v2012 = vpack.c.b16 %v1996, %v1995
        %2029 = vmatpush.bf16.msra.mxu0 %v2004
        %2030 = vmatpush.bf16.msra.mxu0 %v2003
        %2031 = vmatpush.bf16.msra.mxu0 %v2002
        %2032 = vmatpush.bf16.msra.mxu0 %v2001
        %2033 = vmatpush.bf16.msra.mxu0 %v2000
        %2034 = vmatpush.bf16.msra.mxu0 %v1999
        %2035 = vmatpush.bf16.msra.mxu0 %v1998
        %2036 = vmatpush.bf16.msra.mxu0 %v1997
        %2037 = vmatmul.bf16.gmra.mxu0 %v1897
        %v2038 = vpop.f32.mrf.mxu0
        %v2039 = vadd.f32 0.0, %v2038
        %v2040 = vpop.f32.mrf.mxu0
        %2041 = vdwg.mxu0
        %2042 = vmatpush.bf16.msra.mxu0 %v2012
        %2043 = vmatpush.bf16.msra.mxu0 %v2011
        %2044 = vmatpush.bf16.msra.mxu0 %v2010
        %2045 = vmatpush.bf16.msra.mxu0 %v2009
        %2046 = vmatpush.bf16.msra.mxu0 %v2008
        %2047 = vmatpush.bf16.msra.mxu0 %v2007
        %2048 = vmatpush.bf16.msra.mxu0 %v2006
        %2049 = vmatpush.bf16.msra.mxu0 %v2005
        %2050 = vmatmul.bf16.gmra.mxu0 %v1898
        %v2051 = vpop.f32.mrf.mxu0
        %v2052 = vadd.f32 %v2039, %v2051
        %v2053 = vpop.f32.mrf.mxu0
        %2054 = vdwg.mxu0
        %v2055 = vadd.f32 %v1899, %v2052
        %2056 = vst [vmem:[#allocation2] sm:$0x3] %v2055
        %s2057 = sadd.s32 %s358, 6
        %s2058 = sld [smem:[#allocation5 + %s2057]]
        %v2059 = vstv %s2058
        %v2060 = vmul.f32 %v356, %v2059
        %s2061 = sshra.s32 %s2057, 7
        %s2062 = sand.u32 %s2057, 127
        %s2063 = sadd.s32 %s2061, 1
        %s2064 = smul.u32 %s2063, 128
        %s2065 = sshra.s32 %s2057, 7
        %s2066 = sand.u32 %s2057, 127
        %s2067 = sadd.s32 %s2064, %s2066
        %s2068 = sld [smem:[#allocation5 + %s2067]]
        %v2069 = vstv %s2068
        %v2070 = vmul.f32 %v357, %v2069
        %2072 = vrot.lane.b32.xlu0 %v2070, 127
        %v2073 = vpop.permute.xlu0 %2072
        %v2074 = vrot.slane %v2073, 2
        %v2075 = vsel %vm376, %v2073, %v2074
        %v2077 = vadd.f32 %v2060, %v2075
        %s2078 = sadd.s32 %s2061, 2
        %s2079 = smul.u32 %s2078, 128
        %s2080 = sadd.s32 %s2079, %s2066
        %s2081 = sld [smem:[#allocation5 + %s2080]]
        %v2082 = vstv %s2081
        %v2083 = vmul.f32 %v357, %v2082
        %2085 = vrot.lane.b32.xlu0 %v2083, 126
        %v2086 = vpop.permute.xlu0 %2085
        %v2087 = vrot.slane %v2086, 2
        %v2088 = vsel %vm390, %v2086, %v2087
        %v2090 = vadd.f32 %v2077, %v2088
        %s2091 = sadd.s32 %s2061, 3
        %s2092 = smul.u32 %s2091, 128
        %s2093 = sadd.s32 %s2092, %s2066
        %s2094 = sld [smem:[#allocation5 + %s2093]]
        %v2095 = vstv %s2094
        %v2096 = vmul.f32 %v357, %v2095
        %2098 = vrot.lane.b32.xlu0 %v2096, 112
        %v2099 = vpop.permute.xlu0 %2098
        %v2100 = vrot.slane %v2099, 2
        %v2101 = vsel %vm404, %v2099, %v2100
        %v2103 = vadd.f32 %v2090, %v2101
        %s2104 = sadd.s32 %s2061, 4
        %s2105 = smul.u32 %s2104, 128
        %s2106 = sadd.s32 %s2105, %s2066
        %s2107 = sld [smem:[#allocation5 + %s2106]]
        %v2108 = vstv %s2107
        %v2109 = vmul.f32 %v357, %v2108
        %2111 = vrot.lane.b32.xlu0 %v2109, 111
        %v2112 = vpop.permute.xlu0 %2111
        %v2113 = vrot.slane %v2112, 2
        %v2114 = vsel %vm418, %v2112, %v2113
        %v2116 = vadd.f32 %v2103, %v2114
        %s2117 = sadd.s32 %s2061, 5
        %s2118 = smul.u32 %s2117, 128
        %s2119 = sadd.s32 %s2118, %s2066
        %s2120 = sld [smem:[#allocation5 + %s2119]]
        %v2121 = vstv %s2120
        %v2122 = vmul.f32 %v357, %v2121
        %2124 = vrot.lane.b32.xlu0 %v2122, 110
        %v2125 = vpop.permute.xlu0 %2124
        %v2126 = vrot.slane %v2125, 2
        %v2127 = vsel %vm432, %v2125, %v2126
        %v2129 = vadd.f32 %v2116, %v2127
        %s2130 = sadd.s32 %s2061, 6
        %s2131 = smul.u32 %s2130, 128
        %s2132 = sadd.s32 %s2131, %s2066
        %s2133 = sld [smem:[#allocation5 + %s2132]]
        %v2134 = vstv %s2133
        %v2135 = vmul.f32 %v357, %v2134
        %2137 = vrot.lane.b32.xlu0 %v2135, 96
        %v2138 = vpop.permute.xlu0 %2137
        %v2139 = vrot.slane %v2138, 2
        %v2140 = vsel %vm446, %v2138, %v2139
        %v2142 = vadd.f32 %v2129, %v2140
        %s2143 = sadd.s32 %s2061, 7
        %s2144 = smul.u32 %s2143, 128
        %s2145 = sadd.s32 %s2144, %s2066
        %s2146 = sld [smem:[#allocation5 + %s2145]]
        %v2147 = vstv %s2146
        %v2148 = vmul.f32 %v357, %v2147
        %2150 = vrot.lane.b32.xlu0 %v2148, 95
        %v2151 = vpop.permute.xlu0 %2150
        %v2152 = vrot.slane %v2151, 2
        %v2153 = vsel %vm460, %v2151, %v2152
        %v2155 = vadd.f32 %v2142, %v2153
        %s2156 = sadd.s32 %s2061, 8
        %s2157 = smul.u32 %s2156, 128
        %s2158 = sadd.s32 %s2157, %s2066
        %s2159 = sld [smem:[#allocation5 + %s2158]]
        %v2160 = vstv %s2159
        %v2161 = vmul.f32 %v357, %v2160
        %2163 = vrot.lane.b32.xlu0 %v2161, 94
        %v2164 = vpop.permute.xlu0 %2163
        %v2165 = vrot.slane %v2164, 2
        %v2166 = vsel %vm474, %v2164, %v2165
        %v2168 = vadd.f32 %v2155, %v2166
        %s2169 = sld [smem:[#allocation8 + %s2057]]
        %v2170 = vstv %s2169
        %v2171 = vadd.f32 %v2168, %v2170
        %v2172 = vmax.f32 %v2171, 0.0
        %2174 = vst [vmem:[#allocation1] ss:$4 sm:$0xff] %v2172
        %v2175 = vld.sshfl [vmem:[#allocation1] sm:$0xff pattern:$0x73625140]
        %v2176 = vld.sshfl [vmem:[#allocation1 + $0x8] sm:$0xff pattern:$0x73625140]
        %v2179 = vpack.c.bf16 %v2175, %v2175
        %v2180 = vpack.c.bf16 %v2176, %v2176
        %v2181 = vld [vmem:[#allocation2] sm:$0x3]
        %s2182 = scalar_lea.vmem %s309, 768 [#allocation10]
        %v2183 = vld [vmem:[%s2182] sm:$0xf]
        %v2184 = vld [vmem:[%s2182 + $0x4] sm:$0xf]
        %v2185 = vld [vmem:[%s2182 + $0x8] sm:$0xf]
        %v2186 = vld [vmem:[%s2182 + $0xc] sm:$0xf]
        %v2187 = vld [vmem:[%s2182 + $0x10] sm:$0xf]
        %v2188 = vld [vmem:[%s2182 + $0x14] sm:$0xf]
        %v2189 = vld [vmem:[%s2182 + $0x18] sm:$0xf]
        %v2190 = vld [vmem:[%s2182 + $0x1c] sm:$0xf]
        %v2191 = vld [vmem:[%s2182 + $0x20] sm:$0xf]
        %v2192 = vld [vmem:[%s2182 + $0x24] sm:$0xf]
        %v2193 = vld [vmem:[%s2182 + $0x28] sm:$0xf]
        %v2194 = vld [vmem:[%s2182 + $0x2c] sm:$0xf]
        %v2195 = vld [vmem:[%s2182 + $0x30] sm:$0xf]
        %v2196 = vld [vmem:[%s2182 + $0x34] sm:$0xf]
        %v2197 = vld [vmem:[%s2182 + $0x38] sm:$0xf]
        %v2198 = vld [vmem:[%s2182 + $0x3c] sm:$0xf]
        %v2199 = vld [vmem:[%s2182 + $0x40] sm:$0xf]
        %v2200 = vld [vmem:[%s2182 + $0x44] sm:$0xf]
        %v2201 = vld [vmem:[%s2182 + $0x48] sm:$0xf]
        %v2202 = vld [vmem:[%s2182 + $0x4c] sm:$0xf]
        %v2203 = vld [vmem:[%s2182 + $0x50] sm:$0xf]
        %v2204 = vld [vmem:[%s2182 + $0x54] sm:$0xf]
        %v2205 = vld [vmem:[%s2182 + $0x58] sm:$0xf]
        %v2206 = vld [vmem:[%s2182 + $0x5c] sm:$0xf]
        %v2207 = vld [vmem:[%s2182 + $0x60] sm:$0xf]
        %v2208 = vld [vmem:[%s2182 + $0x64] sm:$0xf]
        %v2209 = vld [vmem:[%s2182 + $0x68] sm:$0xf]
        %v2210 = vld [vmem:[%s2182 + $0x6c] sm:$0xf]
        %v2211 = vld [vmem:[%s2182 + $0x70] sm:$0xf]
        %v2212 = vld [vmem:[%s2182 + $0x74] sm:$0xf]
        %v2213 = vld [vmem:[%s2182 + $0x78] sm:$0xf]
        %v2214 = vld [vmem:[%s2182 + $0x7c] sm:$0xf]
        %v2247 = vunpack.c.l.b16 %v2183
        %v2248 = vunpack.c.l.b16 %v2184
        %v2249 = vunpack.c.l.b16 %v2185
        %v2250 = vunpack.c.l.b16 %v2186
        %v2251 = vunpack.c.l.b16 %v2187
        %v2252 = vunpack.c.l.b16 %v2188
        %v2253 = vunpack.c.l.b16 %v2189
        %v2254 = vunpack.c.l.b16 %v2190
        %v2255 = vunpack.c.l.b16 %v2191
        %v2256 = vunpack.c.l.b16 %v2192
        %v2257 = vunpack.c.l.b16 %v2193
        %v2258 = vunpack.c.l.b16 %v2194
        %v2259 = vunpack.c.l.b16 %v2195
        %v2260 = vunpack.c.l.b16 %v2196
        %v2261 = vunpack.c.l.b16 %v2197
        %v2262 = vunpack.c.l.b16 %v2198
        %v2263 = vunpack.c.l.b16 %v2199
        %v2264 = vunpack.c.l.b16 %v2200
        %v2265 = vunpack.c.l.b16 %v2201
        %v2266 = vunpack.c.l.b16 %v2202
        %v2267 = vunpack.c.l.b16 %v2203
        %v2268 = vunpack.c.l.b16 %v2204
        %v2269 = vunpack.c.l.b16 %v2205
        %v2270 = vunpack.c.l.b16 %v2206
        %v2271 = vunpack.c.l.b16 %v2207
        %v2272 = vunpack.c.l.b16 %v2208
        %v2273 = vunpack.c.l.b16 %v2209
        %v2274 = vunpack.c.l.b16 %v2210
        %v2275 = vunpack.c.l.b16 %v2211
        %v2276 = vunpack.c.l.b16 %v2212
        %v2277 = vunpack.c.l.b16 %v2213
        %v2278 = vunpack.c.l.b16 %v2214
        %v2279 = vpack.c.b16 %v2248, %v2247
        %v2280 = vpack.c.b16 %v2250, %v2249
        %v2281 = vpack.c.b16 %v2252, %v2251
        %v2282 = vpack.c.b16 %v2254, %v2253
        %v2283 = vpack.c.b16 %v2256, %v2255
        %v2284 = vpack.c.b16 %v2258, %v2257
        %v2285 = vpack.c.b16 %v2260, %v2259
        %v2286 = vpack.c.b16 %v2262, %v2261
        %v2287 = vpack.c.b16 %v2264, %v2263
        %v2288 = vpack.c.b16 %v2266, %v2265
        %v2289 = vpack.c.b16 %v2268, %v2267
        %v2290 = vpack.c.b16 %v2270, %v2269
        %v2291 = vpack.c.b16 %v2272, %v2271
        %v2292 = vpack.c.b16 %v2274, %v2273
        %v2293 = vpack.c.b16 %v2276, %v2275
        %v2294 = vpack.c.b16 %v2278, %v2277
        %2311 = vmatpush.bf16.msra.mxu0 %v2286
        %2312 = vmatpush.bf16.msra.mxu0 %v2285
        %2313 = vmatpush.bf16.msra.mxu0 %v2284
        %2314 = vmatpush.bf16.msra.mxu0 %v2283
        %2315 = vmatpush.bf16.msra.mxu0 %v2282
        %2316 = vmatpush.bf16.msra.mxu0 %v2281
        %2317 = vmatpush.bf16.msra.mxu0 %v2280
        %2318 = vmatpush.bf16.msra.mxu0 %v2279
        %2319 = vmatmul.bf16.gmra.mxu0 %v2179
        %v2320 = vpop.f32.mrf.mxu0
        %v2321 = vadd.f32 0.0, %v2320
        %v2322 = vpop.f32.mrf.mxu0
        %2323 = vdwg.mxu0
        %2324 = vmatpush.bf16.msra.mxu0 %v2294
        %2325 = vmatpush.bf16.msra.mxu0 %v2293
        %2326 = vmatpush.bf16.msra.mxu0 %v2292
        %2327 = vmatpush.bf16.msra.mxu0 %v2291
        %2328 = vmatpush.bf16.msra.mxu0 %v2290
        %2329 = vmatpush.bf16.msra.mxu0 %v2289
        %2330 = vmatpush.bf16.msra.mxu0 %v2288
        %2331 = vmatpush.bf16.msra.mxu0 %v2287
        %2332 = vmatmul.bf16.gmra.mxu0 %v2180
        %v2333 = vpop.f32.mrf.mxu0
        %v2334 = vadd.f32 %v2321, %v2333
        %v2335 = vpop.f32.mrf.mxu0
        %2336 = vdwg.mxu0
        %v2337 = vadd.f32 %v2181, %v2334
        %2338 = vst [vmem:[#allocation2] sm:$0x3] %v2337
        %s2339 = sadd.s32 %s358, 7
        %s2340 = sld [smem:[#allocation5 + %s2339]]
        %v2341 = vstv %s2340
        %v2342 = vmul.f32 %v356, %v2341
        %s2343 = sshra.s32 %s2339, 7
        %s2344 = sand.u32 %s2339, 127
        %s2345 = sadd.s32 %s2343, 1
        %s2346 = smul.u32 %s2345, 128
        %s2347 = sshra.s32 %s2339, 7
        %s2348 = sand.u32 %s2339, 127
        %s2349 = sadd.s32 %s2346, %s2348
        %s2350 = sld [smem:[#allocation5 + %s2349]]
        %v2351 = vstv %s2350
        %v2352 = vmul.f32 %v357, %v2351
        %2354 = vrot.lane.b32.xlu0 %v2352, 127
        %v2355 = vpop.permute.xlu0 %2354
        %v2356 = vrot.slane %v2355, 2
        %v2357 = vsel %vm376, %v2355, %v2356
        %v2359 = vadd.f32 %v2342, %v2357
        %s2360 = sadd.s32 %s2343, 2
        %s2361 = smul.u32 %s2360, 128
        %s2362 = sadd.s32 %s2361, %s2348
        %s2363 = sld [smem:[#allocation5 + %s2362]]
        %v2364 = vstv %s2363
        %v2365 = vmul.f32 %v357, %v2364
        %2367 = vrot.lane.b32.xlu0 %v2365, 126
        %v2368 = vpop.permute.xlu0 %2367
        %v2369 = vrot.slane %v2368, 2
        %v2370 = vsel %vm390, %v2368, %v2369
        %v2372 = vadd.f32 %v2359, %v2370
        %s2373 = sadd.s32 %s2343, 3
        %s2374 = smul.u32 %s2373, 128
        %s2375 = sadd.s32 %s2374, %s2348
        %s2376 = sld [smem:[#allocation5 + %s2375]]
        %v2377 = vstv %s2376
        %v2378 = vmul.f32 %v357, %v2377
        %2380 = vrot.lane.b32.xlu0 %v2378, 112
        %v2381 = vpop.permute.xlu0 %2380
        %v2382 = vrot.slane %v2381, 2
        %v2383 = vsel %vm404, %v2381, %v2382
        %v2385 = vadd.f32 %v2372, %v2383
        %s2386 = sadd.s32 %s2343, 4
        %s2387 = smul.u32 %s2386, 128
        %s2388 = sadd.s32 %s2387, %s2348
        %s2389 = sld [smem:[#allocation5 + %s2388]]
        %v2390 = vstv %s2389
        %v2391 = vmul.f32 %v357, %v2390
        %2393 = vrot.lane.b32.xlu0 %v2391, 111
        %v2394 = vpop.permute.xlu0 %2393
        %v2395 = vrot.slane %v2394, 2
        %v2396 = vsel %vm418, %v2394, %v2395
        %v2398 = vadd.f32 %v2385, %v2396
        %s2399 = sadd.s32 %s2343, 5
        %s2400 = smul.u32 %s2399, 128
        %s2401 = sadd.s32 %s2400, %s2348
        %s2402 = sld [smem:[#allocation5 + %s2401]]
        %v2403 = vstv %s2402
        %v2404 = vmul.f32 %v357, %v2403
        %2406 = vrot.lane.b32.xlu0 %v2404, 110
        %v2407 = vpop.permute.xlu0 %2406
        %v2408 = vrot.slane %v2407, 2
        %v2409 = vsel %vm432, %v2407, %v2408
        %v2411 = vadd.f32 %v2398, %v2409
        %s2412 = sadd.s32 %s2343, 6
        %s2413 = smul.u32 %s2412, 128
        %s2414 = sadd.s32 %s2413, %s2348
        %s2415 = sld [smem:[#allocation5 + %s2414]]
        %v2416 = vstv %s2415
        %v2417 = vmul.f32 %v357, %v2416
        %2419 = vrot.lane.b32.xlu0 %v2417, 96
        %v2420 = vpop.permute.xlu0 %2419
        %v2421 = vrot.slane %v2420, 2
        %v2422 = vsel %vm446, %v2420, %v2421
        %v2424 = vadd.f32 %v2411, %v2422
        %s2425 = sadd.s32 %s2343, 7
        %s2426 = smul.u32 %s2425, 128
        %s2427 = sadd.s32 %s2426, %s2348
        %s2428 = sld [smem:[#allocation5 + %s2427]]
        %v2429 = vstv %s2428
        %v2430 = vmul.f32 %v357, %v2429
        %2432 = vrot.lane.b32.xlu0 %v2430, 95
        %v2433 = vpop.permute.xlu0 %2432
        %v2434 = vrot.slane %v2433, 2
        %v2435 = vsel %vm460, %v2433, %v2434
        %v2437 = vadd.f32 %v2424, %v2435
        %s2438 = sadd.s32 %s2343, 8
        %s2439 = smul.u32 %s2438, 128
        %s2440 = sadd.s32 %s2439, %s2348
        %s2441 = sld [smem:[#allocation5 + %s2440]]
        %v2442 = vstv %s2441
        %v2443 = vmul.f32 %v357, %v2442
        %2445 = vrot.lane.b32.xlu0 %v2443, 94
        %v2446 = vpop.permute.xlu0 %2445
        %v2447 = vrot.slane %v2446, 2
        %v2448 = vsel %vm474, %v2446, %v2447
        %v2450 = vadd.f32 %v2437, %v2448
        %s2451 = sld [smem:[#allocation8 + %s2339]]
        %v2452 = vstv %s2451
        %v2453 = vadd.f32 %v2450, %v2452
        %v2454 = vmax.f32 %v2453, 0.0
        %2456 = vst [vmem:[#allocation1] ss:$4 sm:$0xff] %v2454
        %v2457 = vld.sshfl [vmem:[#allocation1] sm:$0xff pattern:$0x73625140]
        %v2458 = vld.sshfl [vmem:[#allocation1 + $0x8] sm:$0xff pattern:$0x73625140]
        %v2461 = vpack.c.bf16 %v2457, %v2457
        %v2462 = vpack.c.bf16 %v2458, %v2458
        %v2463 = vld [vmem:[#allocation2] sm:$0x3]
        %s2464 = scalar_lea.vmem %s309, 896 [#allocation10]
        %v2465 = vld [vmem:[%s2464] sm:$0xf]
        %v2466 = vld [vmem:[%s2464 + $0x4] sm:$0xf]
        %v2467 = vld [vmem:[%s2464 + $0x8] sm:$0xf]
        %v2468 = vld [vmem:[%s2464 + $0xc] sm:$0xf]
        %v2469 = vld [vmem:[%s2464 + $0x10] sm:$0xf]
        %v2470 = vld [vmem:[%s2464 + $0x14] sm:$0xf]
        %v2471 = vld [vmem:[%s2464 + $0x18] sm:$0xf]
        %v2472 = vld [vmem:[%s2464 + $0x1c] sm:$0xf]
        %v2473 = vld [vmem:[%s2464 + $0x20] sm:$0xf]
        %v2474 = vld [vmem:[%s2464 + $0x24] sm:$0xf]
        %v2475 = vld [vmem:[%s2464 + $0x28] sm:$0xf]
        %v2476 = vld [vmem:[%s2464 + $0x2c] sm:$0xf]
        %v2477 = vld [vmem:[%s2464 + $0x30] sm:$0xf]
        %v2478 = vld [vmem:[%s2464 + $0x34] sm:$0xf]
        %v2479 = vld [vmem:[%s2464 + $0x38] sm:$0xf]
        %v2480 = vld [vmem:[%s2464 + $0x3c] sm:$0xf]
        %v2481 = vld [vmem:[%s2464 + $0x40] sm:$0xf]
        %v2482 = vld [vmem:[%s2464 + $0x44] sm:$0xf]
        %v2483 = vld [vmem:[%s2464 + $0x48] sm:$0xf]
        %v2484 = vld [vmem:[%s2464 + $0x4c] sm:$0xf]
        %v2485 = vld [vmem:[%s2464 + $0x50] sm:$0xf]
        %v2486 = vld [vmem:[%s2464 + $0x54] sm:$0xf]
        %v2487 = vld [vmem:[%s2464 + $0x58] sm:$0xf]
        %v2488 = vld [vmem:[%s2464 + $0x5c] sm:$0xf]
        %v2489 = vld [vmem:[%s2464 + $0x60] sm:$0xf]
        %v2490 = vld [vmem:[%s2464 + $0x64] sm:$0xf]
        %v2491 = vld [vmem:[%s2464 + $0x68] sm:$0xf]
        %v2492 = vld [vmem:[%s2464 + $0x6c] sm:$0xf]
        %v2493 = vld [vmem:[%s2464 + $0x70] sm:$0xf]
        %v2494 = vld [vmem:[%s2464 + $0x74] sm:$0xf]
        %v2495 = vld [vmem:[%s2464 + $0x78] sm:$0xf]
        %v2496 = vld [vmem:[%s2464 + $0x7c] sm:$0xf]
        %v2529 = vunpack.c.l.b16 %v2465
        %v2530 = vunpack.c.l.b16 %v2466
        %v2531 = vunpack.c.l.b16 %v2467
        %v2532 = vunpack.c.l.b16 %v2468
        %v2533 = vunpack.c.l.b16 %v2469
        %v2534 = vunpack.c.l.b16 %v2470
        %v2535 = vunpack.c.l.b16 %v2471
        %v2536 = vunpack.c.l.b16 %v2472
        %v2537 = vunpack.c.l.b16 %v2473
        %v2538 = vunpack.c.l.b16 %v2474
        %v2539 = vunpack.c.l.b16 %v2475
        %v2540 = vunpack.c.l.b16 %v2476
        %v2541 = vunpack.c.l.b16 %v2477
        %v2542 = vunpack.c.l.b16 %v2478
        %v2543 = vunpack.c.l.b16 %v2479
        %v2544 = vunpack.c.l.b16 %v2480
        %v2545 = vunpack.c.l.b16 %v2481
        %v2546 = vunpack.c.l.b16 %v2482
        %v2547 = vunpack.c.l.b16 %v2483
        %v2548 = vunpack.c.l.b16 %v2484
        %v2549 = vunpack.c.l.b16 %v2485
        %v2550 = vunpack.c.l.b16 %v2486
        %v2551 = vunpack.c.l.b16 %v2487
        %v2552 = vunpack.c.l.b16 %v2488
        %v2553 = vunpack.c.l.b16 %v2489
        %v2554 = vunpack.c.l.b16 %v2490
        %v2555 = vunpack.c.l.b16 %v2491
        %v2556 = vunpack.c.l.b16 %v2492
        %v2557 = vunpack.c.l.b16 %v2493
        %v2558 = vunpack.c.l.b16 %v2494
        %v2559 = vunpack.c.l.b16 %v2495
        %v2560 = vunpack.c.l.b16 %v2496
        %v2561 = vpack.c.b16 %v2530, %v2529
        %v2562 = vpack.c.b16 %v2532, %v2531
        %v2563 = vpack.c.b16 %v2534, %v2533
        %v2564 = vpack.c.b16 %v2536, %v2535
        %v2565 = vpack.c.b16 %v2538, %v2537
        %v2566 = vpack.c.b16 %v2540, %v2539
        %v2567 = vpack.c.b16 %v2542, %v2541
        %v2568 = vpack.c.b16 %v2544, %v2543
        %v2569 = vpack.c.b16 %v2546, %v2545
        %v2570 = vpack.c.b16 %v2548, %v2547
        %v2571 = vpack.c.b16 %v2550, %v2549
        %v2572 = vpack.c.b16 %v2552, %v2551
        %v2573 = vpack.c.b16 %v2554, %v2553
        %v2574 = vpack.c.b16 %v2556, %v2555
        %v2575 = vpack.c.b16 %v2558, %v2557
        %v2576 = vpack.c.b16 %v2560, %v2559
        %2593 = vmatpush.bf16.msra.mxu0 %v2568
        %2594 = vmatpush.bf16.msra.mxu0 %v2567
        %2595 = vmatpush.bf16.msra.mxu0 %v2566
        %2596 = vmatpush.bf16.msra.mxu0 %v2565
        %2597 = vmatpush.bf16.msra.mxu0 %v2564
        %2598 = vmatpush.bf16.msra.mxu0 %v2563
        %2599 = vmatpush.bf16.msra.mxu0 %v2562
        %2600 = vmatpush.bf16.msra.mxu0 %v2561
        %2601 = vmatmul.bf16.gmra.mxu0 %v2461
        %v2602 = vpop.f32.mrf.mxu0
        %v2603 = vadd.f32 0.0, %v2602
        %v2604 = vpop.f32.mrf.mxu0
        %2605 = vdwg.mxu0
        %2606 = vmatpush.bf16.msra.mxu0 %v2576
        %2607 = vmatpush.bf16.msra.mxu0 %v2575
        %2608 = vmatpush.bf16.msra.mxu0 %v2574
        %2609 = vmatpush.bf16.msra.mxu0 %v2573
        %2610 = vmatpush.bf16.msra.mxu0 %v2572
        %2611 = vmatpush.bf16.msra.mxu0 %v2571
        %2612 = vmatpush.bf16.msra.mxu0 %v2570
        %2613 = vmatpush.bf16.msra.mxu0 %v2569
        %2614 = vmatmul.bf16.gmra.mxu0 %v2462
        %v2615 = vpop.f32.mrf.mxu0
        %v2616 = vadd.f32 %v2603, %v2615
        %v2617 = vpop.f32.mrf.mxu0
        %2618 = vdwg.mxu0
        %v2619 = vadd.f32 %v2463, %v2616
        %2620 = vst [vmem:[#allocation2] sm:$0x3] %v2619
        %s2621 = sadd.s32 %s358, 8
        %s2622 = sld [smem:[#allocation5 + %s2621]]
        %v2623 = vstv %s2622
        %v2624 = vmul.f32 %v356, %v2623
        %s2625 = sshra.s32 %s2621, 7
        %s2626 = sand.u32 %s2621, 127
        %s2627 = sadd.s32 %s2625, 1
        %s2628 = smul.u32 %s2627, 128
        %s2629 = sshra.s32 %s2621, 7
        %s2630 = sand.u32 %s2621, 127
        %s2631 = sadd.s32 %s2628, %s2630
        %s2632 = sld [smem:[#allocation5 + %s2631]]
        %v2633 = vstv %s2632
        %v2634 = vmul.f32 %v357, %v2633
        %2636 = vrot.lane.b32.xlu0 %v2634, 127
        %v2637 = vpop.permute.xlu0 %2636
        %v2638 = vrot.slane %v2637, 2
        %v2639 = vsel %vm376, %v2637, %v2638
        %v2641 = vadd.f32 %v2624, %v2639
        %s2642 = sadd.s32 %s2625, 2
        %s2643 = smul.u32 %s2642, 128
        %s2644 = sadd.s32 %s2643, %s2630
        %s2645 = sld [smem:[#allocation5 + %s2644]]
        %v2646 = vstv %s2645
        %v2647 = vmul.f32 %v357, %v2646
        %2649 = vrot.lane.b32.xlu0 %v2647, 126
        %v2650 = vpop.permute.xlu0 %2649
        %v2651 = vrot.slane %v2650, 2
        %v2652 = vsel %vm390, %v2650, %v2651
        %v2654 = vadd.f32 %v2641, %v2652
        %s2655 = sadd.s32 %s2625, 3
        %s2656 = smul.u32 %s2655, 128
        %s2657 = sadd.s32 %s2656, %s2630
        %s2658 = sld [smem:[#allocation5 + %s2657]]
        %v2659 = vstv %s2658
        %v2660 = vmul.f32 %v357, %v2659
        %2662 = vrot.lane.b32.xlu0 %v2660, 112
        %v2663 = vpop.permute.xlu0 %2662
        %v2664 = vrot.slane %v2663, 2
        %v2665 = vsel %vm404, %v2663, %v2664
        %v2667 = vadd.f32 %v2654, %v2665
        %s2668 = sadd.s32 %s2625, 4
        %s2669 = smul.u32 %s2668, 128
        %s2670 = sadd.s32 %s2669, %s2630
        %s2671 = sld [smem:[#allocation5 + %s2670]]
        %v2672 = vstv %s2671
        %v2673 = vmul.f32 %v357, %v2672
        %2675 = vrot.lane.b32.xlu0 %v2673, 111
        %v2676 = vpop.permute.xlu0 %2675
        %v2677 = vrot.slane %v2676, 2
        %v2678 = vsel %vm418, %v2676, %v2677
        %v2680 = vadd.f32 %v2667, %v2678
        %s2681 = sadd.s32 %s2625, 5
        %s2682 = smul.u32 %s2681, 128
        %s2683 = sadd.s32 %s2682, %s2630
        %s2684 = sld [smem:[#allocation5 + %s2683]]
        %v2685 = vstv %s2684
        %v2686 = vmul.f32 %v357, %v2685
        %2688 = vrot.lane.b32.xlu0 %v2686, 110
        %v2689 = vpop.permute.xlu0 %2688
        %v2690 = vrot.slane %v2689, 2
        %v2691 = vsel %vm432, %v2689, %v2690
        %v2693 = vadd.f32 %v2680, %v2691
        %s2694 = sadd.s32 %s2625, 6
        %s2695 = smul.u32 %s2694, 128
        %s2696 = sadd.s32 %s2695, %s2630
        %s2697 = sld [smem:[#allocation5 + %s2696]]
        %v2698 = vstv %s2697
        %v2699 = vmul.f32 %v357, %v2698
        %2701 = vrot.lane.b32.xlu0 %v2699, 96
        %v2702 = vpop.permute.xlu0 %2701
        %v2703 = vrot.slane %v2702, 2
        %v2704 = vsel %vm446, %v2702, %v2703
        %v2706 = vadd.f32 %v2693, %v2704
        %s2707 = sadd.s32 %s2625, 7
        %s2708 = smul.u32 %s2707, 128
        %s2709 = sadd.s32 %s2708, %s2630
        %s2710 = sld [smem:[#allocation5 + %s2709]]
        %v2711 = vstv %s2710
        %v2712 = vmul.f32 %v357, %v2711
        %2714 = vrot.lane.b32.xlu0 %v2712, 95
        %v2715 = vpop.permute.xlu0 %2714
        %v2716 = vrot.slane %v2715, 2
        %v2717 = vsel %vm460, %v2715, %v2716
        %v2719 = vadd.f32 %v2706, %v2717
        %s2720 = sadd.s32 %s2625, 8
        %s2721 = smul.u32 %s2720, 128
        %s2722 = sadd.s32 %s2721, %s2630
        %s2723 = sld [smem:[#allocation5 + %s2722]]
        %v2724 = vstv %s2723
        %v2725 = vmul.f32 %v357, %v2724
        %2727 = vrot.lane.b32.xlu0 %v2725, 94
        %v2728 = vpop.permute.xlu0 %2727
        %v2729 = vrot.slane %v2728, 2
        %v2730 = vsel %vm474, %v2728, %v2729
        %v2732 = vadd.f32 %v2719, %v2730
        %s2733 = sld [smem:[#allocation8 + %s2621]]
        %v2734 = vstv %s2733
        %v2735 = vadd.f32 %v2732, %v2734
        %v2736 = vmax.f32 %v2735, 0.0
        %2738 = vst [vmem:[#allocation1] ss:$4 sm:$0xff] %v2736
        %v2739 = vld.sshfl [vmem:[#allocation1] sm:$0xff pattern:$0x73625140]
        %v2740 = vld.sshfl [vmem:[#allocation1 + $0x8] sm:$0xff pattern:$0x73625140]
        %v2743 = vpack.c.bf16 %v2739, %v2739
        %v2744 = vpack.c.bf16 %v2740, %v2740
        %v2745 = vld [vmem:[#allocation2] sm:$0x3]
        %s2746 = scalar_lea.vmem %s309, 1024 [#allocation10]
        %v2747 = vld [vmem:[%s2746] sm:$0xf]
        %v2748 = vld [vmem:[%s2746 + $0x4] sm:$0xf]
        %v2749 = vld [vmem:[%s2746 + $0x8] sm:$0xf]
        %v2750 = vld [vmem:[%s2746 + $0xc] sm:$0xf]
        %v2751 = vld [vmem:[%s2746 + $0x10] sm:$0xf]
        %v2752 = vld [vmem:[%s2746 + $0x14] sm:$0xf]
        %v2753 = vld [vmem:[%s2746 + $0x18] sm:$0xf]
        %v2754 = vld [vmem:[%s2746 + $0x1c] sm:$0xf]
        %v2755 = vld [vmem:[%s2746 + $0x20] sm:$0xf]
        %v2756 = vld [vmem:[%s2746 + $0x24] sm:$0xf]
        %v2757 = vld [vmem:[%s2746 + $0x28] sm:$0xf]
        %v2758 = vld [vmem:[%s2746 + $0x2c] sm:$0xf]
        %v2759 = vld [vmem:[%s2746 + $0x30] sm:$0xf]
        %v2760 = vld [vmem:[%s2746 + $0x34] sm:$0xf]
        %v2761 = vld [vmem:[%s2746 + $0x38] sm:$0xf]
        %v2762 = vld [vmem:[%s2746 + $0x3c] sm:$0xf]
        %v2763 = vld [vmem:[%s2746 + $0x40] sm:$0xf]
        %v2764 = vld [vmem:[%s2746 + $0x44] sm:$0xf]
        %v2765 = vld [vmem:[%s2746 + $0x48] sm:$0xf]
        %v2766 = vld [vmem:[%s2746 + $0x4c] sm:$0xf]
        %v2767 = vld [vmem:[%s2746 + $0x50] sm:$0xf]
        %v2768 = vld [vmem:[%s2746 + $0x54] sm:$0xf]
        %v2769 = vld [vmem:[%s2746 + $0x58] sm:$0xf]
        %v2770 = vld [vmem:[%s2746 + $0x5c] sm:$0xf]
        %v2771 = vld [vmem:[%s2746 + $0x60] sm:$0xf]
        %v2772 = vld [vmem:[%s2746 + $0x64] sm:$0xf]
        %v2773 = vld [vmem:[%s2746 + $0x68] sm:$0xf]
        %v2774 = vld [vmem:[%s2746 + $0x6c] sm:$0xf]
        %v2775 = vld [vmem:[%s2746 + $0x70] sm:$0xf]
        %v2776 = vld [vmem:[%s2746 + $0x74] sm:$0xf]
        %v2777 = vld [vmem:[%s2746 + $0x78] sm:$0xf]
        %v2778 = vld [vmem:[%s2746 + $0x7c] sm:$0xf]
        %v2811 = vunpack.c.l.b16 %v2747
        %v2812 = vunpack.c.l.b16 %v2748
        %v2813 = vunpack.c.l.b16 %v2749
        %v2814 = vunpack.c.l.b16 %v2750
        %v2815 = vunpack.c.l.b16 %v2751
        %v2816 = vunpack.c.l.b16 %v2752
        %v2817 = vunpack.c.l.b16 %v2753
        %v2818 = vunpack.c.l.b16 %v2754
        %v2819 = vunpack.c.l.b16 %v2755
        %v2820 = vunpack.c.l.b16 %v2756
        %v2821 = vunpack.c.l.b16 %v2757
        %v2822 = vunpack.c.l.b16 %v2758
        %v2823 = vunpack.c.l.b16 %v2759
        %v2824 = vunpack.c.l.b16 %v2760
        %v2825 = vunpack.c.l.b16 %v2761
        %v2826 = vunpack.c.l.b16 %v2762
        %v2827 = vunpack.c.l.b16 %v2763
        %v2828 = vunpack.c.l.b16 %v2764
        %v2829 = vunpack.c.l.b16 %v2765
        %v2830 = vunpack.c.l.b16 %v2766
        %v2831 = vunpack.c.l.b16 %v2767
        %v2832 = vunpack.c.l.b16 %v2768
        %v2833 = vunpack.c.l.b16 %v2769
        %v2834 = vunpack.c.l.b16 %v2770
        %v2835 = vunpack.c.l.b16 %v2771
        %v2836 = vunpack.c.l.b16 %v2772
        %v2837 = vunpack.c.l.b16 %v2773
        %v2838 = vunpack.c.l.b16 %v2774
        %v2839 = vunpack.c.l.b16 %v2775
        %v2840 = vunpack.c.l.b16 %v2776
        %v2841 = vunpack.c.l.b16 %v2777
        %v2842 = vunpack.c.l.b16 %v2778
        %v2843 = vpack.c.b16 %v2812, %v2811
        %v2844 = vpack.c.b16 %v2814, %v2813
        %v2845 = vpack.c.b16 %v2816, %v2815
        %v2846 = vpack.c.b16 %v2818, %v2817
        %v2847 = vpack.c.b16 %v2820, %v2819
        %v2848 = vpack.c.b16 %v2822, %v2821
        %v2849 = vpack.c.b16 %v2824, %v2823
        %v2850 = vpack.c.b16 %v2826, %v2825
        %v2851 = vpack.c.b16 %v2828, %v2827
        %v2852 = vpack.c.b16 %v2830, %v2829
        %v2853 = vpack.c.b16 %v2832, %v2831
        %v2854 = vpack.c.b16 %v2834, %v2833
        %v2855 = vpack.c.b16 %v2836, %v2835
        %v2856 = vpack.c.b16 %v2838, %v2837
        %v2857 = vpack.c.b16 %v2840, %v2839
        %v2858 = vpack.c.b16 %v2842, %v2841
        %2875 = vmatpush.bf16.msra.mxu0 %v2850
        %2876 = vmatpush.bf16.msra.mxu0 %v2849
        %2877 = vmatpush.bf16.msra.mxu0 %v2848
        %2878 = vmatpush.bf16.msra.mxu0 %v2847
        %2879 = vmatpush.bf16.msra.mxu0 %v2846
        %2880 = vmatpush.bf16.msra.mxu0 %v2845
        %2881 = vmatpush.bf16.msra.mxu0 %v2844
        %2882 = vmatpush.bf16.msra.mxu0 %v2843
        %2883 = vmatmul.bf16.gmra.mxu0 %v2743
        %v2884 = vpop.f32.mrf.mxu0
        %v2885 = vadd.f32 0.0, %v2884
        %v2886 = vpop.f32.mrf.mxu0
        %2887 = vdwg.mxu0
        %2888 = vmatpush.bf16.msra.mxu0 %v2858
        %2889 = vmatpush.bf16.msra.mxu0 %v2857
        %2890 = vmatpush.bf16.msra.mxu0 %v2856
        %2891 = vmatpush.bf16.msra.mxu0 %v2855
        %2892 = vmatpush.bf16.msra.mxu0 %v2854
        %2893 = vmatpush.bf16.msra.mxu0 %v2853
        %2894 = vmatpush.bf16.msra.mxu0 %v2852
        %2895 = vmatpush.bf16.msra.mxu0 %v2851
        %2896 = vmatmul.bf16.gmra.mxu0 %v2744
        %v2897 = vpop.f32.mrf.mxu0
        %v2898 = vadd.f32 %v2885, %v2897
        %v2899 = vpop.f32.mrf.mxu0
        %2900 = vdwg.mxu0
        %v2901 = vadd.f32 %v2745, %v2898
        %2902 = vst [vmem:[#allocation2] sm:$0x3] %v2901
        %s2903 = sadd.s32 %s358, 9
        %s2904 = sld [smem:[#allocation5 + %s2903]]
        %v2905 = vstv %s2904
        %v2906 = vmul.f32 %v356, %v2905
        %s2907 = sshra.s32 %s2903, 7
        %s2908 = sand.u32 %s2903, 127
        %s2909 = sadd.s32 %s2907, 1
        %s2910 = smul.u32 %s2909, 128
        %s2911 = sshra.s32 %s2903, 7
        %s2912 = sand.u32 %s2903, 127
        %s2913 = sadd.s32 %s2910, %s2912
        %s2914 = sld [smem:[#allocation5 + %s2913]]
        %v2915 = vstv %s2914
        %v2916 = vmul.f32 %v357, %v2915
        %2918 = vrot.lane.b32.xlu0 %v2916, 127
        %v2919 = vpop.permute.xlu0 %2918
        %v2920 = vrot.slane %v2919, 2
        %v2921 = vsel %vm376, %v2919, %v2920
        %v2923 = vadd.f32 %v2906, %v2921
        %s2924 = sadd.s32 %s2907, 2
        %s2925 = smul.u32 %s2924, 128
        %s2926 = sadd.s32 %s2925, %s2912
        %s2927 = sld [smem:[#allocation5 + %s2926]]
        %v2928 = vstv %s2927
        %v2929 = vmul.f32 %v357, %v2928
        %2931 = vrot.lane.b32.xlu0 %v2929, 126
        %v2932 = vpop.permute.xlu0 %2931
        %v2933 = vrot.slane %v2932, 2
        %v2934 = vsel %vm390, %v2932, %v2933
        %v2936 = vadd.f32 %v2923, %v2934
        %s2937 = sadd.s32 %s2907, 3
        %s2938 = smul.u32 %s2937, 128
        %s2939 = sadd.s32 %s2938, %s2912
        %s2940 = sld [smem:[#allocation5 + %s2939]]
        %v2941 = vstv %s2940
        %v2942 = vmul.f32 %v357, %v2941
        %2944 = vrot.lane.b32.xlu0 %v2942, 112
        %v2945 = vpop.permute.xlu0 %2944
        %v2946 = vrot.slane %v2945, 2
        %v2947 = vsel %vm404, %v2945, %v2946
        %v2949 = vadd.f32 %v2936, %v2947
        %s2950 = sadd.s32 %s2907, 4
        %s2951 = smul.u32 %s2950, 128
        %s2952 = sadd.s32 %s2951, %s2912
        %s2953 = sld [smem:[#allocation5 + %s2952]]
        %v2954 = vstv %s2953
        %v2955 = vmul.f32 %v357, %v2954
        %2957 = vrot.lane.b32.xlu0 %v2955, 111
        %v2958 = vpop.permute.xlu0 %2957
        %v2959 = vrot.slane %v2958, 2
        %v2960 = vsel %vm418, %v2958, %v2959
        %v2962 = vadd.f32 %v2949, %v2960
        %s2963 = sadd.s32 %s2907, 5
        %s2964 = smul.u32 %s2963, 128
        %s2965 = sadd.s32 %s2964, %s2912
        %s2966 = sld [smem:[#allocation5 + %s2965]]
        %v2967 = vstv %s2966
        %v2968 = vmul.f32 %v357, %v2967
        %2970 = vrot.lane.b32.xlu0 %v2968, 110
        %v2971 = vpop.permute.xlu0 %2970
        %v2972 = vrot.slane %v2971, 2
        %v2973 = vsel %vm432, %v2971, %v2972
        %v2975 = vadd.f32 %v2962, %v2973
        %s2976 = sadd.s32 %s2907, 6
        %s2977 = smul.u32 %s2976, 128
        %s2978 = sadd.s32 %s2977, %s2912
        %s2979 = sld [smem:[#allocation5 + %s2978]]
        %v2980 = vstv %s2979
        %v2981 = vmul.f32 %v357, %v2980
        %2983 = vrot.lane.b32.xlu0 %v2981, 96
        %v2984 = vpop.permute.xlu0 %2983
        %v2985 = vrot.slane %v2984, 2
        %v2986 = vsel %vm446, %v2984, %v2985
        %v2988 = vadd.f32 %v2975, %v2986
        %s2989 = sadd.s32 %s2907, 7
        %s2990 = smul.u32 %s2989, 128
        %s2991 = sadd.s32 %s2990, %s2912
        %s2992 = sld [smem:[#allocation5 + %s2991]]
        %v2993 = vstv %s2992
        %v2994 = vmul.f32 %v357, %v2993
        %2996 = vrot.lane.b32.xlu0 %v2994, 95
        %v2997 = vpop.permute.xlu0 %2996
        %v2998 = vrot.slane %v2997, 2
        %v2999 = vsel %vm460, %v2997, %v2998
        %v3001 = vadd.f32 %v2988, %v2999
        %s3002 = sadd.s32 %s2907, 8
        %s3003 = smul.u32 %s3002, 128
        %s3004 = sadd.s32 %s3003, %s2912
        %s3005 = sld [smem:[#allocation5 + %s3004]]
        %v3006 = vstv %s3005
        %v3007 = vmul.f32 %v357, %v3006
        %3009 = vrot.lane.b32.xlu0 %v3007, 94
        %v3010 = vpop.permute.xlu0 %3009
        %v3011 = vrot.slane %v3010, 2
        %v3012 = vsel %vm474, %v3010, %v3011
        %v3014 = vadd.f32 %v3001, %v3012
        %s3015 = sld [smem:[#allocation8 + %s2903]]
        %v3016 = vstv %s3015
        %v3017 = vadd.f32 %v3014, %v3016
        %v3018 = vmax.f32 %v3017, 0.0
        %3020 = vst [vmem:[#allocation1] ss:$4 sm:$0xff] %v3018
        %v3021 = vld.sshfl [vmem:[#allocation1] sm:$0xff pattern:$0x73625140]
        %v3022 = vld.sshfl [vmem:[#allocation1 + $0x8] sm:$0xff pattern:$0x73625140]
        %v3025 = vpack.c.bf16 %v3021, %v3021
        %v3026 = vpack.c.bf16 %v3022, %v3022
        %v3027 = vld [vmem:[#allocation2] sm:$0x3]
        %s3028 = scalar_lea.vmem %s309, 1152 [#allocation10]
        %v3029 = vld [vmem:[%s3028] sm:$0xf]
        %v3030 = vld [vmem:[%s3028 + $0x4] sm:$0xf]
        %v3031 = vld [vmem:[%s3028 + $0x8] sm:$0xf]
        %v3032 = vld [vmem:[%s3028 + $0xc] sm:$0xf]
        %v3033 = vld [vmem:[%s3028 + $0x10] sm:$0xf]
        %v3034 = vld [vmem:[%s3028 + $0x14] sm:$0xf]
        %v3035 = vld [vmem:[%s3028 + $0x18] sm:$0xf]
        %v3036 = vld [vmem:[%s3028 + $0x1c] sm:$0xf]
        %v3037 = vld [vmem:[%s3028 + $0x20] sm:$0xf]
        %v3038 = vld [vmem:[%s3028 + $0x24] sm:$0xf]
        %v3039 = vld [vmem:[%s3028 + $0x28] sm:$0xf]
        %v3040 = vld [vmem:[%s3028 + $0x2c] sm:$0xf]
        %v3041 = vld [vmem:[%s3028 + $0x30] sm:$0xf]
        %v3042 = vld [vmem:[%s3028 + $0x34] sm:$0xf]
        %v3043 = vld [vmem:[%s3028 + $0x38] sm:$0xf]
        %v3044 = vld [vmem:[%s3028 + $0x3c] sm:$0xf]
        %v3045 = vld [vmem:[%s3028 + $0x40] sm:$0xf]
        %v3046 = vld [vmem:[%s3028 + $0x44] sm:$0xf]
        %v3047 = vld [vmem:[%s3028 + $0x48] sm:$0xf]
        %v3048 = vld [vmem:[%s3028 + $0x4c] sm:$0xf]
        %v3049 = vld [vmem:[%s3028 + $0x50] sm:$0xf]
        %v3050 = vld [vmem:[%s3028 + $0x54] sm:$0xf]
        %v3051 = vld [vmem:[%s3028 + $0x58] sm:$0xf]
        %v3052 = vld [vmem:[%s3028 + $0x5c] sm:$0xf]
        %v3053 = vld [vmem:[%s3028 + $0x60] sm:$0xf]
        %v3054 = vld [vmem:[%s3028 + $0x64] sm:$0xf]
        %v3055 = vld [vmem:[%s3028 + $0x68] sm:$0xf]
        %v3056 = vld [vmem:[%s3028 + $0x6c] sm:$0xf]
        %v3057 = vld [vmem:[%s3028 + $0x70] sm:$0xf]
        %v3058 = vld [vmem:[%s3028 + $0x74] sm:$0xf]
        %v3059 = vld [vmem:[%s3028 + $0x78] sm:$0xf]
        %v3060 = vld [vmem:[%s3028 + $0x7c] sm:$0xf]
        %v3093 = vunpack.c.l.b16 %v3029
        %v3094 = vunpack.c.l.b16 %v3030
        %v3095 = vunpack.c.l.b16 %v3031
        %v3096 = vunpack.c.l.b16 %v3032
        %v3097 = vunpack.c.l.b16 %v3033
        %v3098 = vunpack.c.l.b16 %v3034
        %v3099 = vunpack.c.l.b16 %v3035
        %v3100 = vunpack.c.l.b16 %v3036
        %v3101 = vunpack.c.l.b16 %v3037
        %v3102 = vunpack.c.l.b16 %v3038
        %v3103 = vunpack.c.l.b16 %v3039
        %v3104 = vunpack.c.l.b16 %v3040
        %v3105 = vunpack.c.l.b16 %v3041
        %v3106 = vunpack.c.l.b16 %v3042
        %v3107 = vunpack.c.l.b16 %v3043
        %v3108 = vunpack.c.l.b16 %v3044
        %v3109 = vunpack.c.l.b16 %v3045
        %v3110 = vunpack.c.l.b16 %v3046
        %v3111 = vunpack.c.l.b16 %v3047
        %v3112 = vunpack.c.l.b16 %v3048
        %v3113 = vunpack.c.l.b16 %v3049
        %v3114 = vunpack.c.l.b16 %v3050
        %v3115 = vunpack.c.l.b16 %v3051
        %v3116 = vunpack.c.l.b16 %v3052
        %v3117 = vunpack.c.l.b16 %v3053
        %v3118 = vunpack.c.l.b16 %v3054
        %v3119 = vunpack.c.l.b16 %v3055
        %v3120 = vunpack.c.l.b16 %v3056
        %v3121 = vunpack.c.l.b16 %v3057
        %v3122 = vunpack.c.l.b16 %v3058
        %v3123 = vunpack.c.l.b16 %v3059
        %v3124 = vunpack.c.l.b16 %v3060
        %v3125 = vpack.c.b16 %v3094, %v3093
        %v3126 = vpack.c.b16 %v3096, %v3095
        %v3127 = vpack.c.b16 %v3098, %v3097
        %v3128 = vpack.c.b16 %v3100, %v3099
        %v3129 = vpack.c.b16 %v3102, %v3101
        %v3130 = vpack.c.b16 %v3104, %v3103
        %v3131 = vpack.c.b16 %v3106, %v3105
        %v3132 = vpack.c.b16 %v3108, %v3107
        %v3133 = vpack.c.b16 %v3110, %v3109
        %v3134 = vpack.c.b16 %v3112, %v3111
        %v3135 = vpack.c.b16 %v3114, %v3113
        %v3136 = vpack.c.b16 %v3116, %v3115
        %v3137 = vpack.c.b16 %v3118, %v3117
        %v3138 = vpack.c.b16 %v3120, %v3119
        %v3139 = vpack.c.b16 %v3122, %v3121
        %v3140 = vpack.c.b16 %v3124, %v3123
        %3157 = vmatpush.bf16.msra.mxu0 %v3132
        %3158 = vmatpush.bf16.msra.mxu0 %v3131
        %3159 = vmatpush.bf16.msra.mxu0 %v3130
        %3160 = vmatpush.bf16.msra.mxu0 %v3129
        %3161 = vmatpush.bf16.msra.mxu0 %v3128
        %3162 = vmatpush.bf16.msra.mxu0 %v3127
        %3163 = vmatpush.bf16.msra.mxu0 %v3126
        %3164 = vmatpush.bf16.msra.mxu0 %v3125
        %3165 = vmatmul.bf16.gmra.mxu0 %v3025
        %v3166 = vpop.f32.mrf.mxu0
        %v3167 = vadd.f32 0.0, %v3166
        %v3168 = vpop.f32.mrf.mxu0
        %3169 = vdwg.mxu0
        %3170 = vmatpush.bf16.msra.mxu0 %v3140
        %3171 = vmatpush.bf16.msra.mxu0 %v3139
        %3172 = vmatpush.bf16.msra.mxu0 %v3138
        %3173 = vmatpush.bf16.msra.mxu0 %v3137
        %3174 = vmatpush.bf16.msra.mxu0 %v3136
        %3175 = vmatpush.bf16.msra.mxu0 %v3135
        %3176 = vmatpush.bf16.msra.mxu0 %v3134
        %3177 = vmatpush.bf16.msra.mxu0 %v3133
        %3178 = vmatmul.bf16.gmra.mxu0 %v3026
        %v3179 = vpop.f32.mrf.mxu0
        %v3180 = vadd.f32 %v3167, %v3179
        %v3181 = vpop.f32.mrf.mxu0
        %3182 = vdwg.mxu0
        %v3183 = vadd.f32 %v3027, %v3180
        %3184 = vst [vmem:[#allocation2] sm:$0x3] %v3183
        %s3185 = sadd.s32 %s358, 10
        %s3186 = sld [smem:[#allocation5 + %s3185]]
        %v3187 = vstv %s3186
        %v3188 = vmul.f32 %v356, %v3187
        %s3189 = sshra.s32 %s3185, 7
        %s3190 = sand.u32 %s3185, 127
        %s3191 = sadd.s32 %s3189, 1
        %s3192 = smul.u32 %s3191, 128
        %s3193 = sshra.s32 %s3185, 7
        %s3194 = sand.u32 %s3185, 127
        %s3195 = sadd.s32 %s3192, %s3194
        %s3196 = sld [smem:[#allocation5 + %s3195]]
        %v3197 = vstv %s3196
        %v3198 = vmul.f32 %v357, %v3197
        %3200 = vrot.lane.b32.xlu0 %v3198, 127
        %v3201 = vpop.permute.xlu0 %3200
        %v3202 = vrot.slane %v3201, 2
        %v3203 = vsel %vm376, %v3201, %v3202
        %v3205 = vadd.f32 %v3188, %v3203
        %s3206 = sadd.s32 %s3189, 2
        %s3207 = smul.u32 %s3206, 128
        %s3208 = sadd.s32 %s3207, %s3194
        %s3209 = sld [smem:[#allocation5 + %s3208]]
        %v3210 = vstv %s3209
        %v3211 = vmul.f32 %v357, %v3210
        %3213 = vrot.lane.b32.xlu0 %v3211, 126
        %v3214 = vpop.permute.xlu0 %3213
        %v3215 = vrot.slane %v3214, 2
        %v3216 = vsel %vm390, %v3214, %v3215
        %v3218 = vadd.f32 %v3205, %v3216
        %s3219 = sadd.s32 %s3189, 3
        %s3220 = smul.u32 %s3219, 128
        %s3221 = sadd.s32 %s3220, %s3194
        %s3222 = sld [smem:[#allocation5 + %s3221]]
        %v3223 = vstv %s3222
        %v3224 = vmul.f32 %v357, %v3223
        %3226 = vrot.lane.b32.xlu0 %v3224, 112
        %v3227 = vpop.permute.xlu0 %3226
        %v3228 = vrot.slane %v3227, 2
        %v3229 = vsel %vm404, %v3227, %v3228
        %v3231 = vadd.f32 %v3218, %v3229
        %s3232 = sadd.s32 %s3189, 4
        %s3233 = smul.u32 %s3232, 128
        %s3234 = sadd.s32 %s3233, %s3194
        %s3235 = sld [smem:[#allocation5 + %s3234]]
        %v3236 = vstv %s3235
        %v3237 = vmul.f32 %v357, %v3236
        %3239 = vrot.lane.b32.xlu0 %v3237, 111
        %v3240 = vpop.permute.xlu0 %3239
        %v3241 = vrot.slane %v3240, 2
        %v3242 = vsel %vm418, %v3240, %v3241
        %v3244 = vadd.f32 %v3231, %v3242
        %s3245 = sadd.s32 %s3189, 5
        %s3246 = smul.u32 %s3245, 128
        %s3247 = sadd.s32 %s3246, %s3194
        %s3248 = sld [smem:[#allocation5 + %s3247]]
        %v3249 = vstv %s3248
        %v3250 = vmul.f32 %v357, %v3249
        %3252 = vrot.lane.b32.xlu0 %v3250, 110
        %v3253 = vpop.permute.xlu0 %3252
        %v3254 = vrot.slane %v3253, 2
        %v3255 = vsel %vm432, %v3253, %v3254
        %v3257 = vadd.f32 %v3244, %v3255
        %s3258 = sadd.s32 %s3189, 6
        %s3259 = smul.u32 %s3258, 128
        %s3260 = sadd.s32 %s3259, %s3194
        %s3261 = sld [smem:[#allocation5 + %s3260]]
        %v3262 = vstv %s3261
        %v3263 = vmul.f32 %v357, %v3262
        %3265 = vrot.lane.b32.xlu0 %v3263, 96
        %v3266 = vpop.permute.xlu0 %3265
        %v3267 = vrot.slane %v3266, 2
        %v3268 = vsel %vm446, %v3266, %v3267
        %v3270 = vadd.f32 %v3257, %v3268
        %s3271 = sadd.s32 %s3189, 7
        %s3272 = smul.u32 %s3271, 128
        %s3273 = sadd.s32 %s3272, %s3194
        %s3274 = sld [smem:[#allocation5 + %s3273]]
        %v3275 = vstv %s3274
        %v3276 = vmul.f32 %v357, %v3275
        %3278 = vrot.lane.b32.xlu0 %v3276, 95
        %v3279 = vpop.permute.xlu0 %3278
        %v3280 = vrot.slane %v3279, 2
        %v3281 = vsel %vm460, %v3279, %v3280
        %v3283 = vadd.f32 %v3270, %v3281
        %s3284 = sadd.s32 %s3189, 8
        %s3285 = smul.u32 %s3284, 128
        %s3286 = sadd.s32 %s3285, %s3194
        %s3287 = sld [smem:[#allocation5 + %s3286]]
        %v3288 = vstv %s3287
        %v3289 = vmul.f32 %v357, %v3288
        %3291 = vrot.lane.b32.xlu0 %v3289, 94
        %v3292 = vpop.permute.xlu0 %3291
        %v3293 = vrot.slane %v3292, 2
        %v3294 = vsel %vm474, %v3292, %v3293
        %v3296 = vadd.f32 %v3283, %v3294
        %s3297 = sld [smem:[#allocation8 + %s3185]]
        %v3298 = vstv %s3297
        %v3299 = vadd.f32 %v3296, %v3298
        %v3300 = vmax.f32 %v3299, 0.0
        %3302 = vst [vmem:[#allocation1] ss:$4 sm:$0xff] %v3300
        %v3303 = vld.sshfl [vmem:[#allocation1] sm:$0xff pattern:$0x73625140]
        %v3304 = vld.sshfl [vmem:[#allocation1 + $0x8] sm:$0xff pattern:$0x73625140]
        %v3307 = vpack.c.bf16 %v3303, %v3303
        %v3308 = vpack.c.bf16 %v3304, %v3304
        %v3309 = vld [vmem:[#allocation2] sm:$0x3]
        %s3310 = scalar_lea.vmem %s309, 1280 [#allocation10]
        %v3311 = vld [vmem:[%s3310] sm:$0xf]
        %v3312 = vld [vmem:[%s3310 + $0x4] sm:$0xf]
        %v3313 = vld [vmem:[%s3310 + $0x8] sm:$0xf]
        %v3314 = vld [vmem:[%s3310 + $0xc] sm:$0xf]
        %v3315 = vld [vmem:[%s3310 + $0x10] sm:$0xf]
        %v3316 = vld [vmem:[%s3310 + $0x14] sm:$0xf]
        %v3317 = vld [vmem:[%s3310 + $0x18] sm:$0xf]
        %v3318 = vld [vmem:[%s3310 + $0x1c] sm:$0xf]
        %v3319 = vld [vmem:[%s3310 + $0x20] sm:$0xf]
        %v3320 = vld [vmem:[%s3310 + $0x24] sm:$0xf]
        %v3321 = vld [vmem:[%s3310 + $0x28] sm:$0xf]
        %v3322 = vld [vmem:[%s3310 + $0x2c] sm:$0xf]
        %v3323 = vld [vmem:[%s3310 + $0x30] sm:$0xf]
        %v3324 = vld [vmem:[%s3310 + $0x34] sm:$0xf]
        %v3325 = vld [vmem:[%s3310 + $0x38] sm:$0xf]
        %v3326 = vld [vmem:[%s3310 + $0x3c] sm:$0xf]
        %v3327 = vld [vmem:[%s3310 + $0x40] sm:$0xf]
        %v3328 = vld [vmem:[%s3310 + $0x44] sm:$0xf]
        %v3329 = vld [vmem:[%s3310 + $0x48] sm:$0xf]
        %v3330 = vld [vmem:[%s3310 + $0x4c] sm:$0xf]
        %v3331 = vld [vmem:[%s3310 + $0x50] sm:$0xf]
        %v3332 = vld [vmem:[%s3310 + $0x54] sm:$0xf]
        %v3333 = vld [vmem:[%s3310 + $0x58] sm:$0xf]
        %v3334 = vld [vmem:[%s3310 + $0x5c] sm:$0xf]
        %v3335 = vld [vmem:[%s3310 + $0x60] sm:$0xf]
        %v3336 = vld [vmem:[%s3310 + $0x64] sm:$0xf]
        %v3337 = vld [vmem:[%s3310 + $0x68] sm:$0xf]
        %v3338 = vld [vmem:[%s3310 + $0x6c] sm:$0xf]
        %v3339 = vld [vmem:[%s3310 + $0x70] sm:$0xf]
        %v3340 = vld [vmem:[%s3310 + $0x74] sm:$0xf]
        %v3341 = vld [vmem:[%s3310 + $0x78] sm:$0xf]
        %v3342 = vld [vmem:[%s3310 + $0x7c] sm:$0xf]
        %v3375 = vunpack.c.l.b16 %v3311
        %v3376 = vunpack.c.l.b16 %v3312
        %v3377 = vunpack.c.l.b16 %v3313
        %v3378 = vunpack.c.l.b16 %v3314
        %v3379 = vunpack.c.l.b16 %v3315
        %v3380 = vunpack.c.l.b16 %v3316
        %v3381 = vunpack.c.l.b16 %v3317
        %v3382 = vunpack.c.l.b16 %v3318
        %v3383 = vunpack.c.l.b16 %v3319
        %v3384 = vunpack.c.l.b16 %v3320
        %v3385 = vunpack.c.l.b16 %v3321
        %v3386 = vunpack.c.l.b16 %v3322
        %v3387 = vunpack.c.l.b16 %v3323
        %v3388 = vunpack.c.l.b16 %v3324
        %v3389 = vunpack.c.l.b16 %v3325
        %v3390 = vunpack.c.l.b16 %v3326
        %v3391 = vunpack.c.l.b16 %v3327
        %v3392 = vunpack.c.l.b16 %v3328
        %v3393 = vunpack.c.l.b16 %v3329
        %v3394 = vunpack.c.l.b16 %v3330
        %v3395 = vunpack.c.l.b16 %v3331
        %v3396 = vunpack.c.l.b16 %v3332
        %v3397 = vunpack.c.l.b16 %v3333
        %v3398 = vunpack.c.l.b16 %v3334
        %v3399 = vunpack.c.l.b16 %v3335
        %v3400 = vunpack.c.l.b16 %v3336
        %v3401 = vunpack.c.l.b16 %v3337
        %v3402 = vunpack.c.l.b16 %v3338
        %v3403 = vunpack.c.l.b16 %v3339
        %v3404 = vunpack.c.l.b16 %v3340
        %v3405 = vunpack.c.l.b16 %v3341
        %v3406 = vunpack.c.l.b16 %v3342
        %v3407 = vpack.c.b16 %v3376, %v3375
        %v3408 = vpack.c.b16 %v3378, %v3377
        %v3409 = vpack.c.b16 %v3380, %v3379
        %v3410 = vpack.c.b16 %v3382, %v3381
        %v3411 = vpack.c.b16 %v3384, %v3383
        %v3412 = vpack.c.b16 %v3386, %v3385
        %v3413 = vpack.c.b16 %v3388, %v3387
        %v3414 = vpack.c.b16 %v3390, %v3389
        %v3415 = vpack.c.b16 %v3392, %v3391
        %v3416 = vpack.c.b16 %v3394, %v3393
        %v3417 = vpack.c.b16 %v3396, %v3395
        %v3418 = vpack.c.b16 %v3398, %v3397
        %v3419 = vpack.c.b16 %v3400, %v3399
        %v3420 = vpack.c.b16 %v3402, %v3401
        %v3421 = vpack.c.b16 %v3404, %v3403
        %v3422 = vpack.c.b16 %v3406, %v3405
        %3439 = vmatpush.bf16.msra.mxu0 %v3414
        %3440 = vmatpush.bf16.msra.mxu0 %v3413
        %3441 = vmatpush.bf16.msra.mxu0 %v3412
        %3442 = vmatpush.bf16.msra.mxu0 %v3411
        %3443 = vmatpush.bf16.msra.mxu0 %v3410
        %3444 = vmatpush.bf16.msra.mxu0 %v3409
        %3445 = vmatpush.bf16.msra.mxu0 %v3408
        %3446 = vmatpush.bf16.msra.mxu0 %v3407
        %3447 = vmatmul.bf16.gmra.mxu0 %v3307
        %v3448 = vpop.f32.mrf.mxu0
        %v3449 = vadd.f32 0.0, %v3448
        %v3450 = vpop.f32.mrf.mxu0
        %3451 = vdwg.mxu0
        %3452 = vmatpush.bf16.msra.mxu0 %v3422
        %3453 = vmatpush.bf16.msra.mxu0 %v3421
        %3454 = vmatpush.bf16.msra.mxu0 %v3420
        %3455 = vmatpush.bf16.msra.mxu0 %v3419
        %3456 = vmatpush.bf16.msra.mxu0 %v3418
        %3457 = vmatpush.bf16.msra.mxu0 %v3417
        %3458 = vmatpush.bf16.msra.mxu0 %v3416
        %3459 = vmatpush.bf16.msra.mxu0 %v3415
        %3460 = vmatmul.bf16.gmra.mxu0 %v3308
        %v3461 = vpop.f32.mrf.mxu0
        %v3462 = vadd.f32 %v3449, %v3461
        %v3463 = vpop.f32.mrf.mxu0
        %3464 = vdwg.mxu0
        %v3465 = vadd.f32 %v3309, %v3462
        %3466 = vst [vmem:[#allocation2] sm:$0x3] %v3465
        %s3467 = sadd.s32 %s358, 11
        %s3468 = sld [smem:[#allocation5 + %s3467]]
        %v3469 = vstv %s3468
        %v3470 = vmul.f32 %v356, %v3469
        %s3471 = sshra.s32 %s3467, 7
        %s3472 = sand.u32 %s3467, 127
        %s3473 = sadd.s32 %s3471, 1
        %s3474 = smul.u32 %s3473, 128
        %s3475 = sshra.s32 %s3467, 7
        %s3476 = sand.u32 %s3467, 127
        %s3477 = sadd.s32 %s3474, %s3476
        %s3478 = sld [smem:[#allocation5 + %s3477]]
        %v3479 = vstv %s3478
        %v3480 = vmul.f32 %v357, %v3479
        %3482 = vrot.lane.b32.xlu0 %v3480, 127
        %v3483 = vpop.permute.xlu0 %3482
        %v3484 = vrot.slane %v3483, 2
        %v3485 = vsel %vm376, %v3483, %v3484
        %v3487 = vadd.f32 %v3470, %v3485
        %s3488 = sadd.s32 %s3471, 2
        %s3489 = smul.u32 %s3488, 128
        %s3490 = sadd.s32 %s3489, %s3476
        %s3491 = sld [smem:[#allocation5 + %s3490]]
        %v3492 = vstv %s3491
        %v3493 = vmul.f32 %v357, %v3492
        %3495 = vrot.lane.b32.xlu0 %v3493, 126
        %v3496 = vpop.permute.xlu0 %3495
        %v3497 = vrot.slane %v3496, 2
        %v3498 = vsel %vm390, %v3496, %v3497
        %v3500 = vadd.f32 %v3487, %v3498
        %s3501 = sadd.s32 %s3471, 3
        %s3502 = smul.u32 %s3501, 128
        %s3503 = sadd.s32 %s3502, %s3476
        %s3504 = sld [smem:[#allocation5 + %s3503]]
        %v3505 = vstv %s3504
        %v3506 = vmul.f32 %v357, %v3505
        %3508 = vrot.lane.b32.xlu0 %v3506, 112
        %v3509 = vpop.permute.xlu0 %3508
        %v3510 = vrot.slane %v3509, 2
        %v3511 = vsel %vm404, %v3509, %v3510
        %v3513 = vadd.f32 %v3500, %v3511
        %s3514 = sadd.s32 %s3471, 4
        %s3515 = smul.u32 %s3514, 128
        %s3516 = sadd.s32 %s3515, %s3476
        %s3517 = sld [smem:[#allocation5 + %s3516]]
        %v3518 = vstv %s3517
        %v3519 = vmul.f32 %v357, %v3518
        %3521 = vrot.lane.b32.xlu0 %v3519, 111
        %v3522 = vpop.permute.xlu0 %3521
        %v3523 = vrot.slane %v3522, 2
        %v3524 = vsel %vm418, %v3522, %v3523
        %v3526 = vadd.f32 %v3513, %v3524
        %s3527 = sadd.s32 %s3471, 5
        %s3528 = smul.u32 %s3527, 128
        %s3529 = sadd.s32 %s3528, %s3476
        %s3530 = sld [smem:[#allocation5 + %s3529]]
        %v3531 = vstv %s3530
        %v3532 = vmul.f32 %v357, %v3531
        %3534 = vrot.lane.b32.xlu0 %v3532, 110
        %v3535 = vpop.permute.xlu0 %3534
        %v3536 = vrot.slane %v3535, 2
        %v3537 = vsel %vm432, %v3535, %v3536
        %v3539 = vadd.f32 %v3526, %v3537
        %s3540 = sadd.s32 %s3471, 6
        %s3541 = smul.u32 %s3540, 128
        %s3542 = sadd.s32 %s3541, %s3476
        %s3543 = sld [smem:[#allocation5 + %s3542]]
        %v3544 = vstv %s3543
        %v3545 = vmul.f32 %v357, %v3544
        %3547 = vrot.lane.b32.xlu0 %v3545, 96
        %v3548 = vpop.permute.xlu0 %3547
        %v3549 = vrot.slane %v3548, 2
        %v3550 = vsel %vm446, %v3548, %v3549
        %v3552 = vadd.f32 %v3539, %v3550
        %s3553 = sadd.s32 %s3471, 7
        %s3554 = smul.u32 %s3553, 128
        %s3555 = sadd.s32 %s3554, %s3476
        %s3556 = sld [smem:[#allocation5 + %s3555]]
        %v3557 = vstv %s3556
        %v3558 = vmul.f32 %v357, %v3557
        %3560 = vrot.lane.b32.xlu0 %v3558, 95
        %v3561 = vpop.permute.xlu0 %3560
        %v3562 = vrot.slane %v3561, 2
        %v3563 = vsel %vm460, %v3561, %v3562
        %v3565 = vadd.f32 %v3552, %v3563
        %s3566 = sadd.s32 %s3471, 8
        %s3567 = smul.u32 %s3566, 128
        %s3568 = sadd.s32 %s3567, %s3476
        %s3569 = sld [smem:[#allocation5 + %s3568]]
        %v3570 = vstv %s3569
        %v3571 = vmul.f32 %v357, %v3570
        %3573 = vrot.lane.b32.xlu0 %v3571, 94
        %v3574 = vpop.permute.xlu0 %3573
        %v3575 = vrot.slane %v3574, 2
        %v3576 = vsel %vm474, %v3574, %v3575
        %v3578 = vadd.f32 %v3565, %v3576
        %s3579 = sld [smem:[#allocation8 + %s3467]]
        %v3580 = vstv %s3579
        %v3581 = vadd.f32 %v3578, %v3580
        %v3582 = vmax.f32 %v3581, 0.0
        %3584 = vst [vmem:[#allocation1] ss:$4 sm:$0xff] %v3582
        %v3585 = vld.sshfl [vmem:[#allocation1] sm:$0xff pattern:$0x73625140]
        %v3586 = vld.sshfl [vmem:[#allocation1 + $0x8] sm:$0xff pattern:$0x73625140]
        %v3589 = vpack.c.bf16 %v3585, %v3585
        %v3590 = vpack.c.bf16 %v3586, %v3586
        %v3591 = vld [vmem:[#allocation2] sm:$0x3]
        %s3592 = scalar_lea.vmem %s309, 1408 [#allocation10]
        %v3593 = vld [vmem:[%s3592] sm:$0xf]
        %v3594 = vld [vmem:[%s3592 + $0x4] sm:$0xf]
        %v3595 = vld [vmem:[%s3592 + $0x8] sm:$0xf]
        %v3596 = vld [vmem:[%s3592 + $0xc] sm:$0xf]
        %v3597 = vld [vmem:[%s3592 + $0x10] sm:$0xf]
        %v3598 = vld [vmem:[%s3592 + $0x14] sm:$0xf]
        %v3599 = vld [vmem:[%s3592 + $0x18] sm:$0xf]
        %v3600 = vld [vmem:[%s3592 + $0x1c] sm:$0xf]
        %v3601 = vld [vmem:[%s3592 + $0x20] sm:$0xf]
        %v3602 = vld [vmem:[%s3592 + $0x24] sm:$0xf]
        %v3603 = vld [vmem:[%s3592 + $0x28] sm:$0xf]
        %v3604 = vld [vmem:[%s3592 + $0x2c] sm:$0xf]
        %v3605 = vld [vmem:[%s3592 + $0x30] sm:$0xf]
        %v3606 = vld [vmem:[%s3592 + $0x34] sm:$0xf]
        %v3607 = vld [vmem:[%s3592 + $0x38] sm:$0xf]
        %v3608 = vld [vmem:[%s3592 + $0x3c] sm:$0xf]
        %v3609 = vld [vmem:[%s3592 + $0x40] sm:$0xf]
        %v3610 = vld [vmem:[%s3592 + $0x44] sm:$0xf]
        %v3611 = vld [vmem:[%s3592 + $0x48] sm:$0xf]
        %v3612 = vld [vmem:[%s3592 + $0x4c] sm:$0xf]
        %v3613 = vld [vmem:[%s3592 + $0x50] sm:$0xf]
        %v3614 = vld [vmem:[%s3592 + $0x54] sm:$0xf]
        %v3615 = vld [vmem:[%s3592 + $0x58] sm:$0xf]
        %v3616 = vld [vmem:[%s3592 + $0x5c] sm:$0xf]
        %v3617 = vld [vmem:[%s3592 + $0x60] sm:$0xf]
        %v3618 = vld [vmem:[%s3592 + $0x64] sm:$0xf]
        %v3619 = vld [vmem:[%s3592 + $0x68] sm:$0xf]
        %v3620 = vld [vmem:[%s3592 + $0x6c] sm:$0xf]
        %v3621 = vld [vmem:[%s3592 + $0x70] sm:$0xf]
        %v3622 = vld [vmem:[%s3592 + $0x74] sm:$0xf]
        %v3623 = vld [vmem:[%s3592 + $0x78] sm:$0xf]
        %v3624 = vld [vmem:[%s3592 + $0x7c] sm:$0xf]
        %v3657 = vunpack.c.l.b16 %v3593
        %v3658 = vunpack.c.l.b16 %v3594
        %v3659 = vunpack.c.l.b16 %v3595
        %v3660 = vunpack.c.l.b16 %v3596
        %v3661 = vunpack.c.l.b16 %v3597
        %v3662 = vunpack.c.l.b16 %v3598
        %v3663 = vunpack.c.l.b16 %v3599
        %v3664 = vunpack.c.l.b16 %v3600
        %v3665 = vunpack.c.l.b16 %v3601
        %v3666 = vunpack.c.l.b16 %v3602
        %v3667 = vunpack.c.l.b16 %v3603
        %v3668 = vunpack.c.l.b16 %v3604
        %v3669 = vunpack.c.l.b16 %v3605
        %v3670 = vunpack.c.l.b16 %v3606
        %v3671 = vunpack.c.l.b16 %v3607
        %v3672 = vunpack.c.l.b16 %v3608
        %v3673 = vunpack.c.l.b16 %v3609
        %v3674 = vunpack.c.l.b16 %v3610
        %v3675 = vunpack.c.l.b16 %v3611
        %v3676 = vunpack.c.l.b16 %v3612
        %v3677 = vunpack.c.l.b16 %v3613
        %v3678 = vunpack.c.l.b16 %v3614
        %v3679 = vunpack.c.l.b16 %v3615
        %v3680 = vunpack.c.l.b16 %v3616
        %v3681 = vunpack.c.l.b16 %v3617
        %v3682 = vunpack.c.l.b16 %v3618
        %v3683 = vunpack.c.l.b16 %v3619
        %v3684 = vunpack.c.l.b16 %v3620
        %v3685 = vunpack.c.l.b16 %v3621
        %v3686 = vunpack.c.l.b16 %v3622
        %v3687 = vunpack.c.l.b16 %v3623
        %v3688 = vunpack.c.l.b16 %v3624
        %v3689 = vpack.c.b16 %v3658, %v3657
        %v3690 = vpack.c.b16 %v3660, %v3659
        %v3691 = vpack.c.b16 %v3662, %v3661
        %v3692 = vpack.c.b16 %v3664, %v3663
        %v3693 = vpack.c.b16 %v3666, %v3665
        %v3694 = vpack.c.b16 %v3668, %v3667
        %v3695 = vpack.c.b16 %v3670, %v3669
        %v3696 = vpack.c.b16 %v3672, %v3671
        %v3697 = vpack.c.b16 %v3674, %v3673
        %v3698 = vpack.c.b16 %v3676, %v3675
        %v3699 = vpack.c.b16 %v3678, %v3677
        %v3700 = vpack.c.b16 %v3680, %v3679
        %v3701 = vpack.c.b16 %v3682, %v3681
        %v3702 = vpack.c.b16 %v3684, %v3683
        %v3703 = vpack.c.b16 %v3686, %v3685
        %v3704 = vpack.c.b16 %v3688, %v3687
        %3721 = vmatpush.bf16.msra.mxu0 %v3696
        %3722 = vmatpush.bf16.msra.mxu0 %v3695
        %3723 = vmatpush.bf16.msra.mxu0 %v3694
        %3724 = vmatpush.bf16.msra.mxu0 %v3693
        %3725 = vmatpush.bf16.msra.mxu0 %v3692
        %3726 = vmatpush.bf16.msra.mxu0 %v3691
        %3727 = vmatpush.bf16.msra.mxu0 %v3690
        %3728 = vmatpush.bf16.msra.mxu0 %v3689
        %3729 = vmatmul.bf16.gmra.mxu0 %v3589
        %v3730 = vpop.f32.mrf.mxu0
        %v3731 = vadd.f32 0.0, %v3730
        %v3732 = vpop.f32.mrf.mxu0
        %3733 = vdwg.mxu0
        %3734 = vmatpush.bf16.msra.mxu0 %v3704
        %3735 = vmatpush.bf16.msra.mxu0 %v3703
        %3736 = vmatpush.bf16.msra.mxu0 %v3702
        %3737 = vmatpush.bf16.msra.mxu0 %v3701
        %3738 = vmatpush.bf16.msra.mxu0 %v3700
        %3739 = vmatpush.bf16.msra.mxu0 %v3699
        %3740 = vmatpush.bf16.msra.mxu0 %v3698
        %3741 = vmatpush.bf16.msra.mxu0 %v3697
        %3742 = vmatmul.bf16.gmra.mxu0 %v3590
        %v3743 = vpop.f32.mrf.mxu0
        %v3744 = vadd.f32 %v3731, %v3743
        %v3745 = vpop.f32.mrf.mxu0
        %3746 = vdwg.mxu0
        %v3747 = vadd.f32 %v3591, %v3744
        %3748 = vst [vmem:[#allocation2] sm:$0x3] %v3747
        %s3749 = sadd.s32 %s358, 12
        %s3750 = sld [smem:[#allocation5 + %s3749]]
        %v3751 = vstv %s3750
        %v3752 = vmul.f32 %v356, %v3751
        %s3753 = sshra.s32 %s3749, 7
        %s3754 = sand.u32 %s3749, 127
        %s3755 = sadd.s32 %s3753, 1
        %s3756 = smul.u32 %s3755, 128
        %s3757 = sshra.s32 %s3749, 7
        %s3758 = sand.u32 %s3749, 127
        %s3759 = sadd.s32 %s3756, %s3758
        %s3760 = sld [smem:[#allocation5 + %s3759]]
        %v3761 = vstv %s3760
        %v3762 = vmul.f32 %v357, %v3761
        %3764 = vrot.lane.b32.xlu0 %v3762, 127
        %v3765 = vpop.permute.xlu0 %3764
        %v3766 = vrot.slane %v3765, 2
        %v3767 = vsel %vm376, %v3765, %v3766
        %v3769 = vadd.f32 %v3752, %v3767
        %s3770 = sadd.s32 %s3753, 2
        %s3771 = smul.u32 %s3770, 128
        %s3772 = sadd.s32 %s3771, %s3758
        %s3773 = sld [smem:[#allocation5 + %s3772]]
        %v3774 = vstv %s3773
        %v3775 = vmul.f32 %v357, %v3774
        %3777 = vrot.lane.b32.xlu0 %v3775, 126
        %v3778 = vpop.permute.xlu0 %3777
        %v3779 = vrot.slane %v3778, 2
        %v3780 = vsel %vm390, %v3778, %v3779
        %v3782 = vadd.f32 %v3769, %v3780
        %s3783 = sadd.s32 %s3753, 3
        %s3784 = smul.u32 %s3783, 128
        %s3785 = sadd.s32 %s3784, %s3758
        %s3786 = sld [smem:[#allocation5 + %s3785]]
        %v3787 = vstv %s3786
        %v3788 = vmul.f32 %v357, %v3787
        %3790 = vrot.lane.b32.xlu0 %v3788, 112
        %v3791 = vpop.permute.xlu0 %3790
        %v3792 = vrot.slane %v3791, 2
        %v3793 = vsel %vm404, %v3791, %v3792
        %v3795 = vadd.f32 %v3782, %v3793
        %s3796 = sadd.s32 %s3753, 4
        %s3797 = smul.u32 %s3796, 128
        %s3798 = sadd.s32 %s3797, %s3758
        %s3799 = sld [smem:[#allocation5 + %s3798]]
        %v3800 = vstv %s3799
        %v3801 = vmul.f32 %v357, %v3800
        %3803 = vrot.lane.b32.xlu0 %v3801, 111
        %v3804 = vpop.permute.xlu0 %3803
        %v3805 = vrot.slane %v3804, 2
        %v3806 = vsel %vm418, %v3804, %v3805
        %v3808 = vadd.f32 %v3795, %v3806
        %s3809 = sadd.s32 %s3753, 5
        %s3810 = smul.u32 %s3809, 128
        %s3811 = sadd.s32 %s3810, %s3758
        %s3812 = sld [smem:[#allocation5 + %s3811]]
        %v3813 = vstv %s3812
        %v3814 = vmul.f32 %v357, %v3813
        %3816 = vrot.lane.b32.xlu0 %v3814, 110
        %v3817 = vpop.permute.xlu0 %3816
        %v3818 = vrot.slane %v3817, 2
        %v3819 = vsel %vm432, %v3817, %v3818
        %v3821 = vadd.f32 %v3808, %v3819
        %s3822 = sadd.s32 %s3753, 6
        %s3823 = smul.u32 %s3822, 128
        %s3824 = sadd.s32 %s3823, %s3758
        %s3825 = sld [smem:[#allocation5 + %s3824]]
        %v3826 = vstv %s3825
        %v3827 = vmul.f32 %v357, %v3826
        %3829 = vrot.lane.b32.xlu0 %v3827, 96
        %v3830 = vpop.permute.xlu0 %3829
        %v3831 = vrot.slane %v3830, 2
        %v3832 = vsel %vm446, %v3830, %v3831
        %v3834 = vadd.f32 %v3821, %v3832
        %s3835 = sadd.s32 %s3753, 7
        %s3836 = smul.u32 %s3835, 128
        %s3837 = sadd.s32 %s3836, %s3758
        %s3838 = sld [smem:[#allocation5 + %s3837]]
        %v3839 = vstv %s3838
        %v3840 = vmul.f32 %v357, %v3839
        %3842 = vrot.lane.b32.xlu0 %v3840, 95
        %v3843 = vpop.permute.xlu0 %3842
        %v3844 = vrot.slane %v3843, 2
        %v3845 = vsel %vm460, %v3843, %v3844
        %v3847 = vadd.f32 %v3834, %v3845
        %s3848 = sadd.s32 %s3753, 8
        %s3849 = smul.u32 %s3848, 128
        %s3850 = sadd.s32 %s3849, %s3758
        %s3851 = sld [smem:[#allocation5 + %s3850]]
        %v3852 = vstv %s3851
        %v3853 = vmul.f32 %v357, %v3852
        %3855 = vrot.lane.b32.xlu0 %v3853, 94
        %v3856 = vpop.permute.xlu0 %3855
        %v3857 = vrot.slane %v3856, 2
        %v3858 = vsel %vm474, %v3856, %v3857
        %v3860 = vadd.f32 %v3847, %v3858
        %s3861 = sld [smem:[#allocation8 + %s3749]]
        %v3862 = vstv %s3861
        %v3863 = vadd.f32 %v3860, %v3862
        %v3864 = vmax.f32 %v3863, 0.0
        %3866 = vst [vmem:[#allocation1] ss:$4 sm:$0xff] %v3864
        %v3867 = vld.sshfl [vmem:[#allocation1] sm:$0xff pattern:$0x73625140]
        %v3868 = vld.sshfl [vmem:[#allocation1 + $0x8] sm:$0xff pattern:$0x73625140]
        %v3871 = vpack.c.bf16 %v3867, %v3867
        %v3872 = vpack.c.bf16 %v3868, %v3868
        %v3873 = vld [vmem:[#allocation2] sm:$0x3]
        %s3874 = scalar_lea.vmem %s309, 1536 [#allocation10]
        %v3875 = vld [vmem:[%s3874] sm:$0xf]
        %v3876 = vld [vmem:[%s3874 + $0x4] sm:$0xf]
        %v3877 = vld [vmem:[%s3874 + $0x8] sm:$0xf]
        %v3878 = vld [vmem:[%s3874 + $0xc] sm:$0xf]
        %v3879 = vld [vmem:[%s3874 + $0x10] sm:$0xf]
        %v3880 = vld [vmem:[%s3874 + $0x14] sm:$0xf]
        %v3881 = vld [vmem:[%s3874 + $0x18] sm:$0xf]
        %v3882 = vld [vmem:[%s3874 + $0x1c] sm:$0xf]
        %v3883 = vld [vmem:[%s3874 + $0x20] sm:$0xf]
        %v3884 = vld [vmem:[%s3874 + $0x24] sm:$0xf]
        %v3885 = vld [vmem:[%s3874 + $0x28] sm:$0xf]
        %v3886 = vld [vmem:[%s3874 + $0x2c] sm:$0xf]
        %v3887 = vld [vmem:[%s3874 + $0x30] sm:$0xf]
        %v3888 = vld [vmem:[%s3874 + $0x34] sm:$0xf]
        %v3889 = vld [vmem:[%s3874 + $0x38] sm:$0xf]
        %v3890 = vld [vmem:[%s3874 + $0x3c] sm:$0xf]
        %v3891 = vld [vmem:[%s3874 + $0x40] sm:$0xf]
        %v3892 = vld [vmem:[%s3874 + $0x44] sm:$0xf]
        %v3893 = vld [vmem:[%s3874 + $0x48] sm:$0xf]
        %v3894 = vld [vmem:[%s3874 + $0x4c] sm:$0xf]
        %v3895 = vld [vmem:[%s3874 + $0x50] sm:$0xf]
        %v3896 = vld [vmem:[%s3874 + $0x54] sm:$0xf]
        %v3897 = vld [vmem:[%s3874 + $0x58] sm:$0xf]
        %v3898 = vld [vmem:[%s3874 + $0x5c] sm:$0xf]
        %v3899 = vld [vmem:[%s3874 + $0x60] sm:$0xf]
        %v3900 = vld [vmem:[%s3874 + $0x64] sm:$0xf]
        %v3901 = vld [vmem:[%s3874 + $0x68] sm:$0xf]
        %v3902 = vld [vmem:[%s3874 + $0x6c] sm:$0xf]
        %v3903 = vld [vmem:[%s3874 + $0x70] sm:$0xf]
        %v3904 = vld [vmem:[%s3874 + $0x74] sm:$0xf]
        %v3905 = vld [vmem:[%s3874 + $0x78] sm:$0xf]
        %v3906 = vld [vmem:[%s3874 + $0x7c] sm:$0xf]
        %v3939 = vunpack.c.l.b16 %v3875
        %v3940 = vunpack.c.l.b16 %v3876
        %v3941 = vunpack.c.l.b16 %v3877
        %v3942 = vunpack.c.l.b16 %v3878
        %v3943 = vunpack.c.l.b16 %v3879
        %v3944 = vunpack.c.l.b16 %v3880
        %v3945 = vunpack.c.l.b16 %v3881
        %v3946 = vunpack.c.l.b16 %v3882
        %v3947 = vunpack.c.l.b16 %v3883
        %v3948 = vunpack.c.l.b16 %v3884
        %v3949 = vunpack.c.l.b16 %v3885
        %v3950 = vunpack.c.l.b16 %v3886
        %v3951 = vunpack.c.l.b16 %v3887
        %v3952 = vunpack.c.l.b16 %v3888
        %v3953 = vunpack.c.l.b16 %v3889
        %v3954 = vunpack.c.l.b16 %v3890
        %v3955 = vunpack.c.l.b16 %v3891
        %v3956 = vunpack.c.l.b16 %v3892
        %v3957 = vunpack.c.l.b16 %v3893
        %v3958 = vunpack.c.l.b16 %v3894
        %v3959 = vunpack.c.l.b16 %v3895
        %v3960 = vunpack.c.l.b16 %v3896
        %v3961 = vunpack.c.l.b16 %v3897
        %v3962 = vunpack.c.l.b16 %v3898
        %v3963 = vunpack.c.l.b16 %v3899
        %v3964 = vunpack.c.l.b16 %v3900
        %v3965 = vunpack.c.l.b16 %v3901
        %v3966 = vunpack.c.l.b16 %v3902
        %v3967 = vunpack.c.l.b16 %v3903
        %v3968 = vunpack.c.l.b16 %v3904
        %v3969 = vunpack.c.l.b16 %v3905
        %v3970 = vunpack.c.l.b16 %v3906
        %v3971 = vpack.c.b16 %v3940, %v3939
        %v3972 = vpack.c.b16 %v3942, %v3941
        %v3973 = vpack.c.b16 %v3944, %v3943
        %v3974 = vpack.c.b16 %v3946, %v3945
        %v3975 = vpack.c.b16 %v3948, %v3947
        %v3976 = vpack.c.b16 %v3950, %v3949
        %v3977 = vpack.c.b16 %v3952, %v3951
        %v3978 = vpack.c.b16 %v3954, %v3953
        %v3979 = vpack.c.b16 %v3956, %v3955
        %v3980 = vpack.c.b16 %v3958, %v3957
        %v3981 = vpack.c.b16 %v3960, %v3959
        %v3982 = vpack.c.b16 %v3962, %v3961
        %v3983 = vpack.c.b16 %v3964, %v3963
        %v3984 = vpack.c.b16 %v3966, %v3965
        %v3985 = vpack.c.b16 %v3968, %v3967
        %v3986 = vpack.c.b16 %v3970, %v3969
        %4003 = vmatpush.bf16.msra.mxu0 %v3978
        %4004 = vmatpush.bf16.msra.mxu0 %v3977
        %4005 = vmatpush.bf16.msra.mxu0 %v3976
        %4006 = vmatpush.bf16.msra.mxu0 %v3975
        %4007 = vmatpush.bf16.msra.mxu0 %v3974
        %4008 = vmatpush.bf16.msra.mxu0 %v3973
        %4009 = vmatpush.bf16.msra.mxu0 %v3972
        %4010 = vmatpush.bf16.msra.mxu0 %v3971
        %4011 = vmatmul.bf16.gmra.mxu0 %v3871
        %v4012 = vpop.f32.mrf.mxu0
        %v4013 = vadd.f32 0.0, %v4012
        %v4014 = vpop.f32.mrf.mxu0
        %4015 = vdwg.mxu0
        %4016 = vmatpush.bf16.msra.mxu0 %v3986
        %4017 = vmatpush.bf16.msra.mxu0 %v3985
        %4018 = vmatpush.bf16.msra.mxu0 %v3984
        %4019 = vmatpush.bf16.msra.mxu0 %v3983
        %4020 = vmatpush.bf16.msra.mxu0 %v3982
        %4021 = vmatpush.bf16.msra.mxu0 %v3981
        %4022 = vmatpush.bf16.msra.mxu0 %v3980
        %4023 = vmatpush.bf16.msra.mxu0 %v3979
        %4024 = vmatmul.bf16.gmra.mxu0 %v3872
        %v4025 = vpop.f32.mrf.mxu0
        %v4026 = vadd.f32 %v4013, %v4025
        %v4027 = vpop.f32.mrf.mxu0
        %4028 = vdwg.mxu0
        %v4029 = vadd.f32 %v3873, %v4026
        %4030 = vst [vmem:[#allocation2] sm:$0x3] %v4029
        %s4031 = sadd.s32 %s358, 13
        %s4032 = sld [smem:[#allocation5 + %s4031]]
        %v4033 = vstv %s4032
        %v4034 = vmul.f32 %v356, %v4033
        %s4035 = sshra.s32 %s4031, 7
        %s4036 = sand.u32 %s4031, 127
        %s4037 = sadd.s32 %s4035, 1
        %s4038 = smul.u32 %s4037, 128
        %s4039 = sshra.s32 %s4031, 7
        %s4040 = sand.u32 %s4031, 127
        %s4041 = sadd.s32 %s4038, %s4040
        %s4042 = sld [smem:[#allocation5 + %s4041]]
        %v4043 = vstv %s4042
        %v4044 = vmul.f32 %v357, %v4043
        %4046 = vrot.lane.b32.xlu0 %v4044, 127
        %v4047 = vpop.permute.xlu0 %4046
        %v4048 = vrot.slane %v4047, 2
        %v4049 = vsel %vm376, %v4047, %v4048
        %v4051 = vadd.f32 %v4034, %v4049
        %s4052 = sadd.s32 %s4035, 2
        %s4053 = smul.u32 %s4052, 128
        %s4054 = sadd.s32 %s4053, %s4040
        %s4055 = sld [smem:[#allocation5 + %s4054]]
        %v4056 = vstv %s4055
        %v4057 = vmul.f32 %v357, %v4056
        %4059 = vrot.lane.b32.xlu0 %v4057, 126
        %v4060 = vpop.permute.xlu0 %4059
        %v4061 = vrot.slane %v4060, 2
        %v4062 = vsel %vm390, %v4060, %v4061
        %v4064 = vadd.f32 %v4051, %v4062
        %s4065 = sadd.s32 %s4035, 3
        %s4066 = smul.u32 %s4065, 128
        %s4067 = sadd.s32 %s4066, %s4040
        %s4068 = sld [smem:[#allocation5 + %s4067]]
        %v4069 = vstv %s4068
        %v4070 = vmul.f32 %v357, %v4069
        %4072 = vrot.lane.b32.xlu0 %v4070, 112
        %v4073 = vpop.permute.xlu0 %4072
        %v4074 = vrot.slane %v4073, 2
        %v4075 = vsel %vm404, %v4073, %v4074
        %v4077 = vadd.f32 %v4064, %v4075
        %s4078 = sadd.s32 %s4035, 4
        %s4079 = smul.u32 %s4078, 128
        %s4080 = sadd.s32 %s4079, %s4040
        %s4081 = sld [smem:[#allocation5 + %s4080]]
        %v4082 = vstv %s4081
        %v4083 = vmul.f32 %v357, %v4082
        %4085 = vrot.lane.b32.xlu0 %v4083, 111
        %v4086 = vpop.permute.xlu0 %4085
        %v4087 = vrot.slane %v4086, 2
        %v4088 = vsel %vm418, %v4086, %v4087
        %v4090 = vadd.f32 %v4077, %v4088
        %s4091 = sadd.s32 %s4035, 5
        %s4092 = smul.u32 %s4091, 128
        %s4093 = sadd.s32 %s4092, %s4040
        %s4094 = sld [smem:[#allocation5 + %s4093]]
        %v4095 = vstv %s4094
        %v4096 = vmul.f32 %v357, %v4095
        %4098 = vrot.lane.b32.xlu0 %v4096, 110
        %v4099 = vpop.permute.xlu0 %4098
        %v4100 = vrot.slane %v4099, 2
        %v4101 = vsel %vm432, %v4099, %v4100
        %v4103 = vadd.f32 %v4090, %v4101
        %s4104 = sadd.s32 %s4035, 6
        %s4105 = smul.u32 %s4104, 128
        %s4106 = sadd.s32 %s4105, %s4040
        %s4107 = sld [smem:[#allocation5 + %s4106]]
        %v4108 = vstv %s4107
        %v4109 = vmul.f32 %v357, %v4108
        %4111 = vrot.lane.b32.xlu0 %v4109, 96
        %v4112 = vpop.permute.xlu0 %4111
        %v4113 = vrot.slane %v4112, 2
        %v4114 = vsel %vm446, %v4112, %v4113
        %v4116 = vadd.f32 %v4103, %v4114
        %s4117 = sadd.s32 %s4035, 7
        %s4118 = smul.u32 %s4117, 128
        %s4119 = sadd.s32 %s4118, %s4040
        %s4120 = sld [smem:[#allocation5 + %s4119]]
        %v4121 = vstv %s4120
        %v4122 = vmul.f32 %v357, %v4121
        %4124 = vrot.lane.b32.xlu0 %v4122, 95
        %v4125 = vpop.permute.xlu0 %4124
        %v4126 = vrot.slane %v4125, 2
        %v4127 = vsel %vm460, %v4125, %v4126
        %v4129 = vadd.f32 %v4116, %v4127
        %s4130 = sadd.s32 %s4035, 8
        %s4131 = smul.u32 %s4130, 128
        %s4132 = sadd.s32 %s4131, %s4040
        %s4133 = sld [smem:[#allocation5 + %s4132]]
        %v4134 = vstv %s4133
        %v4135 = vmul.f32 %v357, %v4134
        %4137 = vrot.lane.b32.xlu0 %v4135, 94
        %v4138 = vpop.permute.xlu0 %4137
        %v4139 = vrot.slane %v4138, 2
        %v4140 = vsel %vm474, %v4138, %v4139
        %v4142 = vadd.f32 %v4129, %v4140
        %s4143 = sld [smem:[#allocation8 + %s4031]]
        %v4144 = vstv %s4143
        %v4145 = vadd.f32 %v4142, %v4144
        %v4146 = vmax.f32 %v4145, 0.0
        %4148 = vst [vmem:[#allocation1] ss:$4 sm:$0xff] %v4146
        %v4149 = vld.sshfl [vmem:[#allocation1] sm:$0xff pattern:$0x73625140]
        %v4150 = vld.sshfl [vmem:[#allocation1 + $0x8] sm:$0xff pattern:$0x73625140]
        %v4153 = vpack.c.bf16 %v4149, %v4149
        %v4154 = vpack.c.bf16 %v4150, %v4150
        %v4155 = vld [vmem:[#allocation2] sm:$0x3]
        %s4156 = scalar_lea.vmem %s309, 1664 [#allocation10]
        %v4157 = vld [vmem:[%s4156] sm:$0xf]
        %v4158 = vld [vmem:[%s4156 + $0x4] sm:$0xf]
        %v4159 = vld [vmem:[%s4156 + $0x8] sm:$0xf]
        %v4160 = vld [vmem:[%s4156 + $0xc] sm:$0xf]
        %v4161 = vld [vmem:[%s4156 + $0x10] sm:$0xf]
        %v4162 = vld [vmem:[%s4156 + $0x14] sm:$0xf]
        %v4163 = vld [vmem:[%s4156 + $0x18] sm:$0xf]
        %v4164 = vld [vmem:[%s4156 + $0x1c] sm:$0xf]
        %v4165 = vld [vmem:[%s4156 + $0x20] sm:$0xf]
        %v4166 = vld [vmem:[%s4156 + $0x24] sm:$0xf]
        %v4167 = vld [vmem:[%s4156 + $0x28] sm:$0xf]
        %v4168 = vld [vmem:[%s4156 + $0x2c] sm:$0xf]
        %v4169 = vld [vmem:[%s4156 + $0x30] sm:$0xf]
        %v4170 = vld [vmem:[%s4156 + $0x34] sm:$0xf]
        %v4171 = vld [vmem:[%s4156 + $0x38] sm:$0xf]
        %v4172 = vld [vmem:[%s4156 + $0x3c] sm:$0xf]
        %v4173 = vld [vmem:[%s4156 + $0x40] sm:$0xf]
        %v4174 = vld [vmem:[%s4156 + $0x44] sm:$0xf]
        %v4175 = vld [vmem:[%s4156 + $0x48] sm:$0xf]
        %v4176 = vld [vmem:[%s4156 + $0x4c] sm:$0xf]
        %v4177 = vld [vmem:[%s4156 + $0x50] sm:$0xf]
        %v4178 = vld [vmem:[%s4156 + $0x54] sm:$0xf]
        %v4179 = vld [vmem:[%s4156 + $0x58] sm:$0xf]
        %v4180 = vld [vmem:[%s4156 + $0x5c] sm:$0xf]
        %v4181 = vld [vmem:[%s4156 + $0x60] sm:$0xf]
        %v4182 = vld [vmem:[%s4156 + $0x64] sm:$0xf]
        %v4183 = vld [vmem:[%s4156 + $0x68] sm:$0xf]
        %v4184 = vld [vmem:[%s4156 + $0x6c] sm:$0xf]
        %v4185 = vld [vmem:[%s4156 + $0x70] sm:$0xf]
        %v4186 = vld [vmem:[%s4156 + $0x74] sm:$0xf]
        %v4187 = vld [vmem:[%s4156 + $0x78] sm:$0xf]
        %v4188 = vld [vmem:[%s4156 + $0x7c] sm:$0xf]
        %v4221 = vunpack.c.l.b16 %v4157
        %v4222 = vunpack.c.l.b16 %v4158
        %v4223 = vunpack.c.l.b16 %v4159
        %v4224 = vunpack.c.l.b16 %v4160
        %v4225 = vunpack.c.l.b16 %v4161
        %v4226 = vunpack.c.l.b16 %v4162
        %v4227 = vunpack.c.l.b16 %v4163
        %v4228 = vunpack.c.l.b16 %v4164
        %v4229 = vunpack.c.l.b16 %v4165
        %v4230 = vunpack.c.l.b16 %v4166
        %v4231 = vunpack.c.l.b16 %v4167
        %v4232 = vunpack.c.l.b16 %v4168
        %v4233 = vunpack.c.l.b16 %v4169
        %v4234 = vunpack.c.l.b16 %v4170
        %v4235 = vunpack.c.l.b16 %v4171
        %v4236 = vunpack.c.l.b16 %v4172
        %v4237 = vunpack.c.l.b16 %v4173
        %v4238 = vunpack.c.l.b16 %v4174
        %v4239 = vunpack.c.l.b16 %v4175
        %v4240 = vunpack.c.l.b16 %v4176
        %v4241 = vunpack.c.l.b16 %v4177
        %v4242 = vunpack.c.l.b16 %v4178
        %v4243 = vunpack.c.l.b16 %v4179
        %v4244 = vunpack.c.l.b16 %v4180
        %v4245 = vunpack.c.l.b16 %v4181
        %v4246 = vunpack.c.l.b16 %v4182
        %v4247 = vunpack.c.l.b16 %v4183
        %v4248 = vunpack.c.l.b16 %v4184
        %v4249 = vunpack.c.l.b16 %v4185
        %v4250 = vunpack.c.l.b16 %v4186
        %v4251 = vunpack.c.l.b16 %v4187
        %v4252 = vunpack.c.l.b16 %v4188
        %v4253 = vpack.c.b16 %v4222, %v4221
        %v4254 = vpack.c.b16 %v4224, %v4223
        %v4255 = vpack.c.b16 %v4226, %v4225
        %v4256 = vpack.c.b16 %v4228, %v4227
        %v4257 = vpack.c.b16 %v4230, %v4229
        %v4258 = vpack.c.b16 %v4232, %v4231
        %v4259 = vpack.c.b16 %v4234, %v4233
        %v4260 = vpack.c.b16 %v4236, %v4235
        %v4261 = vpack.c.b16 %v4238, %v4237
        %v4262 = vpack.c.b16 %v4240, %v4239
        %v4263 = vpack.c.b16 %v4242, %v4241
        %v4264 = vpack.c.b16 %v4244, %v4243
        %v4265 = vpack.c.b16 %v4246, %v4245
        %v4266 = vpack.c.b16 %v4248, %v4247
        %v4267 = vpack.c.b16 %v4250, %v4249
        %v4268 = vpack.c.b16 %v4252, %v4251
        %4285 = vmatpush.bf16.msra.mxu0 %v4260
        %4286 = vmatpush.bf16.msra.mxu0 %v4259
        %4287 = vmatpush.bf16.msra.mxu0 %v4258
        %4288 = vmatpush.bf16.msra.mxu0 %v4257
        %4289 = vmatpush.bf16.msra.mxu0 %v4256
        %4290 = vmatpush.bf16.msra.mxu0 %v4255
        %4291 = vmatpush.bf16.msra.mxu0 %v4254
        %4292 = vmatpush.bf16.msra.mxu0 %v4253
        %4293 = vmatmul.bf16.gmra.mxu0 %v4153
        %v4294 = vpop.f32.mrf.mxu0
        %v4295 = vadd.f32 0.0, %v4294
        %v4296 = vpop.f32.mrf.mxu0
        %4297 = vdwg.mxu0
        %4298 = vmatpush.bf16.msra.mxu0 %v4268
        %4299 = vmatpush.bf16.msra.mxu0 %v4267
        %4300 = vmatpush.bf16.msra.mxu0 %v4266
        %4301 = vmatpush.bf16.msra.mxu0 %v4265
        %4302 = vmatpush.bf16.msra.mxu0 %v4264
        %4303 = vmatpush.bf16.msra.mxu0 %v4263
        %4304 = vmatpush.bf16.msra.mxu0 %v4262
        %4305 = vmatpush.bf16.msra.mxu0 %v4261
        %4306 = vmatmul.bf16.gmra.mxu0 %v4154
        %v4307 = vpop.f32.mrf.mxu0
        %v4308 = vadd.f32 %v4295, %v4307
        %v4309 = vpop.f32.mrf.mxu0
        %4310 = vdwg.mxu0
        %v4311 = vadd.f32 %v4155, %v4308
        %4312 = vst [vmem:[#allocation2] sm:$0x3] %v4311
        %s4313 = sadd.s32 %s358, 14
        %s4314 = sld [smem:[#allocation5 + %s4313]]
        %v4315 = vstv %s4314
        %v4316 = vmul.f32 %v356, %v4315
        %s4317 = sshra.s32 %s4313, 7
        %s4318 = sand.u32 %s4313, 127
        %s4319 = sadd.s32 %s4317, 1
        %s4320 = smul.u32 %s4319, 128
        %s4321 = sshra.s32 %s4313, 7
        %s4322 = sand.u32 %s4313, 127
        %s4323 = sadd.s32 %s4320, %s4322
        %s4324 = sld [smem:[#allocation5 + %s4323]]
        %v4325 = vstv %s4324
        %v4326 = vmul.f32 %v357, %v4325
        %4328 = vrot.lane.b32.xlu0 %v4326, 127
        %v4329 = vpop.permute.xlu0 %4328
        %v4330 = vrot.slane %v4329, 2
        %v4331 = vsel %vm376, %v4329, %v4330
        %v4333 = vadd.f32 %v4316, %v4331
        %s4334 = sadd.s32 %s4317, 2
        %s4335 = smul.u32 %s4334, 128
        %s4336 = sadd.s32 %s4335, %s4322
        %s4337 = sld [smem:[#allocation5 + %s4336]]
        %v4338 = vstv %s4337
        %v4339 = vmul.f32 %v357, %v4338
        %4341 = vrot.lane.b32.xlu0 %v4339, 126
        %v4342 = vpop.permute.xlu0 %4341
        %v4343 = vrot.slane %v4342, 2
        %v4344 = vsel %vm390, %v4342, %v4343
        %v4346 = vadd.f32 %v4333, %v4344
        %s4347 = sadd.s32 %s4317, 3
        %s4348 = smul.u32 %s4347, 128
        %s4349 = sadd.s32 %s4348, %s4322
        %s4350 = sld [smem:[#allocation5 + %s4349]]
        %v4351 = vstv %s4350
        %v4352 = vmul.f32 %v357, %v4351
        %4354 = vrot.lane.b32.xlu0 %v4352, 112
        %v4355 = vpop.permute.xlu0 %4354
        %v4356 = vrot.slane %v4355, 2
        %v4357 = vsel %vm404, %v4355, %v4356
        %v4359 = vadd.f32 %v4346, %v4357
        %s4360 = sadd.s32 %s4317, 4
        %s4361 = smul.u32 %s4360, 128
        %s4362 = sadd.s32 %s4361, %s4322
        %s4363 = sld [smem:[#allocation5 + %s4362]]
        %v4364 = vstv %s4363
        %v4365 = vmul.f32 %v357, %v4364
        %4367 = vrot.lane.b32.xlu0 %v4365, 111
        %v4368 = vpop.permute.xlu0 %4367
        %v4369 = vrot.slane %v4368, 2
        %v4370 = vsel %vm418, %v4368, %v4369
        %v4372 = vadd.f32 %v4359, %v4370
        %s4373 = sadd.s32 %s4317, 5
        %s4374 = smul.u32 %s4373, 128
        %s4375 = sadd.s32 %s4374, %s4322
        %s4376 = sld [smem:[#allocation5 + %s4375]]
        %v4377 = vstv %s4376
        %v4378 = vmul.f32 %v357, %v4377
        %4380 = vrot.lane.b32.xlu0 %v4378, 110
        %v4381 = vpop.permute.xlu0 %4380
        %v4382 = vrot.slane %v4381, 2
        %v4383 = vsel %vm432, %v4381, %v4382
        %v4385 = vadd.f32 %v4372, %v4383
        %s4386 = sadd.s32 %s4317, 6
        %s4387 = smul.u32 %s4386, 128
        %s4388 = sadd.s32 %s4387, %s4322
        %s4389 = sld [smem:[#allocation5 + %s4388]]
        %v4390 = vstv %s4389
        %v4391 = vmul.f32 %v357, %v4390
        %4393 = vrot.lane.b32.xlu0 %v4391, 96
        %v4394 = vpop.permute.xlu0 %4393
        %v4395 = vrot.slane %v4394, 2
        %v4396 = vsel %vm446, %v4394, %v4395
        %v4398 = vadd.f32 %v4385, %v4396
        %s4399 = sadd.s32 %s4317, 7
        %s4400 = smul.u32 %s4399, 128
        %s4401 = sadd.s32 %s4400, %s4322
        %s4402 = sld [smem:[#allocation5 + %s4401]]
        %v4403 = vstv %s4402
        %v4404 = vmul.f32 %v357, %v4403
        %4406 = vrot.lane.b32.xlu0 %v4404, 95
        %v4407 = vpop.permute.xlu0 %4406
        %v4408 = vrot.slane %v4407, 2
        %v4409 = vsel %vm460, %v4407, %v4408
        %v4411 = vadd.f32 %v4398, %v4409
        %s4412 = sadd.s32 %s4317, 8
        %s4413 = smul.u32 %s4412, 128
        %s4414 = sadd.s32 %s4413, %s4322
        %s4415 = sld [smem:[#allocation5 + %s4414]]
        %v4416 = vstv %s4415
        %v4417 = vmul.f32 %v357, %v4416
        %4419 = vrot.lane.b32.xlu0 %v4417, 94
        %v4420 = vpop.permute.xlu0 %4419
        %v4421 = vrot.slane %v4420, 2
        %v4422 = vsel %vm474, %v4420, %v4421
        %v4424 = vadd.f32 %v4411, %v4422
        %s4425 = sld [smem:[#allocation8 + %s4313]]
        %v4426 = vstv %s4425
        %v4427 = vadd.f32 %v4424, %v4426
        %v4428 = vmax.f32 %v4427, 0.0
        %4430 = vst [vmem:[#allocation1] ss:$4 sm:$0xff] %v4428
        %v4431 = vld.sshfl [vmem:[#allocation1] sm:$0xff pattern:$0x73625140]
        %v4432 = vld.sshfl [vmem:[#allocation1 + $0x8] sm:$0xff pattern:$0x73625140]
        %v4435 = vpack.c.bf16 %v4431, %v4431
        %v4436 = vpack.c.bf16 %v4432, %v4432
        %v4437 = vld [vmem:[#allocation2] sm:$0x3]
        %s4438 = scalar_lea.vmem %s309, 1792 [#allocation10]
        %v4439 = vld [vmem:[%s4438] sm:$0xf]
        %v4440 = vld [vmem:[%s4438 + $0x4] sm:$0xf]
        %v4441 = vld [vmem:[%s4438 + $0x8] sm:$0xf]
        %v4442 = vld [vmem:[%s4438 + $0xc] sm:$0xf]
        %v4443 = vld [vmem:[%s4438 + $0x10] sm:$0xf]
        %v4444 = vld [vmem:[%s4438 + $0x14] sm:$0xf]
        %v4445 = vld [vmem:[%s4438 + $0x18] sm:$0xf]
        %v4446 = vld [vmem:[%s4438 + $0x1c] sm:$0xf]
        %v4447 = vld [vmem:[%s4438 + $0x20] sm:$0xf]
        %v4448 = vld [vmem:[%s4438 + $0x24] sm:$0xf]
        %v4449 = vld [vmem:[%s4438 + $0x28] sm:$0xf]
        %v4450 = vld [vmem:[%s4438 + $0x2c] sm:$0xf]
        %v4451 = vld [vmem:[%s4438 + $0x30] sm:$0xf]
        %v4452 = vld [vmem:[%s4438 + $0x34] sm:$0xf]
        %v4453 = vld [vmem:[%s4438 + $0x38] sm:$0xf]
        %v4454 = vld [vmem:[%s4438 + $0x3c] sm:$0xf]
        %v4455 = vld [vmem:[%s4438 + $0x40] sm:$0xf]
        %v4456 = vld [vmem:[%s4438 + $0x44] sm:$0xf]
        %v4457 = vld [vmem:[%s4438 + $0x48] sm:$0xf]
        %v4458 = vld [vmem:[%s4438 + $0x4c] sm:$0xf]
        %v4459 = vld [vmem:[%s4438 + $0x50] sm:$0xf]
        %v4460 = vld [vmem:[%s4438 + $0x54] sm:$0xf]
        %v4461 = vld [vmem:[%s4438 + $0x58] sm:$0xf]
        %v4462 = vld [vmem:[%s4438 + $0x5c] sm:$0xf]
        %v4463 = vld [vmem:[%s4438 + $0x60] sm:$0xf]
        %v4464 = vld [vmem:[%s4438 + $0x64] sm:$0xf]
        %v4465 = vld [vmem:[%s4438 + $0x68] sm:$0xf]
        %v4466 = vld [vmem:[%s4438 + $0x6c] sm:$0xf]
        %v4467 = vld [vmem:[%s4438 + $0x70] sm:$0xf]
        %v4468 = vld [vmem:[%s4438 + $0x74] sm:$0xf]
        %v4469 = vld [vmem:[%s4438 + $0x78] sm:$0xf]
        %v4470 = vld [vmem:[%s4438 + $0x7c] sm:$0xf]
        %v4503 = vunpack.c.l.b16 %v4439
        %v4504 = vunpack.c.l.b16 %v4440
        %v4505 = vunpack.c.l.b16 %v4441
        %v4506 = vunpack.c.l.b16 %v4442
        %v4507 = vunpack.c.l.b16 %v4443
        %v4508 = vunpack.c.l.b16 %v4444
        %v4509 = vunpack.c.l.b16 %v4445
        %v4510 = vunpack.c.l.b16 %v4446
        %v4511 = vunpack.c.l.b16 %v4447
        %v4512 = vunpack.c.l.b16 %v4448
        %v4513 = vunpack.c.l.b16 %v4449
        %v4514 = vunpack.c.l.b16 %v4450
        %v4515 = vunpack.c.l.b16 %v4451
        %v4516 = vunpack.c.l.b16 %v4452
        %v4517 = vunpack.c.l.b16 %v4453
        %v4518 = vunpack.c.l.b16 %v4454
        %v4519 = vunpack.c.l.b16 %v4455
        %v4520 = vunpack.c.l.b16 %v4456
        %v4521 = vunpack.c.l.b16 %v4457
        %v4522 = vunpack.c.l.b16 %v4458
        %v4523 = vunpack.c.l.b16 %v4459
        %v4524 = vunpack.c.l.b16 %v4460
        %v4525 = vunpack.c.l.b16 %v4461
        %v4526 = vunpack.c.l.b16 %v4462
        %v4527 = vunpack.c.l.b16 %v4463
        %v4528 = vunpack.c.l.b16 %v4464
        %v4529 = vunpack.c.l.b16 %v4465
        %v4530 = vunpack.c.l.b16 %v4466
        %v4531 = vunpack.c.l.b16 %v4467
        %v4532 = vunpack.c.l.b16 %v4468
        %v4533 = vunpack.c.l.b16 %v4469
        %v4534 = vunpack.c.l.b16 %v4470
        %v4535 = vpack.c.b16 %v4504, %v4503
        %v4536 = vpack.c.b16 %v4506, %v4505
        %v4537 = vpack.c.b16 %v4508, %v4507
        %v4538 = vpack.c.b16 %v4510, %v4509
        %v4539 = vpack.c.b16 %v4512, %v4511
        %v4540 = vpack.c.b16 %v4514, %v4513
        %v4541 = vpack.c.b16 %v4516, %v4515
        %v4542 = vpack.c.b16 %v4518, %v4517
        %v4543 = vpack.c.b16 %v4520, %v4519
        %v4544 = vpack.c.b16 %v4522, %v4521
        %v4545 = vpack.c.b16 %v4524, %v4523
        %v4546 = vpack.c.b16 %v4526, %v4525
        %v4547 = vpack.c.b16 %v4528, %v4527
        %v4548 = vpack.c.b16 %v4530, %v4529
        %v4549 = vpack.c.b16 %v4532, %v4531
        %v4550 = vpack.c.b16 %v4534, %v4533
        %4567 = vmatpush.bf16.msra.mxu0 %v4542
        %4568 = vmatpush.bf16.msra.mxu0 %v4541
        %4569 = vmatpush.bf16.msra.mxu0 %v4540
        %4570 = vmatpush.bf16.msra.mxu0 %v4539
        %4571 = vmatpush.bf16.msra.mxu0 %v4538
        %4572 = vmatpush.bf16.msra.mxu0 %v4537
        %4573 = vmatpush.bf16.msra.mxu0 %v4536
        %4574 = vmatpush.bf16.msra.mxu0 %v4535
        %4575 = vmatmul.bf16.gmra.mxu0 %v4435
        %v4576 = vpop.f32.mrf.mxu0
        %v4577 = vadd.f32 0.0, %v4576
        %v4578 = vpop.f32.mrf.mxu0
        %4579 = vdwg.mxu0
        %4580 = vmatpush.bf16.msra.mxu0 %v4550
        %4581 = vmatpush.bf16.msra.mxu0 %v4549
        %4582 = vmatpush.bf16.msra.mxu0 %v4548
        %4583 = vmatpush.bf16.msra.mxu0 %v4547
        %4584 = vmatpush.bf16.msra.mxu0 %v4546
        %4585 = vmatpush.bf16.msra.mxu0 %v4545
        %4586 = vmatpush.bf16.msra.mxu0 %v4544
        %4587 = vmatpush.bf16.msra.mxu0 %v4543
        %4588 = vmatmul.bf16.gmra.mxu0 %v4436
        %v4589 = vpop.f32.mrf.mxu0
        %v4590 = vadd.f32 %v4577, %v4589
        %v4591 = vpop.f32.mrf.mxu0
        %4592 = vdwg.mxu0
        %v4593 = vadd.f32 %v4437, %v4590
        %4594 = vst [vmem:[#allocation2] sm:$0x3] %v4593
        %s4595 = sadd.s32 %s358, 15
        %s4596 = sld [smem:[#allocation5 + %s4595]]
        %v4597 = vstv %s4596
        %v4598 = vmul.f32 %v356, %v4597
        %s4599 = sshra.s32 %s4595, 7
        %s4600 = sand.u32 %s4595, 127
        %s4601 = sadd.s32 %s4599, 1
        %s4602 = smul.u32 %s4601, 128
        %s4603 = sshra.s32 %s4595, 7
        %s4604 = sand.u32 %s4595, 127
        %s4605 = sadd.s32 %s4602, %s4604
        %s4606 = sld [smem:[#allocation5 + %s4605]]
        %v4607 = vstv %s4606
        %v4608 = vmul.f32 %v357, %v4607
        %4610 = vrot.lane.b32.xlu0 %v4608, 127
        %v4611 = vpop.permute.xlu0 %4610
        %v4612 = vrot.slane %v4611, 2
        %v4613 = vsel %vm376, %v4611, %v4612
        %v4615 = vadd.f32 %v4598, %v4613
        %s4616 = sadd.s32 %s4599, 2
        %s4617 = smul.u32 %s4616, 128
        %s4618 = sadd.s32 %s4617, %s4604
        %s4619 = sld [smem:[#allocation5 + %s4618]]
        %v4620 = vstv %s4619
        %v4621 = vmul.f32 %v357, %v4620
        %4623 = vrot.lane.b32.xlu0 %v4621, 126
        %v4624 = vpop.permute.xlu0 %4623
        %v4625 = vrot.slane %v4624, 2
        %v4626 = vsel %vm390, %v4624, %v4625
        %v4628 = vadd.f32 %v4615, %v4626
        %s4629 = sadd.s32 %s4599, 3
        %s4630 = smul.u32 %s4629, 128
        %s4631 = sadd.s32 %s4630, %s4604
        %s4632 = sld [smem:[#allocation5 + %s4631]]
        %v4633 = vstv %s4632
        %v4634 = vmul.f32 %v357, %v4633
        %4636 = vrot.lane.b32.xlu0 %v4634, 112
        %v4637 = vpop.permute.xlu0 %4636
        %v4638 = vrot.slane %v4637, 2
        %v4639 = vsel %vm404, %v4637, %v4638
        %v4641 = vadd.f32 %v4628, %v4639
        %s4642 = sadd.s32 %s4599, 4
        %s4643 = smul.u32 %s4642, 128
        %s4644 = sadd.s32 %s4643, %s4604
        %s4645 = sld [smem:[#allocation5 + %s4644]]
        %v4646 = vstv %s4645
        %v4647 = vmul.f32 %v357, %v4646
        %4649 = vrot.lane.b32.xlu0 %v4647, 111
        %v4650 = vpop.permute.xlu0 %4649
        %v4651 = vrot.slane %v4650, 2
        %v4652 = vsel %vm418, %v4650, %v4651
        %v4654 = vadd.f32 %v4641, %v4652
        %s4655 = sadd.s32 %s4599, 5
        %s4656 = smul.u32 %s4655, 128
        %s4657 = sadd.s32 %s4656, %s4604
        %s4658 = sld [smem:[#allocation5 + %s4657]]
        %v4659 = vstv %s4658
        %v4660 = vmul.f32 %v357, %v4659
        %4662 = vrot.lane.b32.xlu0 %v4660, 110
        %v4663 = vpop.permute.xlu0 %4662
        %v4664 = vrot.slane %v4663, 2
        %v4665 = vsel %vm432, %v4663, %v4664
        %v4667 = vadd.f32 %v4654, %v4665
        %s4668 = sadd.s32 %s4599, 6
        %s4669 = smul.u32 %s4668, 128
        %s4670 = sadd.s32 %s4669, %s4604
        %s4671 = sld [smem:[#allocation5 + %s4670]]
        %v4672 = vstv %s4671
        %v4673 = vmul.f32 %v357, %v4672
        %4675 = vrot.lane.b32.xlu0 %v4673, 96
        %v4676 = vpop.permute.xlu0 %4675
        %v4677 = vrot.slane %v4676, 2
        %v4678 = vsel %vm446, %v4676, %v4677
        %v4680 = vadd.f32 %v4667, %v4678
        %s4681 = sadd.s32 %s4599, 7
        %s4682 = smul.u32 %s4681, 128
        %s4683 = sadd.s32 %s4682, %s4604
        %s4684 = sld [smem:[#allocation5 + %s4683]]
        %v4685 = vstv %s4684
        %v4686 = vmul.f32 %v357, %v4685
        %4688 = vrot.lane.b32.xlu0 %v4686, 95
        %v4689 = vpop.permute.xlu0 %4688
        %v4690 = vrot.slane %v4689, 2
        %v4691 = vsel %vm460, %v4689, %v4690
        %v4693 = vadd.f32 %v4680, %v4691
        %s4694 = sadd.s32 %s4599, 8
        %s4695 = smul.u32 %s4694, 128
        %s4696 = sadd.s32 %s4695, %s4604
        %s4697 = sld [smem:[#allocation5 + %s4696]]
        %v4698 = vstv %s4697
        %v4699 = vmul.f32 %v357, %v4698
        %4701 = vrot.lane.b32.xlu0 %v4699, 94
        %v4702 = vpop.permute.xlu0 %4701
        %v4703 = vrot.slane %v4702, 2
        %v4704 = vsel %vm474, %v4702, %v4703
        %v4706 = vadd.f32 %v4693, %v4704
        %s4707 = sld [smem:[#allocation8 + %s4595]]
        %v4708 = vstv %s4707
        %v4709 = vadd.f32 %v4706, %v4708
        %v4710 = vmax.f32 %v4709, 0.0
        %4712 = vst [vmem:[#allocation1] ss:$4 sm:$0xff] %v4710
        %v4713 = vld.sshfl [vmem:[#allocation1] sm:$0xff pattern:$0x73625140]
        %v4714 = vld.sshfl [vmem:[#allocation1 + $0x8] sm:$0xff pattern:$0x73625140]
        %v4717 = vpack.c.bf16 %v4713, %v4713
        %v4718 = vpack.c.bf16 %v4714, %v4714
        %v4719 = vld [vmem:[#allocation2] sm:$0x3]
        %s4720 = scalar_lea.vmem %s309, 1920 [#allocation10]
        %v4721 = vld [vmem:[%s4720] sm:$0xf]
        %v4722 = vld [vmem:[%s4720 + $0x4] sm:$0xf]
        %v4723 = vld [vmem:[%s4720 + $0x8] sm:$0xf]
        %v4724 = vld [vmem:[%s4720 + $0xc] sm:$0xf]
        %v4725 = vld [vmem:[%s4720 + $0x10] sm:$0xf]
        %v4726 = vld [vmem:[%s4720 + $0x14] sm:$0xf]
        %v4727 = vld [vmem:[%s4720 + $0x18] sm:$0xf]
        %v4728 = vld [vmem:[%s4720 + $0x1c] sm:$0xf]
        %v4729 = vld [vmem:[%s4720 + $0x20] sm:$0xf]
        %v4730 = vld [vmem:[%s4720 + $0x24] sm:$0xf]
        %v4731 = vld [vmem:[%s4720 + $0x28] sm:$0xf]
        %v4732 = vld [vmem:[%s4720 + $0x2c] sm:$0xf]
        %v4733 = vld [vmem:[%s4720 + $0x30] sm:$0xf]
        %v4734 = vld [vmem:[%s4720 + $0x34] sm:$0xf]
        %v4735 = vld [vmem:[%s4720 + $0x38] sm:$0xf]
        %v4736 = vld [vmem:[%s4720 + $0x3c] sm:$0xf]
        %v4737 = vld [vmem:[%s4720 + $0x40] sm:$0xf]
        %v4738 = vld [vmem:[%s4720 + $0x44] sm:$0xf]
        %v4739 = vld [vmem:[%s4720 + $0x48] sm:$0xf]
        %v4740 = vld [vmem:[%s4720 + $0x4c] sm:$0xf]
        %v4741 = vld [vmem:[%s4720 + $0x50] sm:$0xf]
        %v4742 = vld [vmem:[%s4720 + $0x54] sm:$0xf]
        %v4743 = vld [vmem:[%s4720 + $0x58] sm:$0xf]
        %v4744 = vld [vmem:[%s4720 + $0x5c] sm:$0xf]
        %v4745 = vld [vmem:[%s4720 + $0x60] sm:$0xf]
        %v4746 = vld [vmem:[%s4720 + $0x64] sm:$0xf]
        %v4747 = vld [vmem:[%s4720 + $0x68] sm:$0xf]
        %v4748 = vld [vmem:[%s4720 + $0x6c] sm:$0xf]
        %v4749 = vld [vmem:[%s4720 + $0x70] sm:$0xf]
        %v4750 = vld [vmem:[%s4720 + $0x74] sm:$0xf]
        %v4751 = vld [vmem:[%s4720 + $0x78] sm:$0xf]
        %v4752 = vld [vmem:[%s4720 + $0x7c] sm:$0xf]
        %v4785 = vunpack.c.l.b16 %v4721
        %v4786 = vunpack.c.l.b16 %v4722
        %v4787 = vunpack.c.l.b16 %v4723
        %v4788 = vunpack.c.l.b16 %v4724
        %v4789 = vunpack.c.l.b16 %v4725
        %v4790 = vunpack.c.l.b16 %v4726
        %v4791 = vunpack.c.l.b16 %v4727
        %v4792 = vunpack.c.l.b16 %v4728
        %v4793 = vunpack.c.l.b16 %v4729
        %v4794 = vunpack.c.l.b16 %v4730
        %v4795 = vunpack.c.l.b16 %v4731
        %v4796 = vunpack.c.l.b16 %v4732
        %v4797 = vunpack.c.l.b16 %v4733
        %v4798 = vunpack.c.l.b16 %v4734
        %v4799 = vunpack.c.l.b16 %v4735
        %v4800 = vunpack.c.l.b16 %v4736
        %v4801 = vunpack.c.l.b16 %v4737
        %v4802 = vunpack.c.l.b16 %v4738
        %v4803 = vunpack.c.l.b16 %v4739
        %v4804 = vunpack.c.l.b16 %v4740
        %v4805 = vunpack.c.l.b16 %v4741
        %v4806 = vunpack.c.l.b16 %v4742
        %v4807 = vunpack.c.l.b16 %v4743
        %v4808 = vunpack.c.l.b16 %v4744
        %v4809 = vunpack.c.l.b16 %v4745
        %v4810 = vunpack.c.l.b16 %v4746
        %v4811 = vunpack.c.l.b16 %v4747
        %v4812 = vunpack.c.l.b16 %v4748
        %v4813 = vunpack.c.l.b16 %v4749
        %v4814 = vunpack.c.l.b16 %v4750
        %v4815 = vunpack.c.l.b16 %v4751
        %v4816 = vunpack.c.l.b16 %v4752
        %v4817 = vpack.c.b16 %v4786, %v4785
        %v4818 = vpack.c.b16 %v4788, %v4787
        %v4819 = vpack.c.b16 %v4790, %v4789
        %v4820 = vpack.c.b16 %v4792, %v4791
        %v4821 = vpack.c.b16 %v4794, %v4793
        %v4822 = vpack.c.b16 %v4796, %v4795
        %v4823 = vpack.c.b16 %v4798, %v4797
        %v4824 = vpack.c.b16 %v4800, %v4799
        %v4825 = vpack.c.b16 %v4802, %v4801
        %v4826 = vpack.c.b16 %v4804, %v4803
        %v4827 = vpack.c.b16 %v4806, %v4805
        %v4828 = vpack.c.b16 %v4808, %v4807
        %v4829 = vpack.c.b16 %v4810, %v4809
        %v4830 = vpack.c.b16 %v4812, %v4811
        %v4831 = vpack.c.b16 %v4814, %v4813
        %v4832 = vpack.c.b16 %v4816, %v4815
        %4849 = vmatpush.bf16.msra.mxu0 %v4824
        %4850 = vmatpush.bf16.msra.mxu0 %v4823
        %4851 = vmatpush.bf16.msra.mxu0 %v4822
        %4852 = vmatpush.bf16.msra.mxu0 %v4821
        %4853 = vmatpush.bf16.msra.mxu0 %v4820
        %4854 = vmatpush.bf16.msra.mxu0 %v4819
        %4855 = vmatpush.bf16.msra.mxu0 %v4818
        %4856 = vmatpush.bf16.msra.mxu0 %v4817
        %4857 = vmatmul.bf16.gmra.mxu0 %v4717
        %v4858 = vpop.f32.mrf.mxu0
        %v4859 = vadd.f32 0.0, %v4858
        %v4860 = vpop.f32.mrf.mxu0
        %4861 = vdwg.mxu0
        %4862 = vmatpush.bf16.msra.mxu0 %v4832
        %4863 = vmatpush.bf16.msra.mxu0 %v4831
        %4864 = vmatpush.bf16.msra.mxu0 %v4830
        %4865 = vmatpush.bf16.msra.mxu0 %v4829
        %4866 = vmatpush.bf16.msra.mxu0 %v4828
        %4867 = vmatpush.bf16.msra.mxu0 %v4827
        %4868 = vmatpush.bf16.msra.mxu0 %v4826
        %4869 = vmatpush.bf16.msra.mxu0 %v4825
        %4870 = vmatmul.bf16.gmra.mxu0 %v4718
        %v4871 = vpop.f32.mrf.mxu0
        %v4872 = vadd.f32 %v4859, %v4871
        %v4873 = vpop.f32.mrf.mxu0
        %4874 = vdwg.mxu0
        %v4875 = vadd.f32 %v4719, %v4872
        %4876 = vst [vmem:[#allocation2] sm:$0x3] %v4875
        %p4877 = scmp.eq.s32.totalorder %s26, 1
        // Predicated region
        $region73: #{temp_speech_classifier_forward.1} parent=47 // pred_check
          %p4878 = pneg %p4877
        $region74: #{temp_speech_classifier_forward.1} parent=47 // pred_check_branch
          %4880 = sbr.rel (%p4878) target = $region76
        $region75: #{temp_speech_classifier_forward.1} parent=47 // pred_region
          %v4881 = vld [vmem:[#allocation2] sm:$0x3]
          %v4882 = vld [vmem:[#allocation11] sm:$0x1]
          %v4884 = vperm.slane %v4882, 0
          %v4886 = vadd.f32 %v4881, %v4884
          %v4887 = vmax.f32 %v4886, 0.0
          %v4888 = vld [vmem:[#allocation13] sm:$0x1]
          %v4890 = vperm.slane %v4888, 0
          %v4892 = vmul.f32 %v4887, %v4890
          %vm4893 = vcmask 1041408
          %v4894 = vsel %vm4893, %v4892, 0.0
          %4895 = vadd.xlane.f32.xlu0 %v4894
          %v4896 = vpop.xlane.xlu0 %4895
          %v4897 = vld [vmem:[#allocation4] sm:$0x1]
          %v4899 = vperm.slane %v4897, 0
          %v4901 = vadd.f32 %v4896, %v4899
          %v4902 = vsub.f32 0.0, %v4901
          %v4903 = vmul.f32 %v4902, 1.442695
          %v4904 = vpow.pop %v4903
          %v4905 = vadd.f32 %v4904, 1.0
          %v4906 = vrcp.pop %v4905
          %v4907 = vmul.f32 %v4905, %v4906
          %v4908 = vsub.f32 1.0, %v4907
          %v4909 = vmul.f32 %v4906, %v4908
          %v4910 = vadd.f32 %v4906, %v4909
          %vm4911 = vweird.f32 %v4905
          %vm4912 = vweird.f32 %v4906
          %vm4913 = vmor %vm4911, %vm4912
          %v4914 = vsel %vm4913, %v4906, %v4910
          %v4915 = vand.u32 2147483647, %v4905
          %vm4916 = vcmp.eq.f32.partialorder %v4915, 8.507059e+37
          %v4917 = vand.u32 %v4905, 2147483648
          %v4918 = vor.u32 1.1754944e-38, %v4917
          %v4919 = vsel %vm4916, %v4918, %v4914
          %v4920 = vmul.f32 1.0, %v4919
          %vm4921 = vcmask 1024
          %4922 = vst.msk [vmem:[%s7] sm:$0x3] %vm4921, %v4920
        $region76: #{temp_speech_classifier_forward.1} parent=47 // pred_fallthru
          _
        // Predicated region
        $region77: #{temp_speech_classifier_forward.1} parent=47 // pred_check
          %p4923 = pneg %p191
        $region78: #{temp_speech_classifier_forward.1} parent=47 // pred_check_branch
          %4925 = sbr.rel (%p4923) target = $region80
        $region79: #{temp_speech_classifier_forward.1} parent=47 // pred_region
          _
        $region80: #{temp_speech_classifier_forward.1} parent=47 // pred_fallthru
          _
        // Predicated region
        $region81: #{temp_speech_classifier_forward.1} parent=47 // pred_check
          %p4926 = pneg %p191
        $region82: #{temp_speech_classifier_forward.1} parent=47 // pred_check_branch
          %4928 = sbr.rel (%p4926) target = $region84
        $region83: #{temp_speech_classifier_forward.1} parent=47 // pred_region
          _
        $region84: #{temp_speech_classifier_forward.1} parent=47 // pred_fallthru
          _
      $region48: #{temp_speech_classifier_forward.1} parent=5 // pred_fallthru
        _
      %p4929 = scmp.le.s32.totalorder 2, %s21
      // Predicated region
      $region85: #{temp_speech_classifier_forward.1} parent=5 // pred_check
        %p4930 = pneg %p4929
      $region86: #{temp_speech_classifier_forward.1} parent=5 // pred_check_branch
        %4932 = sbr.rel (%p4930) target = $region88
      $region87: #{temp_speech_classifier_forward.1} parent=5 // pred_region
        %s4933 = ssub.s32 %s21, 2
      $region88: #{temp_speech_classifier_forward.1} parent=5 // pred_fallthru
        _
    $region6: #{temp_speech_classifier_forward.1} parent=1 // loop_footer
      %s25 = sadd.s32 1, %s21
    $region7: #{temp_speech_classifier_forward.1} parent=1 // loop_footer_branch
      %20 = sbr.rel target = $region3
    $region8: #{temp_speech_classifier_forward.1} parent=1 // loop_exit
      _
    %4934 = vsyncpa [#allocation6], 1
    %s4935 = scalar_lea.sflag [#allocation6], 1
    %4936 = vsyncpa %s4935, 1
    %4937 = vsyncpa [#allocation12], 1
    %4938 = vsyncpa [#allocation7], 1
    %s4939 = scalar_lea.sflag [#allocation7], 1
    %4940 = vsyncpa %s4939, 1
    %4941 = vsyncpa [#allocation9], 1

</llo_original>
